<compile_context>
chip_gen: v5e
topology: v5e:2x2
jax: 0.10.0
libtpu: 0.0.40
codegen_flags: <defaults>
</compile_context>

<pallas_src>
import functools

import jax
import jax.numpy as jnp
from jax.experimental import pallas as pl
from jax.experimental.pallas import tpu as pltpu


def _round_up(x, m):
    return ((x + m - 1) // m) * m


def _vmem_plan():
    """Generation-aware (budget, limit) in bytes. Conservative fallback."""
    try:
        cap = int(pltpu.get_tpu_info().vmem_capacity_bytes)
    except Exception:
        cap = 64 << 20
    if cap >= (100 << 20):        # v5e / v6e: 128 MiB physical VMEM
        return 96 << 20, 112 << 20
    return 40 << 20, 48 << 20     # v7x: 64 MiB physical -> leave compiler headroom


def _mlp_kernel(x_ref, w1_ref, b1_ref, w2_ref, b2_ref, o_ref, acc_ref):
    # x_ref:  (TM, D_in)    streamed in HBM dtype (f32), cast on the VPU below
    # w1_ref: (D_in, TK_H)  b1_ref: (1, TK_H)
    # w2_ref: (TK_H, D_out) b2_ref: (1, D_out)
    # o_ref:  (TM, D_out)   acc_ref: (TM, D_out) f32 scratch accumulator
    k = pl.program_id(1)

    @pl.when(k == 0)
    def _init():
        acc_ref[...] = jnp.zeros_like(acc_ref)

    x = x_ref[...].astype(w1_ref.dtype)   # in-kernel cast (VPU has slack)

    # fc1 chunk (MXU, f32 accumulation) + bias + ReLU in f32
    h = jnp.dot(x, w1_ref[...], preferred_element_type=jnp.float32)
    h = jnp.maximum(h + b1_ref[...], 0.0)

    # fc2 chunk accumulated into f32 scratch (correct: ReLU is elementwise per
    # hidden unit and fc2 sums over hidden units, so partial sums are exact).
    acc_ref[...] += jnp.dot(h.astype(w2_ref.dtype), w2_ref[...],
                            preferred_element_type=jnp.float32)

    @pl.when(k == pl.num_programs(1) - 1)
    def _finalize():
        logits = acc_ref[...] + b2_ref[...]
        m = jnp.max(logits, axis=-1, keepdims=True)
        e = jnp.exp(logits - m)
        denom = jnp.sum(e, axis=-1, keepdims=True)
        o_ref[...] = (e * pl.reciprocal(denom, approx=True)).astype(o_ref.dtype)


def prepare_mlp_params(w1, b1, w2, b2, *, compute_dtype=jnp.bfloat16,
                       max_tk_h=None):
    """One-time parameter prep (hoisted out of the forward path).

    Casts weights to the MXU dtype, makes biases 2-D f32, picks a hidden-dim
    tile `tk_h` so weight chunks fit comfortably in VMEM, and zero-pads the
    hidden dim to a multiple of tk_h (padding contributes exactly 0 to fc2).
    Weights are expected as (in_features, out_features), i.e. PyTorch W.T.
    """
    d_in, hidden = w1.shape
    d_out = w2.shape[1]
    cbytes = jnp.dtype(compute_dtype).itemsize
    budget, _ = _vmem_plan()
    weight_budget = budget // 2          # leave the other half for row tiles

    full = _round_up(hidden, 128)

    def _chunk_bytes(tk):
        nbuf = 1 if tk >= full else 2    # streamed chunks double-buffer
        return nbuf * ((d_in * tk + tk * d_out) * cbytes + tk * 4) + d_out * 4

    tk_h = full
    while tk_h > 128 and _chunk_bytes(tk_h) > weight_budget:
        tk_h = _round_up(tk_h // 2, 128)
    if max_tk_h is not None:
        tk_h = min(tk_h, max(128, (int(max_tk_h) // 128) * 128))

    hidden_p = _round_up(hidden, tk_h)
    pad_h = hidden_p - hidden
    w1c = jnp.pad(w1.astype(compute_dtype), ((0, 0), (0, pad_h)))
    b1c = jnp.pad(b1.astype(jnp.float32), ((0, pad_h),)).reshape(1, hidden_p)
    w2c = jnp.pad(w2.astype(compute_dtype), ((0, pad_h), (0, 0)))
    b2c = b2.astype(jnp.float32).reshape(1, d_out)
    return {"w1": w1c, "b1": b1c, "w2": w2c, "b2": b2c, "tk_h": int(tk_h)}


@functools.partial(
    jax.jit,
    static_argnames=("tk_h", "tile_m", "out_dtype", "single_buffer_resident"))
def _mlp_forward_impl(x, w1, b1, w2, b2, *, tk_h, tile_m, out_dtype,
                      single_buffer_resident):
    B, S, d_in = x.shape
    hidden_p = w1.shape[1]
    d_out = w2.shape[1]
    n_rows = B * S

    cbytes = jnp.dtype(w1.dtype).itemsize
    in_bytes = jnp.dtype(x.dtype).itemsize
    out_bytes = jnp.dtype(out_dtype).itemsize
    budget, vmem_limit = _vmem_plan()

    n_h = hidden_p // tk_h
    resident = (n_h == 1)
    use_sb = resident and single_buffer_resident
    wfactor = 1 if use_sb else 2
    weight_bytes = (wfactor * ((d_in * tk_h + tk_h * d_out) * cbytes + tk_h * 4)
                    + d_out * 4)

    # ---- MXU-aligned row-tile selection under the VMEM budget ----
    row_align = 8
    cap_rows = _round_up(n_rows, row_align)
    if tile_m is not None:
        cap_rows = min(cap_rows, _round_up(int(tile_m), row_align))

    def _fits(t):
        stream = 2 * t * d_in * in_bytes + 2 * t * d_out * out_bytes
        live = t * tk_h * 4 + 2 * t * d_out * 4      # h, acc + softmax temps
        return stream + weight_bytes + live <= budget

    tm = row_align
    for align in (256, 128, row_align):
        cand = (cap_rows // align) * align
        while cand >= align and not _fits(cand):
            cand -= align
        if cand >= align:
            tm = cand
            break
    # Keep >= 2 row-grid steps when there is enough work (v7x has 2 TCs).
    if tile_m is None and tm >= cap_rows and cap_rows >= 512:
        tm = _round_up(cap_rows // 2, 256)

    x2d = x.reshape(n_rows, d_in)        # no dtype cast here (see kernel)

    def _maybe_single(shape, idx, single):
        if single:
            return pl.BlockSpec(shape, idx, pipeline_mode=pl.Buffered(1))
        return pl.BlockSpec(shape, idx)

    grid = (pl.cdiv(n_rows, tm), n_h)
    # TODO(synk): if the x-tile DMA ever shows up as exposed for tiny d_in,
    # sweep pipeline_mode=pl.Buffered(3) on the x in_spec / out_spec.
    in_specs = [
        pl.BlockSpec((tm, d_in), lambda i, k: (i, 0)),                 # x rows
        _maybe_single((d_in, tk_h), lambda i, k: (0, k), use_sb),      # W1
        _maybe_single((1, tk_h), lambda i, k: (0, k), use_sb),         # b1
        _maybe_single((tk_h, d_out), lambda i, k: (k, 0), use_sb),     # W2
        _maybe_single((1, d_out), lambda i, k: (0, 0),                 # b2
                      single_buffer_resident),
    ]

    out2d = pl.pallas_call(
        _mlp_kernel,
        out_shape=jax.ShapeDtypeStruct((n_rows, d_out), out_dtype),
        grid_spec=pltpu.PrefetchScalarGridSpec(
            num_scalar_prefetch=0,
            grid=grid,
            in_specs=in_specs,
            out_specs=pl.BlockSpec((tm, d_out), lambda i, k: (i, 0)),
            scratch_shapes=[pltpu.VMEM((tm, d_out), jnp.float32)],
        ),
        compiler_params=pltpu.CompilerParams(
            dimension_semantics=("parallel", "arbitrary"),
            vmem_limit_bytes=vmem_limit,
        ),
    )(x2d, w1, b1, w2, b2)

    return out2d.reshape(B, S, d_out)


def mlp_forward(x, params, *, tile_m=None, out_dtype=jnp.float32):
    """x: (B, S, D_in) -> softmax(fc2(relu(fc1(x))), dim=2), shape (B, S, D_out)."""
    args = (x, params["w1"], params["b1"], params["w2"], params["b2"])
    kw = dict(tk_h=params["tk_h"], tile_m=tile_m, out_dtype=out_dtype)
    try:
        return _mlp_forward_impl(*args, single_buffer_resident=True, **kw)
    except Exception:
        # pl.Buffered(1) unsupported on this jax/libtpu -> default buffering.
        return _mlp_forward_impl(*args, single_buffer_resident=False, **kw)


def init_params(key, input_dim, hidden_dim, output_dim):
    """Deterministic init mimicking nn.Linear's default U(-1/sqrt(fan_in), +)."""
    k1, k2, k3, k4 = jax.random.split(key, 4)
    bound1 = 1.0 / (input_dim ** 0.5)
    bound2 = 1.0 / (hidden_dim ** 0.5)
    # stored as (in_features, out_features) so the kernel does x @ W
    w1 = jax.random.uniform(k1, (input_dim, hidden_dim), jnp.float32, -bound1, bound1)
    b1 = jax.random.uniform(k2, (hidden_dim,), jnp.float32, -bound1, bound1)
    w2 = jax.random.uniform(k3, (hidden_dim, output_dim), jnp.float32, -bound2, bound2)
    b2 = jax.random.uniform(k4, (output_dim,), jnp.float32, -bound2, bound2)
    return w1, b1, w2, b2


def _reference(x, w1, b1, w2, b2):
    h = jnp.maximum(jnp.einsum("bsd,dh->bsh", x, w1) + b1, 0.0)
    logits = jnp.einsum("bsh,ho->bso", h, w2) + b2
    return jax.nn.softmax(logits, axis=2)


if __name__ == "__main__":
    # 512 rows -> two MXU-aligned (256-row) tiles so both v7x TCs get work;
    # H and D_out are lane-dense multiples of 128.
    B, S = 4, 128
    input_dim, hidden_dim, output_dim = 128, 256, 128

    key = jax.random.PRNGKey(0)
    kx, kp = jax.random.split(key)
    x = jax.random.normal(kx, (B, S, input_dim), dtype=jnp.float32)
    w1, b1, w2, b2 = init_params(kp, input_dim, hidden_dim, output_dim)
    ref = _reference(x, w1, b1, w2, b2)

    # Resident-weight path (weights fit VMEM, single-buffered).
    params = prepare_mlp_params(w1, b1, w2, b2)          # one-time cast/pad
    out = jax.block_until_ready(mlp_forward(x, params))
    assert out.shape == (B, S, output_dim)
    # bf16 MXU inputs + approx reciprocal -> compare with a loose tolerance.
    assert jnp.allclose(out, ref, atol=2e-2, rtol=2e-2), (
        float(jnp.max(jnp.abs(out - ref))))
    assert jnp.allclose(jnp.sum(out, axis=2), 1.0, atol=1e-2)

    # Hidden-dim-tiled accumulator path (what large H would use on v7x).
    params_tiled = prepare_mlp_params(w1, b1, w2, b2, max_tk_h=128)
    out_t = jax.block_until_ready(mlp_forward(x, params_tiled))
    assert jnp.allclose(out_t, ref, atol=2e-2, rtol=2e-2), (
        float(jnp.max(jnp.abs(out_t - ref))))

    print("KERNEL_OK")
</pallas_src>

<mosaic_0001>
module attributes {stable_mosaic.version = 11 : i64} {
  func.func @_mlp_kernel(%arg0: i32, %arg1: i32, %arg2: memref<256x128xf32, #tpu.memory_space<vmem>>, %arg3: memref<128x256xbf16, #tpu.memory_space<vmem>>, %arg4: memref<1x256xf32, #tpu.memory_space<vmem>>, %arg5: memref<256x128xbf16, #tpu.memory_space<vmem>>, %arg6: memref<1x128xf32, #tpu.memory_space<vmem>>, %arg7: memref<256x128xf32, #tpu.memory_space<vmem>>, %arg8: memref<256x128xf32, #tpu.memory_space<vmem>>) attributes {dimension_semantics = [#tpu.dimension_semantics<parallel>, #tpu.dimension_semantics<arbitrary>], iteration_bounds = array<i64: 2, 1>, scalar_prefetch = 0 : i64, scratch_operands = 1 : i64, tpu.core_type = #tpu.core_type<tc>, window_params = [{transform_indices = @transform_0, window_bounds = array<i64: 256, 128>}, {pipeline_mode = #tpu.pipeline_mode<synchronous>, transform_indices = @transform_1, window_bounds = array<i64: 128, 256>}, {pipeline_mode = #tpu.pipeline_mode<synchronous>, transform_indices = @transform_2, window_bounds = array<i64: 1, 256>}, {pipeline_mode = #tpu.pipeline_mode<synchronous>, transform_indices = @transform_3, window_bounds = array<i64: 256, 128>}, {pipeline_mode = #tpu.pipeline_mode<synchronous>, transform_indices = @transform_4, window_bounds = array<i64: 1, 128>}, {transform_indices = @transform_5, window_bounds = array<i64: 256, 128>}]} {
    %c0_i32 = arith.constant 0 : i32
    %0 = arith.cmpi eq, %arg1, %c0_i32 : i32
    %1 = arith.extui %0 : i1 to i32
    %c0_i32_0 = arith.constant 0 : i32
    %2 = arith.cmpi ne, %1, %c0_i32_0 : i32
    scf.if %2 {
      %cst_16 = arith.constant 0.000000e+00 : f32
      %21 = vector.broadcast %cst_16 : f32 to vector<256x128xf32>
      %c0_17 = arith.constant 0 : index
      %c0_18 = arith.constant 0 : index
      %22 = vector.load %arg8[%c0_17, %c0_18] : memref<256x128xf32, #tpu.memory_space<vmem>>, vector<256x128xf32>
      tpu.vector_store %arg8[%c0_17, %c0_18], %21 {strides = array<i32>} : memref<256x128xf32, #tpu.memory_space<vmem>>, vector<256x128xf32>,
    } else {
    }
    %c0 = arith.constant 0 : index
    %c0_1 = arith.constant 0 : index
    %3 = vector.load %arg2[%c0, %c0_1] : memref<256x128xf32, #tpu.memory_space<vmem>>, vector<256x128xf32>
    %4 = arith.truncf %3 : vector<256x128xf32> to vector<256x128xbf16>
    %c0_2 = arith.constant 0 : index
    %c0_3 = arith.constant 0 : index
    %5 = vector.load %arg3[%c0_2, %c0_3] : memref<128x256xbf16, #tpu.memory_space<vmem>>, vector<128x256xbf16>
    %cst = arith.constant dense<0.000000e+00> : vector<256x256xf32>
    %6 = tpu.matmul %4, %5, %cst {dimension_numbers = #tpu.dot_dimension_numbers<[1], [0], [0], [1], [0, 0, 1, 1], [], []>} : vector<256x128xbf16>, vector<128x256xbf16>, vector<256x256xf32> -> vector<256x256xf32>
    %c0_4 = arith.constant 0 : index
    %c0_5 = arith.constant 0 : index
    %7 = vector.load %arg4[%c0_4, %c0_5] : memref<1x256xf32, #tpu.memory_space<vmem>>, vector<1x256xf32>
    %8 = vector.broadcast %7 : vector<1x256xf32> to vector<256x256xf32>
    %9 = arith.addf %6, %8 : vector<256x256xf32>
    %cst_6 = arith.constant 0.000000e+00 : f32
    %10 = vector.broadcast %cst_6 : f32 to vector<256x256xf32>
    %11 = arith.maximumf %9, %10 : vector<256x256xf32>
    %c0_7 = arith.constant 0 : index
    %c0_8 = arith.constant 0 : index
    %12 = vector.load %arg8[%c0_7, %c0_8] : memref<256x128xf32, #tpu.memory_space<vmem>>, vector<256x128xf32>
    %13 = arith.truncf %11 : vector<256x256xf32> to vector<256x256xbf16>
    %c0_9 = arith.constant 0 : index
    %c0_10 = arith.constant 0 : index
    %14 = vector.load %arg5[%c0_9, %c0_10] : memref<256x128xbf16, #tpu.memory_space<vmem>>, vector<256x128xbf16>
    %cst_11 = arith.constant dense<0.000000e+00> : vector<256x128xf32>
    %15 = tpu.matmul %13, %14, %cst_11 {dimension_numbers = #tpu.dot_dimension_numbers<[1], [0], [0], [1], [0, 0, 1, 1], [], []>} : vector<256x256xbf16>, vector<256x128xbf16>, vector<256x128xf32> -> vector<256x128xf32>
    %16 = arith.addf %12, %15 : vector<256x128xf32>
    %c0_12 = arith.constant 0 : index
    %c0_13 = arith.constant 0 : index
    %17 = vector.load %arg8[%c0_12, %c0_13] : memref<256x128xf32, #tpu.memory_space<vmem>>, vector<256x128xf32>
    tpu.vector_store %arg8[%c0_12, %c0_13], %16 {strides = array<i32>} : memref<256x128xf32, #tpu.memory_space<vmem>>, vector<256x128xf32>,
    %c0_i32_14 = arith.constant 0 : i32
    %18 = arith.cmpi eq, %arg1, %c0_i32_14 : i32
    %19 = arith.extui %18 : i1 to i32
    %c0_i32_15 = arith.constant 0 : i32
    %20 = arith.cmpi ne, %19, %c0_i32_15 : i32
    scf.if %20 {
      %c0_16 = arith.constant 0 : index
      %c0_17 = arith.constant 0 : index
      %21 = vector.load %arg8[%c0_16, %c0_17] : memref<256x128xf32, #tpu.memory_space<vmem>>, vector<256x128xf32>
      %c0_18 = arith.constant 0 : index
      %c0_19 = arith.constant 0 : index
      %22 = vector.load %arg6[%c0_18, %c0_19] : memref<1x128xf32, #tpu.memory_space<vmem>>, vector<1x128xf32>
      %23 = vector.broadcast %22 : vector<1x128xf32> to vector<256x128xf32>
      %24 = arith.addf %21, %23 : vector<256x128xf32>
      %cst_20 = arith.constant dense<0xFF800000> : vector<256xf32>
      %25 = vector.multi_reduction <maximumf>, %24, %cst_20 [1] : vector<256x128xf32> to vector<256xf32>
      %26 = vector.shape_cast %25 : vector<256xf32> to vector<256x1xf32>
      %27 = vector.broadcast %26 : vector<256x1xf32> to vector<256x128xf32>
      %28 = arith.subf %24, %27 : vector<256x128xf32>
      %29 = math.exp %28 : vector<256x128xf32>
      %cst_21 = arith.constant dense<0.000000e+00> : vector<256xf32>
      %30 = vector.multi_reduction <add>, %29, %cst_21 [1] : vector<256x128xf32> to vector<256xf32>
      %31 = vector.shape_cast %30 : vector<256xf32> to vector<256x1xf32>
      %32 = tpu.reciprocal %31 {approx = true} : vector<256x1xf32> -> vector<256x1xf32>
      %33 = vector.broadcast %32 : vector<256x1xf32> to vector<256x128xf32>
      %34 = arith.mulf %29, %33 : vector<256x128xf32>
      %c0_22 = arith.constant 0 : index
      %c0_23 = arith.constant 0 : index
      %35 = vector.load %arg7[%c0_22, %c0_23] : memref<256x128xf32, #tpu.memory_space<vmem>>, vector<256x128xf32>
      tpu.vector_store %arg7[%c0_22, %c0_23], %34 {strides = array<i32>} : memref<256x128xf32, #tpu.memory_space<vmem>>, vector<256x128xf32>,
    } else {
    }
    return
  }
  func.func @transform_0(%arg0: i32, %arg1: i32) -> (i32, i32) {
    %c0_i32 = arith.constant 0 : i32
    %c0_i32_0 = arith.constant 0 : i32
    return %arg0, %c0_i32 : i32, i32
  }
  func.func @transform_1(%arg0: i32, %arg1: i32) -> (i32, i32) {
    %c0_i32 = arith.constant 0 : i32
    %c0_i32_0 = arith.constant 0 : i32
    return %c0_i32, %arg1 : i32, i32
  }
  func.func @transform_2(%arg0: i32, %arg1: i32) -> (i32, i32) {
    %c0_i32 = arith.constant 0 : i32
    %c0_i32_0 = arith.constant 0 : i32
    return %c0_i32, %arg1 : i32, i32
  }
  func.func @transform_3(%arg0: i32, %arg1: i32) -> (i32, i32) {
    %c0_i32 = arith.constant 0 : i32
    %c0_i32_0 = arith.constant 0 : i32
    return %arg1, %c0_i32 : i32, i32
  }
  func.func @transform_4(%arg0: i32, %arg1: i32) -> (i32, i32) {
    %c0_i32 = arith.constant 0 : i32
    %c0_i32_0 = arith.constant 0 : i32
    %c0_i32_1 = arith.constant 0 : i32
    return %c0_i32, %c0_i32_0 : i32, i32
  }
  func.func @transform_5(%arg0: i32, %arg1: i32) -> (i32, i32) {
    %c0_i32 = arith.constant 0 : i32
    %c0_i32_0 = arith.constant 0 : i32
    return %arg0, %c0_i32 : i32, i32
  }
}

module attributes {stable_mosaic.version = 11 : i64} {
  func.func @_mlp_kernel(%arg0: i32, %arg1: i32, %arg2: memref<256x128xf32, #tpu.memory_space<vmem>>, %arg3: memref<128x256xbf16, #tpu.memory_space<vmem>>, %arg4: memref<1x256xf32, #tpu.memory_space<vmem>>, %arg5: memref<256x128xbf16, #tpu.memory_space<vmem>>, %arg6: memref<1x128xf32, #tpu.memory_space<vmem>>, %arg7: memref<256x128xf32, #tpu.memory_space<vmem>>, %arg8: memref<256x128xf32, #tpu.memory_space<vmem>>) attributes {dimension_semantics = [#tpu.dimension_semantics<parallel>, #tpu.dimension_semantics<arbitrary>], iteration_bounds = array<i64: 2, 1>, scalar_prefetch = 0 : i64, scratch_operands = 1 : i64, tpu.core_type = #tpu.core_type<tc>, window_params = [{transform_indices = @transform_0, window_bounds = array<i64: 256, 128>}, {transform_indices = @transform_1, window_bounds = array<i64: 128, 256>}, {transform_indices = @transform_2, window_bounds = array<i64: 1, 256>}, {transform_indices = @transform_3, window_bounds = array<i64: 256, 128>}, {pipeline_mode = #tpu.pipeline_mode<synchronous>, transform_indices = @transform_4, window_bounds = array<i64: 1, 128>}, {transform_indices = @transform_5, window_bounds = array<i64: 256, 128>}]} {
    %c0_i32 = arith.constant 0 : i32
    %0 = arith.cmpi eq, %arg1, %c0_i32 : i32
    %1 = arith.extui %0 : i1 to i32
    %c0_i32_0 = arith.constant 0 : i32
    %2 = arith.cmpi ne, %1, %c0_i32_0 : i32
    scf.if %2 {
      %cst_16 = arith.constant 0.000000e+00 : f32
      %21 = vector.broadcast %cst_16 : f32 to vector<256x128xf32>
      %c0_17 = arith.constant 0 : index
      %c0_18 = arith.constant 0 : index
      %22 = vector.load %arg8[%c0_17, %c0_18] : memref<256x128xf32, #tpu.memory_space<vmem>>, vector<256x128xf32>
      tpu.vector_store %arg8[%c0_17, %c0_18], %21 {strides = array<i32>} : memref<256x128xf32, #tpu.memory_space<vmem>>, vector<256x128xf32>,
    } else {
    }
    %c0 = arith.constant 0 : index
    %c0_1 = arith.constant 0 : index
    %3 = vector.load %arg2[%c0, %c0_1] : memref<256x128xf32, #tpu.memory_space<vmem>>, vector<256x128xf32>
    %4 = arith.truncf %3 : vector<256x128xf32> to vector<256x128xbf16>
    %c0_2 = arith.constant 0 : index
    %c0_3 = arith.constant 0 : index
    %5 = vector.load %arg3[%c0_2, %c0_3] : memref<128x256xbf16, #tpu.memory_space<vmem>>, vector<128x256xbf16>
    %cst = arith.constant dense<0.000000e+00> : vector<256x256xf32>
    %6 = tpu.matmul %4, %5, %cst {dimension_numbers = #tpu.dot_dimension_numbers<[1], [0], [0], [1], [0, 0, 1, 1], [], []>} : vector<256x128xbf16>, vector<128x256xbf16>, vector<256x256xf32> -> vector<256x256xf32>
    %c0_4 = arith.constant 0 : index
    %c0_5 = arith.constant 0 : index
    %7 = vector.load %arg4[%c0_4, %c0_5] : memref<1x256xf32, #tpu.memory_space<vmem>>, vector<1x256xf32>
    %8 = vector.broadcast %7 : vector<1x256xf32> to vector<256x256xf32>
    %9 = arith.addf %6, %8 : vector<256x256xf32>
    %cst_6 = arith.constant 0.000000e+00 : f32
    %10 = vector.broadcast %cst_6 : f32 to vector<256x256xf32>
    %11 = arith.maximumf %9, %10 : vector<256x256xf32>
    %c0_7 = arith.constant 0 : index
    %c0_8 = arith.constant 0 : index
    %12 = vector.load %arg8[%c0_7, %c0_8] : memref<256x128xf32, #tpu.memory_space<vmem>>, vector<256x128xf32>
    %13 = arith.truncf %11 : vector<256x256xf32> to vector<256x256xbf16>
    %c0_9 = arith.constant 0 : index
    %c0_10 = arith.constant 0 : index
    %14 = vector.load %arg5[%c0_9, %c0_10] : memref<256x128xbf16, #tpu.memory_space<vmem>>, vector<256x128xbf16>
    %cst_11 = arith.constant dense<0.000000e+00> : vector<256x128xf32>
    %15 = tpu.matmul %13, %14, %cst_11 {dimension_numbers = #tpu.dot_dimension_numbers<[1], [0], [0], [1], [0, 0, 1, 1], [], []>} : vector<256x256xbf16>, vector<256x128xbf16>, vector<256x128xf32> -> vector<256x128xf32>
    %16 = arith.addf %12, %15 : vector<256x128xf32>
    %c0_12 = arith.constant 0 : index
    %c0_13 = arith.constant 0 : index
    %17 = vector.load %arg8[%c0_12, %c0_13] : memref<256x128xf32, #tpu.memory_space<vmem>>, vector<256x128xf32>
    tpu.vector_store %arg8[%c0_12, %c0_13], %16 {strides = array<i32>} : memref<256x128xf32, #tpu.memory_space<vmem>>, vector<256x128xf32>,
    %c0_i32_14 = arith.constant 0 : i32
    %18 = arith.cmpi eq, %arg1, %c0_i32_14 : i32
    %19 = arith.extui %18 : i1 to i32
    %c0_i32_15 = arith.constant 0 : i32
    %20 = arith.cmpi ne, %19, %c0_i32_15 : i32
    scf.if %20 {
      %c0_16 = arith.constant 0 : index
      %c0_17 = arith.constant 0 : index
      %21 = vector.load %arg8[%c0_16, %c0_17] : memref<256x128xf32, #tpu.memory_space<vmem>>, vector<256x128xf32>
      %c0_18 = arith.constant 0 : index
      %c0_19 = arith.constant 0 : index
      %22 = vector.load %arg6[%c0_18, %c0_19] : memref<1x128xf32, #tpu.memory_space<vmem>>, vector<1x128xf32>
      %23 = vector.broadcast %22 : vector<1x128xf32> to vector<256x128xf32>
      %24 = arith.addf %21, %23 : vector<256x128xf32>
      %cst_20 = arith.constant dense<0xFF800000> : vector<256xf32>
      %25 = vector.multi_reduction <maximumf>, %24, %cst_20 [1] : vector<256x128xf32> to vector<256xf32>
      %26 = vector.shape_cast %25 : vector<256xf32> to vector<256x1xf32>
      %27 = vector.broadcast %26 : vector<256x1xf32> to vector<256x128xf32>
      %28 = arith.subf %24, %27 : vector<256x128xf32>
      %29 = math.exp %28 : vector<256x128xf32>
      %cst_21 = arith.constant dense<0.000000e+00> : vector<256xf32>
      %30 = vector.multi_reduction <add>, %29, %cst_21 [1] : vector<256x128xf32> to vector<256xf32>
      %31 = vector.shape_cast %30 : vector<256xf32> to vector<256x1xf32>
      %32 = tpu.reciprocal %31 {approx = true} : vector<256x1xf32> -> vector<256x1xf32>
      %33 = vector.broadcast %32 : vector<256x1xf32> to vector<256x128xf32>
      %34 = arith.mulf %29, %33 : vector<256x128xf32>
      %c0_22 = arith.constant 0 : index
      %c0_23 = arith.constant 0 : index
      %35 = vector.load %arg7[%c0_22, %c0_23] : memref<256x128xf32, #tpu.memory_space<vmem>>, vector<256x128xf32>
      tpu.vector_store %arg7[%c0_22, %c0_23], %34 {strides = array<i32>} : memref<256x128xf32, #tpu.memory_space<vmem>>, vector<256x128xf32>,
    } else {
    }
    return
  }
  func.func @transform_0(%arg0: i32, %arg1: i32) -> (i32, i32) {
    %c0_i32 = arith.constant 0 : i32
    %c0_i32_0 = arith.constant 0 : i32
    return %arg0, %c0_i32 : i32, i32
  }
  func.func @transform_1(%arg0: i32, %arg1: i32) -> (i32, i32) {
    %c0_i32 = arith.constant 0 : i32
    %c0_i32_0 = arith.constant 0 : i32
    return %c0_i32, %arg1 : i32, i32
  }
  func.func @transform_2(%arg0: i32, %arg1: i32) -> (i32, i32) {
    %c0_i32 = arith.constant 0 : i32
    %c0_i32_0 = arith.constant 0 : i32
    return %c0_i32, %arg1 : i32, i32
  }
  func.func @transform_3(%arg0: i32, %arg1: i32) -> (i32, i32) {
    %c0_i32 = arith.constant 0 : i32
    %c0_i32_0 = arith.constant 0 : i32
    return %arg1, %c0_i32 : i32, i32
  }
  func.func @transform_4(%arg0: i32, %arg1: i32) -> (i32, i32) {
    %c0_i32 = arith.constant 0 : i32
    %c0_i32_0 = arith.constant 0 : i32
    %c0_i32_1 = arith.constant 0 : i32
    return %c0_i32, %c0_i32_0 : i32, i32
  }
  func.func @transform_5(%arg0: i32, %arg1: i32) -> (i32, i32) {
    %c0_i32 = arith.constant 0 : i32
    %c0_i32_0 = arith.constant 0 : i32
    return %arg0, %c0_i32 : i32, i32
  }
}

</mosaic_0001>

<llo_original>
// kernel: _mlp_forward_impl.1
$region0: #{_mlp_forward_impl.1}
  #allocation0 [shape = 'u32[]', space=smem, size = 0x4, offset = 0x4, fixed_abs, tag = 'smem constant byte address 0x4 - core index']
  #allocation1 [shape = 'u32[72,128]{1,0:T(1,128)}', space=vmem, size = 0x9000, scoped, tag = 'internal scratch']
  #allocation2 [shape = 'f32[256,128]{1,0:T(8,128)}', space=vmem, size = 0x20000, scoped, tag = 'scratch operand']
  %s0 = inlined_call_operand.hbm [shape: f32[512,128], index: 0, kind: input, shape index: {}]
  %s1 = inlined_call_operand.hbm [shape: bf16[128,256], index: 1, kind: input, shape index: {}]
  %s2 = inlined_call_operand.vmem [shape: f32[1,256], index: 2, kind: input, shape index: {}]
  %s3 = inlined_call_operand.hbm [shape: bf16[256,128], index: 3, kind: input, shape index: {}]
  %s4 = inlined_call_operand.vmem [shape: f32[1,128], index: 4, kind: input, shape index: {}]
  %s5 = inlined_call_operand.hbm [shape: f32[512,128], index: 5, kind: output, shape index: {}]
  %s6 = sld [smem:[#allocation0]]
  $region73: #{_mlp_forward_impl.1} parent=0
    _
  %s8 = ssub.s32 1, %s6
  %s9 = scalar_select 0, %s8, %s6
  $region1: #{_mlp_forward_impl.1} parent=0
    #allocation3 [shape = 'u8[262144]{0}', space=vmem, size = 0x40000, scoped, tag = 'input window, operand 0']
    #allocation4 [shape = 's32[2]{0}', space=sflag, size = 0x8, scoped, tag = 'scoped memory for _mlp_forward_impl.1']
    #allocation5 [shape = 's32[2]{0}', space=sflag, size = 0x8, scoped, tag = 'scoped memory for _mlp_forward_impl.1']
    #allocation6 [shape = 'u8[65536]{0}', space=vmem, size = 0x10000, scoped, tag = 'input window, operand 1, single buffered']
    #allocation7 [shape = 's32[1]{0}', space=sflag, size = 0x4, scoped, tag = 'scoped memory for _mlp_forward_impl.1']
    #allocation8 [shape = 'u8[65536]{0}', space=vmem, size = 0x10000, scoped, tag = 'input window, operand 3, single buffered']
    #allocation9 [shape = 'u8[262144]{0}', space=vmem, size = 0x40000, scoped, tag = 'output window, operand 0']
    %10 = vsyncpa [#allocation4], 0
    %s11 = scalar_lea.sflag [#allocation4], 1
    %12 = vsyncpa %s11, 0
    %13 = vsyncpa [#allocation7], 0
    %14 = vsyncpa [#allocation5], 0
    %s15 = scalar_lea.sflag [#allocation5], 1
    %16 = vsyncpa %s15, 0
    loop: start=0, step=1, limit=4
    $region2: #{_mlp_forward_impl.1} parent=1 // loop_pre_header
      _
    $region3: #{_mlp_forward_impl.1} parent=1 // loop_header
      %s18 = sphi 0, %s22
      %p19 = scmp.ge.s32.totalorder %s18, 4
      %s25 = sphi 0, %s37
      %s26 = sphi 0, %s33
      %s27 = sphi 0, %s25
      %s28 = sphi 0, %s26
      %s29 = sphi 0, %s27
      %s30 = sphi 0, %s28
      %s40 = sphi 0, %s42
      %s43 = sphi 0, %s40
      %s44 = sphi 0, %s43
      %s60 = sphi 0, %s44
      %s66 = sphi 0, %s68
      %s69 = sphi 0, %s66
      %s70 = sphi 0, %s69
      %s86 = sphi 0, %s70
      %s92 = sphi 0, %s94
      %s95 = sphi 0, %s92
      %s96 = sphi 0, %s95
      %s112 = sphi 0, %s96
      %s118 = sphi 0, %s120
      %s121 = sphi 0, %s118
      %s122 = sphi 0, %s121
      %s138 = sphi 0, %s122
      %s142 = sphi 0, %s142
      %s144 = sphi 0, %s142
      %s145 = sphi 0, %s144
      %s159 = sphi 0, %s145
      %s165 = sphi 0, %s167
      %s168 = sphi 0, %s165
      %s169 = sphi 0, %s168
      %s185 = sphi 0, %s169
    $region4: #{_mlp_forward_impl.1} parent=1 // loop_header_branch
      %21 = sbr.rel (%p19) target = $region8
    $region5: #{_mlp_forward_impl.1} parent=1 // loop_body
      %s23 = ssub.s32 %s18, 1
      %s24 = ssub.s32 %s18, 2
      %s31 = sadd.s32 1, %s26
      %p32 = scmp.ge.s32.totalorder %s31, 1
      %s33 = scalar_select %p32, 0, %s31
      %s34 = sadd.s32 1, %s25
      %s35 = scalar_select %p32, %s34, %s25
      %p36 = scmp.ge.s32.totalorder %s35, 2
      %s37 = scalar_select %p36, 0, %s35
      %s38 = ssub.s32 %s25, %s37
      %p39 = scmp.eq.s32.totalorder %s38, 0
      %s41 = sadd.s32 %s40, 1
      %s42 = scalar_select %p39, %s40, %s41
      %p45 = pneg %p39
      %p46 = scmp.eq.s32.totalorder %s18, 1
      %p47 = por %p45, %p46
      %p48 = scmp.ne.s32.totalorder %s40, %s43
      %p49 = scmp.eq.s32.totalorder %s18, 0
      %p50 = por %p48, %p49
      %p51 = scmp.ne.s32.totalorder %s40, %s43
      %p52 = scmp.eq.s32.totalorder %s23, 1
      %p53 = por %p51, %p52
      %p54 = scmp.ne.s32.totalorder %s43, %s44
      %p55 = scmp.eq.s32.totalorder %s23, 0
      %p56 = por %p54, %p55
      %p57 = scmp.ne.s32.totalorder %s43, %s44
      %p58 = scmp.eq.s32.totalorder %s24, 1
      %p59 = por %p57, %p58
      %p61 = scmp.ne.s32.totalorder %s44, %s60
      %p62 = scmp.eq.s32.totalorder %s24, 0
      %p63 = por %p61, %p62
      %s64 = ssub.s32 %s26, %s33
      %p65 = scmp.eq.s32.totalorder %s64, 0
      %s67 = sadd.s32 %s66, 1
      %s68 = scalar_select %p65, %s66, %s67
      %p71 = pneg %p65
      %p72 = scmp.eq.s32.totalorder %s18, 1
      %p73 = por %p71, %p72
      %p74 = scmp.ne.s32.totalorder %s66, %s69
      %p75 = scmp.eq.s32.totalorder %s18, 0
      %p76 = por %p74, %p75
      %p77 = scmp.ne.s32.totalorder %s66, %s69
      %p78 = scmp.eq.s32.totalorder %s23, 1
      %p79 = por %p77, %p78
      %p80 = scmp.ne.s32.totalorder %s69, %s70
      %p81 = scmp.eq.s32.totalorder %s23, 0
      %p82 = por %p80, %p81
      %p83 = scmp.ne.s32.totalorder %s69, %s70
      %p84 = scmp.eq.s32.totalorder %s24, 1
      %p85 = por %p83, %p84
      %p87 = scmp.ne.s32.totalorder %s70, %s86
      %p88 = scmp.eq.s32.totalorder %s24, 0
      %p89 = por %p87, %p88
      %s90 = ssub.s32 %s26, %s33
      %p91 = scmp.eq.s32.totalorder %s90, 0
      %s93 = sadd.s32 %s92, 1
      %s94 = scalar_select %p91, %s92, %s93
      %p97 = pneg %p91
      %p98 = scmp.eq.s32.totalorder %s18, 1
      %p99 = por %p97, %p98
      %p100 = scmp.ne.s32.totalorder %s92, %s95
      %p101 = scmp.eq.s32.totalorder %s18, 0
      %p102 = por %p100, %p101
      %p103 = scmp.ne.s32.totalorder %s92, %s95
      %p104 = scmp.eq.s32.totalorder %s23, 1
      %p105 = por %p103, %p104
      %p106 = scmp.ne.s32.totalorder %s95, %s96
      %p107 = scmp.eq.s32.totalorder %s23, 0
      %p108 = por %p106, %p107
      %p109 = scmp.ne.s32.totalorder %s95, %s96
      %p110 = scmp.eq.s32.totalorder %s24, 1
      %p111 = por %p109, %p110
      %p113 = scmp.ne.s32.totalorder %s96, %s112
      %p114 = scmp.eq.s32.totalorder %s24, 0
      %p115 = por %p113, %p114
      %s116 = ssub.s32 %s26, %s33
      %p117 = scmp.eq.s32.totalorder %s116, 0
      %s119 = sadd.s32 %s118, 1
      %s120 = scalar_select %p117, %s118, %s119
      %p123 = pneg %p117
      %p124 = scmp.eq.s32.totalorder %s18, 1
      %p125 = por %p123, %p124
      %p126 = scmp.ne.s32.totalorder %s118, %s121
      %p127 = scmp.eq.s32.totalorder %s18, 0
      %p128 = por %p126, %p127
      %p129 = scmp.ne.s32.totalorder %s118, %s121
      %p130 = scmp.eq.s32.totalorder %s23, 1
      %p131 = por %p129, %p130
      %p132 = scmp.ne.s32.totalorder %s121, %s122
      %p133 = scmp.eq.s32.totalorder %s23, 0
      %p134 = por %p132, %p133
      %p135 = scmp.ne.s32.totalorder %s121, %s122
      %p136 = scmp.eq.s32.totalorder %s24, 1
      %p137 = por %p135, %p136
      %p139 = scmp.ne.s32.totalorder %s122, %s138
      %p140 = scmp.eq.s32.totalorder %s24, 0
      %p141 = por %p139, %p140
      %s143 = sadd.s32 %s142, 1
      %p146 = scmp.eq.s32.totalorder %s18, 1
      %p147 = scmp.ne.s32.totalorder %s142, %s144
      %p148 = scmp.eq.s32.totalorder %s18, 0
      %p149 = por %p147, %p148
      %p150 = scmp.ne.s32.totalorder %s142, %s144
      %p151 = scmp.eq.s32.totalorder %s23, 1
      %p152 = por %p150, %p151
      %p153 = scmp.ne.s32.totalorder %s144, %s145
      %p154 = scmp.eq.s32.totalorder %s23, 0
      %p155 = por %p153, %p154
      %p156 = scmp.ne.s32.totalorder %s144, %s145
      %p157 = scmp.eq.s32.totalorder %s24, 1
      %p158 = por %p156, %p157
      %p160 = scmp.ne.s32.totalorder %s145, %s159
      %p161 = scmp.eq.s32.totalorder %s24, 0
      %p162 = por %p160, %p161
      %s163 = ssub.s32 %s25, %s37
      %p164 = scmp.eq.s32.totalorder %s163, 0
      %s166 = sadd.s32 %s165, 1
      %s167 = scalar_select %p164, %s165, %s166
      %p170 = pneg %p164
      %p171 = scmp.eq.s32.totalorder %s18, 1
      %p172 = por %p170, %p171
      %p173 = scmp.ne.s32.totalorder %s165, %s168
      %p174 = scmp.eq.s32.totalorder %s18, 0
      %p175 = por %p173, %p174
      %p176 = scmp.ne.s32.totalorder %s165, %s168
      %p177 = scmp.eq.s32.totalorder %s23, 1
      %p178 = por %p176, %p177
      %p179 = scmp.ne.s32.totalorder %s168, %s169
      %p180 = scmp.eq.s32.totalorder %s23, 0
      %p181 = por %p179, %p180
      %p182 = scmp.ne.s32.totalorder %s168, %s169
      %p183 = scmp.eq.s32.totalorder %s24, 1
      %p184 = por %p182, %p183
      %p186 = scmp.ne.s32.totalorder %s169, %s185
      %p187 = scmp.eq.s32.totalorder %s24, 0
      %p188 = por %p186, %p187
      %p189 = scmp.le.s32.totalorder 1, %s18
      %p190 = scmp.lt.s32.totalorder %s18, 3
      %p191 = pnand %p189, %p190
      %p192 = pneg %p191
      // Predicated region
      $region9: #{_mlp_forward_impl.1} parent=5 // pred_check
        _
      $region10: #{_mlp_forward_impl.1} parent=5 // pred_check_branch
        %194 = sbr.rel (%p191) target = $region12
      $region11: #{_mlp_forward_impl.1} parent=5 // pred_region
        %s195 = ssub.s32 %s18, 1
        // Predicated region
        $region13: #{_mlp_forward_impl.1} parent=11 // pred_check
          %p196 = pneg %p82
        $region14: #{_mlp_forward_impl.1} parent=11 // pred_check_branch
          %198 = sbr.rel (%p196) target = $region16
        $region15: #{_mlp_forward_impl.1} parent=11 // pred_region
          %s199 = smul.u32 2, %s28
          %201 = vsyncadd [#allocation7], 0
          %s202 = smul.addr %s199, 4
          %s203 = scalar_lea.hbm %s1, %s202
          %s204 = sshll.u32 %s203, 4
          %s205 = int_to_ptr.hbm [resolvable:$true] %s204
          %s206 = sshll.u32 [#allocation6], 4
          %s207 = int_to_ptr.vmem [resolvable:$true] %s206
          %212 = dma.hbm_to_vmem [thread:$0]  %s205, 2048, %s207, [#allocation7], 128, 128, 8
        $region16: #{_mlp_forward_impl.1} parent=11 // pred_fallthru
          _
        // Predicated region
        $region17: #{_mlp_forward_impl.1} parent=11 // pred_check
          %p213 = pneg %p108
        $region18: #{_mlp_forward_impl.1} parent=11 // pred_check_branch
          %215 = sbr.rel (%p213) target = $region20
        $region19: #{_mlp_forward_impl.1} parent=11 // pred_region
          %s216 = smul.u32 2, %s28
          %p217 = scmp.lt.s32.totalorder %s216, 1
          %s218 = scalar_select %p217, %s216, 1
          %s219 = scalar_lea.vmem %s2, %s218
          %s220 = smul.u32 2, %s28
        $region20: #{_mlp_forward_impl.1} parent=11 // pred_fallthru
          _
        // Predicated region
        $region21: #{_mlp_forward_impl.1} parent=11 // pred_check
          %p221 = pneg %p134
        $region22: #{_mlp_forward_impl.1} parent=11 // pred_check_branch
          %223 = sbr.rel (%p221) target = $region24
        $region23: #{_mlp_forward_impl.1} parent=11 // pred_region
          %s224 = smul.u32 32, %s28
          %226 = vsyncadd [#allocation7], 0
          %s227 = smul.addr %s224, 4
          %s228 = scalar_lea.hbm %s3, %s227
          %s229 = sshll.u32 %s228, 4
          %s230 = int_to_ptr.hbm [resolvable:$true] %s229
          %s231 = sshll.u32 [#allocation8], 4
          %s232 = int_to_ptr.vmem [resolvable:$true] %s231
          %237 = dma.hbm_to_vmem [thread:$0]  %s230, 2048, %s232, [#allocation7], 64, 64, 4
        $region24: #{_mlp_forward_impl.1} parent=11 // pred_fallthru
          _
        // Predicated region
        $region25: #{_mlp_forward_impl.1} parent=11 // pred_check
          %p238 = pneg %p155
        $region26: #{_mlp_forward_impl.1} parent=11 // pred_check_branch
          %240 = sbr.rel (%p238) target = $region28
        $region27: #{_mlp_forward_impl.1} parent=11 // pred_region
          _
        $region28: #{_mlp_forward_impl.1} parent=11 // pred_fallthru
          _
      $region12: #{_mlp_forward_impl.1} parent=5 // pred_fallthru
        _
      %p241 = scmp.lt.s32.totalorder %s18, 2
      // Predicated region
      $region29: #{_mlp_forward_impl.1} parent=5 // pred_check
        %p242 = pneg %p241
      $region30: #{_mlp_forward_impl.1} parent=5 // pred_check_branch
        %244 = sbr.rel (%p242) target = $region32
      $region31: #{_mlp_forward_impl.1} parent=5 // pred_region
        // Predicated region
        $region33: #{_mlp_forward_impl.1} parent=31 // pred_check
          %p245 = pneg %p50
        $region34: #{_mlp_forward_impl.1} parent=31 // pred_check_branch
          %247 = sbr.rel (%p245) target = $region36
        $region35: #{_mlp_forward_impl.1} parent=31 // pred_region
          %s248 = sand.u32 %s40, 1
          %s249 = scalar_lea.sflag [#allocation4], %s248
          %s250 = sand.u32 %s40, 1
          %s251 = smul.addr %s250, 256
          %s252 = scalar_lea.vmem [#allocation3], %s251
          %s253 = smul.u32 32, %s25
          %255 = vsyncadd %s249, 0
          %s256 = smul.addr %s253, 8
          %s257 = scalar_lea.hbm %s0, %s256
          %s258 = sshll.u32 %s257, 4
          %s259 = int_to_ptr.hbm [resolvable:$true] %s258
          %s260 = sshll.u32 %s252, 4
          %s261 = int_to_ptr.vmem [resolvable:$true] %s260
          %266 = dma.hbm_to_vmem [thread:$0]  %s259, 4096, %s261, %s249, 128, 128, 8
        $region36: #{_mlp_forward_impl.1} parent=31 // pred_fallthru
          _
      $region32: #{_mlp_forward_impl.1} parent=5 // pred_fallthru
        _
      %p267 = scmp.le.s32.totalorder 1, %s18
      %p268 = scmp.lt.s32.totalorder %s18, 3
      %p269 = pnand %p267, %p268
      %p270 = pneg %p269
      // Predicated region
      $region37: #{_mlp_forward_impl.1} parent=5 // pred_check
        _
      $region38: #{_mlp_forward_impl.1} parent=5 // pred_check_branch
        %272 = sbr.rel (%p269) target = $region40
      $region39: #{_mlp_forward_impl.1} parent=5 // pred_region
        %s273 = ssub.s32 %s18, 1
        %s274 = sand.u32 %s43, 1
        %s275 = scalar_lea.sflag [#allocation4], %s274
        %s276 = sand.u32 %s43, 1
        %s277 = smul.addr %s276, 256
        %s278 = scalar_lea.vmem [#allocation3], %s277
        // Predicated region
        $region41: #{_mlp_forward_impl.1} parent=39 // pred_check
          %p279 = pneg %p56
        $region42: #{_mlp_forward_impl.1} parent=39 // pred_check_branch
          %281 = sbr.rel (%p279) target = $region44
        $region43: #{_mlp_forward_impl.1} parent=39 // pred_region
          %283 = dma.done %s275, 4096
        $region44: #{_mlp_forward_impl.1} parent=39 // pred_fallthru
          _
        // Predicated region
        $region45: #{_mlp_forward_impl.1} parent=39 // pred_check
          %p284 = pneg %p82
        $region46: #{_mlp_forward_impl.1} parent=39 // pred_check_branch
          %286 = sbr.rel (%p284) target = $region48
        $region47: #{_mlp_forward_impl.1} parent=39 // pred_region
          %288 = dma.done [#allocation7], 2048
        $region48: #{_mlp_forward_impl.1} parent=39 // pred_fallthru
          _
        // Predicated region
        $region49: #{_mlp_forward_impl.1} parent=39 // pred_check
          %p289 = pneg %p134
        $region50: #{_mlp_forward_impl.1} parent=39 // pred_check_branch
          %291 = sbr.rel (%p289) target = $region52
        $region51: #{_mlp_forward_impl.1} parent=39 // pred_region
          %293 = dma.done [#allocation7], 2048
        $region52: #{_mlp_forward_impl.1} parent=39 // pred_fallthru
          _
        %s294 = sand.u32 %s43, 1
        %s295 = scalar_lea.sflag [#allocation4], %s294
        %s296 = sand.u32 %s43, 1
        %s297 = smul.addr %s296, 256
        %s298 = scalar_lea.vmem [#allocation3], %s297
        %p299 = pneg %p56
        %p300 = pneg %p53
        %p301 = pneg %p82
        %p302 = pneg %p79
        %s303 = smul.u32 2, %s28
        %p304 = scmp.lt.s32.totalorder %s303, 1
        %s305 = scalar_select %p304, %s303, 1
        %s306 = scalar_lea.vmem %s2, %s305
        %p307 = pneg %p108
        %p308 = pneg %p105
        %p309 = pneg %p134
        %p310 = pneg %p131
        %p311 = pneg %p155
        %p312 = pneg %p152
        %p313 = pneg %p181
        %p314 = pneg %p178
        %s315 = sand.u32 %s168, 1
        %s316 = scalar_lea.sflag [#allocation5], %s315
        %s317 = sand.u32 %s168, 1
        %s318 = smul.addr %s317, 256
        %s319 = scalar_lea.vmem [#allocation9], %s318
        %s320 = smul.u32 32, %s27
        %s321 = smul.u32 2, %s28
        %s322 = smul.u32 2, %s28
        %p323 = scmp.lt.s32.totalorder %s322, 1
        %s324 = scalar_select %p323, %s322, 1
        %s325 = scalar_lea.vmem %s2, %s324
        %s326 = smul.u32 2, %s28
        %s327 = smul.u32 32, %s28
        %s328 = smul.u32 32, %s27
        %p329 = scmp.eq.s32.totalorder %s28, 0
        // Predicated region
        $region53: #{_mlp_forward_impl.1} parent=39 // pred_check
          %p330 = pneg %p329
        $region54: #{_mlp_forward_impl.1} parent=39 // pred_check_branch
          %332 = sbr.rel (%p330) target = $region56
        $region55: #{_mlp_forward_impl.1} parent=39 // pred_region
          %333 = vst [vmem:[#allocation2] sm:$0xff] 0.0
          %334 = vst [vmem:[#allocation2 + $0x8] sm:$0xff] 0.0
          %335 = vst [vmem:[#allocation2 + $0x10] sm:$0xff] 0.0
          %336 = vst [vmem:[#allocation2 + $0x18] sm:$0xff] 0.0
          %337 = vst [vmem:[#allocation2 + $0x20] sm:$0xff] 0.0
          %338 = vst [vmem:[#allocation2 + $0x28] sm:$0xff] 0.0
          %339 = vst [vmem:[#allocation2 + $0x30] sm:$0xff] 0.0
          %340 = vst [vmem:[#allocation2 + $0x38] sm:$0xff] 0.0
          %341 = vst [vmem:[#allocation2 + $0x40] sm:$0xff] 0.0
          %342 = vst [vmem:[#allocation2 + $0x48] sm:$0xff] 0.0
          %343 = vst [vmem:[#allocation2 + $0x50] sm:$0xff] 0.0
          %344 = vst [vmem:[#allocation2 + $0x58] sm:$0xff] 0.0
          %345 = vst [vmem:[#allocation2 + $0x60] sm:$0xff] 0.0
          %346 = vst [vmem:[#allocation2 + $0x68] sm:$0xff] 0.0
          %347 = vst [vmem:[#allocation2 + $0x70] sm:$0xff] 0.0
          %348 = vst [vmem:[#allocation2 + $0x78] sm:$0xff] 0.0
          %349 = vst [vmem:[#allocation2 + $0x80] sm:$0xff] 0.0
          %350 = vst [vmem:[#allocation2 + $0x88] sm:$0xff] 0.0
          %351 = vst [vmem:[#allocation2 + $0x90] sm:$0xff] 0.0
          %352 = vst [vmem:[#allocation2 + $0x98] sm:$0xff] 0.0
          %353 = vst [vmem:[#allocation2 + $0xa0] sm:$0xff] 0.0
          %354 = vst [vmem:[#allocation2 + $0xa8] sm:$0xff] 0.0
          %355 = vst [vmem:[#allocation2 + $0xb0] sm:$0xff] 0.0
          %356 = vst [vmem:[#allocation2 + $0xb8] sm:$0xff] 0.0
          %357 = vst [vmem:[#allocation2 + $0xc0] sm:$0xff] 0.0
          %358 = vst [vmem:[#allocation2 + $0xc8] sm:$0xff] 0.0
          %359 = vst [vmem:[#allocation2 + $0xd0] sm:$0xff] 0.0
          %360 = vst [vmem:[#allocation2 + $0xd8] sm:$0xff] 0.0
          %361 = vst [vmem:[#allocation2 + $0xe0] sm:$0xff] 0.0
          %362 = vst [vmem:[#allocation2 + $0xe8] sm:$0xff] 0.0
          %363 = vst [vmem:[#allocation2 + $0xf0] sm:$0xff] 0.0
          %364 = vst [vmem:[#allocation2 + $0xf8] sm:$0xff] 0.0
        $region56: #{_mlp_forward_impl.1} parent=39 // pred_fallthru
          _
        %v365 = vld [vmem:[%s278] sm:$0xff]
        %v366 = vld [vmem:[%s278 + $0x8] sm:$0xff]
        %v367 = vld [vmem:[%s278 + $0x10] sm:$0xff]
        %v368 = vld [vmem:[%s278 + $0x18] sm:$0xff]
        %v369 = vld [vmem:[%s278 + $0x20] sm:$0xff]
        %v370 = vld [vmem:[%s278 + $0x28] sm:$0xff]
        %v371 = vld [vmem:[%s278 + $0x30] sm:$0xff]
        %v372 = vld [vmem:[%s278 + $0x38] sm:$0xff]
        %v373 = vld [vmem:[%s278 + $0x40] sm:$0xff]
        %v374 = vld [vmem:[%s278 + $0x48] sm:$0xff]
        %v375 = vld [vmem:[%s278 + $0x50] sm:$0xff]
        %v376 = vld [vmem:[%s278 + $0x58] sm:$0xff]
        %v377 = vld [vmem:[%s278 + $0x60] sm:$0xff]
        %v378 = vld [vmem:[%s278 + $0x68] sm:$0xff]
        %v379 = vld [vmem:[%s278 + $0x70] sm:$0xff]
        %v380 = vld [vmem:[%s278 + $0x78] sm:$0xff]
        %v381 = vld [vmem:[%s278 + $0x80] sm:$0xff]
        %v382 = vld [vmem:[%s278 + $0x88] sm:$0xff]
        %v383 = vld [vmem:[%s278 + $0x90] sm:$0xff]
        %v384 = vld [vmem:[%s278 + $0x98] sm:$0xff]
        %v385 = vld [vmem:[%s278 + $0xa0] sm:$0xff]
        %v386 = vld [vmem:[%s278 + $0xa8] sm:$0xff]
        %v387 = vld [vmem:[%s278 + $0xb0] sm:$0xff]
        %v388 = vld [vmem:[%s278 + $0xb8] sm:$0xff]
        %v389 = vld [vmem:[%s278 + $0xc0] sm:$0xff]
        %v390 = vld [vmem:[%s278 + $0xc8] sm:$0xff]
        %v391 = vld [vmem:[%s278 + $0xd0] sm:$0xff]
        %v392 = vld [vmem:[%s278 + $0xd8] sm:$0xff]
        %v393 = vld [vmem:[%s278 + $0xe0] sm:$0xff]
        %v394 = vld [vmem:[%s278 + $0xe8] sm:$0xff]
        %v395 = vld [vmem:[%s278 + $0xf0] sm:$0xff]
        %v396 = vld [vmem:[%s278 + $0xf8] sm:$0xff]
        %v397 = vpack.c.bf16 %v366, %v365
        %v398 = vpack.c.bf16 %v368, %v367
        %v399 = vpack.c.bf16 %v370, %v369
        %v400 = vpack.c.bf16 %v372, %v371
        %v401 = vpack.c.bf16 %v374, %v373
        %v402 = vpack.c.bf16 %v376, %v375
        %v403 = vpack.c.bf16 %v378, %v377
        %v404 = vpack.c.bf16 %v380, %v379
        %v405 = vpack.c.bf16 %v382, %v381
        %v406 = vpack.c.bf16 %v384, %v383
        %v407 = vpack.c.bf16 %v386, %v385
        %v408 = vpack.c.bf16 %v388, %v387
        %v409 = vpack.c.bf16 %v390, %v389
        %v410 = vpack.c.bf16 %v392, %v391
        %v411 = vpack.c.bf16 %v394, %v393
        %v412 = vpack.c.bf16 %v396, %v395
        %v413 = vld [vmem:[#allocation6] sm:$0xff]
        %v414 = vld [vmem:[#allocation6 + $0x8] sm:$0xff]
        %v415 = vld [vmem:[#allocation6 + $0x10] sm:$0xff]
        %v416 = vld [vmem:[#allocation6 + $0x18] sm:$0xff]
        %v417 = vld [vmem:[#allocation6 + $0x20] sm:$0xff]
        %v418 = vld [vmem:[#allocation6 + $0x28] sm:$0xff]
        %v419 = vld [vmem:[#allocation6 + $0x30] sm:$0xff]
        %v420 = vld [vmem:[#allocation6 + $0x38] sm:$0xff]
        %v421 = vld [vmem:[#allocation6 + $0x40] sm:$0xff]
        %v422 = vld [vmem:[#allocation6 + $0x48] sm:$0xff]
        %v423 = vld [vmem:[#allocation6 + $0x50] sm:$0xff]
        %v424 = vld [vmem:[#allocation6 + $0x58] sm:$0xff]
        %v425 = vld [vmem:[#allocation6 + $0x60] sm:$0xff]
        %v426 = vld [vmem:[#allocation6 + $0x68] sm:$0xff]
        %v427 = vld [vmem:[#allocation6 + $0x70] sm:$0xff]
        %v428 = vld [vmem:[#allocation6 + $0x78] sm:$0xff]
        %v429 = vld [vmem:[%s325] sm:$0x3]
        %v431 = vperm.slane %v429, 0
        %v432 = vperm.slane %v429, 1
        %v451 = vunpack.c.l.b16 %v413
        %v452 = vunpack.c.h.b16 %v413
        %v453 = vunpack.c.l.b16 %v414
        %v454 = vunpack.c.h.b16 %v414
        %v455 = vunpack.c.l.b16 %v415
        %v456 = vunpack.c.h.b16 %v415
        %v457 = vunpack.c.l.b16 %v416
        %v458 = vunpack.c.h.b16 %v416
        %v459 = vunpack.c.l.b16 %v417
        %v460 = vunpack.c.h.b16 %v417
        %v461 = vunpack.c.l.b16 %v418
        %v462 = vunpack.c.h.b16 %v418
        %v463 = vunpack.c.l.b16 %v419
        %v464 = vunpack.c.h.b16 %v419
        %v465 = vunpack.c.l.b16 %v420
        %v466 = vunpack.c.h.b16 %v420
        %v467 = vunpack.c.l.b16 %v421
        %v468 = vunpack.c.h.b16 %v421
        %v469 = vunpack.c.l.b16 %v422
        %v470 = vunpack.c.h.b16 %v422
        %v471 = vunpack.c.l.b16 %v423
        %v472 = vunpack.c.h.b16 %v423
        %v473 = vunpack.c.l.b16 %v424
        %v474 = vunpack.c.h.b16 %v424
        %v475 = vunpack.c.l.b16 %v425
        %v476 = vunpack.c.h.b16 %v425
        %v477 = vunpack.c.l.b16 %v426
        %v478 = vunpack.c.h.b16 %v426
        %v479 = vunpack.c.l.b16 %v427
        %v480 = vunpack.c.h.b16 %v427
        %v481 = vunpack.c.l.b16 %v428
        %v482 = vunpack.c.h.b16 %v428
        %v483 = vpack.c.b16 %v453, %v451
        %v484 = vpack.c.b16 %v454, %v452
        %v485 = vpack.c.b16 %v457, %v455
        %v486 = vpack.c.b16 %v458, %v456
        %v487 = vpack.c.b16 %v461, %v459
        %v488 = vpack.c.b16 %v462, %v460
        %v489 = vpack.c.b16 %v465, %v463
        %v490 = vpack.c.b16 %v466, %v464
        %v491 = vpack.c.b16 %v469, %v467
        %v492 = vpack.c.b16 %v470, %v468
        %v493 = vpack.c.b16 %v473, %v471
        %v494 = vpack.c.b16 %v474, %v472
        %v495 = vpack.c.b16 %v477, %v475
        %v496 = vpack.c.b16 %v478, %v476
        %v497 = vpack.c.b16 %v481, %v479
        %v498 = vpack.c.b16 %v482, %v480
        %515 = vmatpush.bf16.msra.mxu0 %v497
        %516 = vmatpush.bf16.msra.mxu0 %v495
        %517 = vmatpush.bf16.msra.mxu0 %v493
        %518 = vmatpush.bf16.msra.mxu0 %v491
        %519 = vmatpush.bf16.msra.mxu0 %v489
        %520 = vmatpush.bf16.msra.mxu0 %v487
        %521 = vmatpush.bf16.msra.mxu0 %v485
        %522 = vmatpush.bf16.msra.mxu0 %v483
        %523 = vmatmul.bf16.gmra.mxu0 %v397
        %v524 = vpop.f32.mrf.mxu0
        %v525 = vadd.f32 %v431, %v524
        %v526 = vpop.f32.mrf.mxu0
        %v527 = vadd.f32 %v431, %v526
        %528 = vmatmul.bf16.gmra.mxu0 %v398
        %v529 = vpop.f32.mrf.mxu0
        %v530 = vadd.f32 %v431, %v529
        %v531 = vpop.f32.mrf.mxu0
        %v532 = vadd.f32 %v431, %v531
        %533 = vmatmul.bf16.gmra.mxu0 %v399
        %v534 = vpop.f32.mrf.mxu0
        %v535 = vadd.f32 %v431, %v534
        %v536 = vpop.f32.mrf.mxu0
        %v537 = vadd.f32 %v431, %v536
        %538 = vmatmul.bf16.gmra.mxu0 %v400
        %v539 = vpop.f32.mrf.mxu0
        %v540 = vadd.f32 %v431, %v539
        %v541 = vpop.f32.mrf.mxu0
        %v542 = vadd.f32 %v431, %v541
        %543 = vmatmul.bf16.gmra.mxu0 %v401
        %v544 = vpop.f32.mrf.mxu0
        %v545 = vadd.f32 %v431, %v544
        %v546 = vpop.f32.mrf.mxu0
        %v547 = vadd.f32 %v431, %v546
        %548 = vmatmul.bf16.gmra.mxu0 %v402
        %v549 = vpop.f32.mrf.mxu0
        %v550 = vadd.f32 %v431, %v549
        %v551 = vpop.f32.mrf.mxu0
        %v552 = vadd.f32 %v431, %v551
        %553 = vmatmul.bf16.gmra.mxu0 %v403
        %v554 = vpop.f32.mrf.mxu0
        %v555 = vadd.f32 %v431, %v554
        %v556 = vpop.f32.mrf.mxu0
        %v557 = vadd.f32 %v431, %v556
        %558 = vmatmul.bf16.gmra.mxu0 %v404
        %v559 = vpop.f32.mrf.mxu0
        %v560 = vadd.f32 %v431, %v559
        %v561 = vpop.f32.mrf.mxu0
        %v562 = vadd.f32 %v431, %v561
        %563 = vmatmul.bf16.gmra.mxu0 %v405
        %v564 = vpop.f32.mrf.mxu0
        %v565 = vadd.f32 %v431, %v564
        %v566 = vpop.f32.mrf.mxu0
        %v567 = vadd.f32 %v431, %v566
        %568 = vmatmul.bf16.gmra.mxu0 %v406
        %v569 = vpop.f32.mrf.mxu0
        %v570 = vadd.f32 %v431, %v569
        %v571 = vpop.f32.mrf.mxu0
        %v572 = vadd.f32 %v431, %v571
        %573 = vmatmul.bf16.gmra.mxu0 %v407
        %v574 = vpop.f32.mrf.mxu0
        %v575 = vadd.f32 %v431, %v574
        %v576 = vpop.f32.mrf.mxu0
        %v577 = vadd.f32 %v431, %v576
        %578 = vmatmul.bf16.gmra.mxu0 %v408
        %v579 = vpop.f32.mrf.mxu0
        %v580 = vadd.f32 %v431, %v579
        %v581 = vpop.f32.mrf.mxu0
        %v582 = vadd.f32 %v431, %v581
        %583 = vmatmul.bf16.gmra.mxu0 %v409
        %v584 = vpop.f32.mrf.mxu0
        %v585 = vadd.f32 %v431, %v584
        %v586 = vpop.f32.mrf.mxu0
        %v587 = vadd.f32 %v431, %v586
        %588 = vmatmul.bf16.gmra.mxu0 %v410
        %v589 = vpop.f32.mrf.mxu0
        %v590 = vadd.f32 %v431, %v589
        %v591 = vpop.f32.mrf.mxu0
        %v592 = vadd.f32 %v431, %v591
        %593 = vmatmul.bf16.gmra.mxu0 %v411
        %v594 = vpop.f32.mrf.mxu0
        %v595 = vadd.f32 %v431, %v594
        %v596 = vpop.f32.mrf.mxu0
        %v597 = vadd.f32 %v431, %v596
        %598 = vmatmul.bf16.gmra.mxu0 %v412
        %v599 = vpop.f32.mrf.mxu0
        %v600 = vadd.f32 %v431, %v599
        %v601 = vpop.f32.mrf.mxu0
        %v602 = vadd.f32 %v431, %v601
        %603 = vdwg.mxu0
        %604 = vmatpush.bf16.msra.mxu0 %v498
        %605 = vmatpush.bf16.msra.mxu0 %v496
        %606 = vmatpush.bf16.msra.mxu0 %v494
        %607 = vmatpush.bf16.msra.mxu0 %v492
        %608 = vmatpush.bf16.msra.mxu0 %v490
        %609 = vmatpush.bf16.msra.mxu0 %v488
        %610 = vmatpush.bf16.msra.mxu0 %v486
        %611 = vmatpush.bf16.msra.mxu0 %v484
        %612 = vmatmul.bf16.gmra.mxu0 %v397
        %v613 = vpop.f32.mrf.mxu0
        %v614 = vadd.f32 %v432, %v613
        %v615 = vpop.f32.mrf.mxu0
        %v616 = vadd.f32 %v432, %v615
        %617 = vmatmul.bf16.gmra.mxu0 %v398
        %v618 = vpop.f32.mrf.mxu0
        %v619 = vadd.f32 %v432, %v618
        %v620 = vpop.f32.mrf.mxu0
        %v621 = vadd.f32 %v432, %v620
        %622 = vmatmul.bf16.gmra.mxu0 %v399
        %v623 = vpop.f32.mrf.mxu0
        %v624 = vadd.f32 %v432, %v623
        %v625 = vpop.f32.mrf.mxu0
        %v626 = vadd.f32 %v432, %v625
        %627 = vmatmul.bf16.gmra.mxu0 %v400
        %v628 = vpop.f32.mrf.mxu0
        %v629 = vadd.f32 %v432, %v628
        %v630 = vpop.f32.mrf.mxu0
        %v631 = vadd.f32 %v432, %v630
        %632 = vmatmul.bf16.gmra.mxu0 %v401
        %v633 = vpop.f32.mrf.mxu0
        %v634 = vadd.f32 %v432, %v633
        %v635 = vpop.f32.mrf.mxu0
        %v636 = vadd.f32 %v432, %v635
        %637 = vmatmul.bf16.gmra.mxu0 %v402
        %v638 = vpop.f32.mrf.mxu0
        %v639 = vadd.f32 %v432, %v638
        %v640 = vpop.f32.mrf.mxu0
        %v641 = vadd.f32 %v432, %v640
        %642 = vmatmul.bf16.gmra.mxu0 %v403
        %v643 = vpop.f32.mrf.mxu0
        %v644 = vadd.f32 %v432, %v643
        %v645 = vpop.f32.mrf.mxu0
        %v646 = vadd.f32 %v432, %v645
        %647 = vmatmul.bf16.gmra.mxu0 %v404
        %v648 = vpop.f32.mrf.mxu0
        %v649 = vadd.f32 %v432, %v648
        %v650 = vpop.f32.mrf.mxu0
        %v651 = vadd.f32 %v432, %v650
        %652 = vmatmul.bf16.gmra.mxu0 %v405
        %v653 = vpop.f32.mrf.mxu0
        %v654 = vadd.f32 %v432, %v653
        %v655 = vpop.f32.mrf.mxu0
        %v656 = vadd.f32 %v432, %v655
        %657 = vmatmul.bf16.gmra.mxu0 %v406
        %v658 = vpop.f32.mrf.mxu0
        %v659 = vadd.f32 %v432, %v658
        %v660 = vpop.f32.mrf.mxu0
        %v661 = vadd.f32 %v432, %v660
        %662 = vmatmul.bf16.gmra.mxu0 %v407
        %v663 = vpop.f32.mrf.mxu0
        %v664 = vadd.f32 %v432, %v663
        %v665 = vpop.f32.mrf.mxu0
        %v666 = vadd.f32 %v432, %v665
        %667 = vmatmul.bf16.gmra.mxu0 %v408
        %v668 = vpop.f32.mrf.mxu0
        %v669 = vadd.f32 %v432, %v668
        %v670 = vpop.f32.mrf.mxu0
        %v671 = vadd.f32 %v432, %v670
        %672 = vmatmul.bf16.gmra.mxu0 %v409
        %v673 = vpop.f32.mrf.mxu0
        %v674 = vadd.f32 %v432, %v673
        %v675 = vpop.f32.mrf.mxu0
        %v676 = vadd.f32 %v432, %v675
        %677 = vmatmul.bf16.gmra.mxu0 %v410
        %v678 = vpop.f32.mrf.mxu0
        %v679 = vadd.f32 %v432, %v678
        %v680 = vpop.f32.mrf.mxu0
        %v681 = vadd.f32 %v432, %v680
        %682 = vmatmul.bf16.gmra.mxu0 %v411
        %v683 = vpop.f32.mrf.mxu0
        %v684 = vadd.f32 %v432, %v683
        %v685 = vpop.f32.mrf.mxu0
        %v686 = vadd.f32 %v432, %v685
        %687 = vmatmul.bf16.gmra.mxu0 %v412
        %v688 = vpop.f32.mrf.mxu0
        %v689 = vadd.f32 %v432, %v688
        %v690 = vpop.f32.mrf.mxu0
        %v691 = vadd.f32 %v432, %v690
        %692 = vdwg.mxu0
        %v693 = vmax.f32 %v525, 0.0
        %v694 = vmax.f32 %v614, 0.0
        %v695 = vmax.f32 %v527, 0.0
        %v696 = vmax.f32 %v616, 0.0
        %v697 = vmax.f32 %v530, 0.0
        %v698 = vmax.f32 %v619, 0.0
        %v699 = vmax.f32 %v532, 0.0
        %v700 = vmax.f32 %v621, 0.0
        %v701 = vmax.f32 %v535, 0.0
        %v702 = vmax.f32 %v624, 0.0
        %v703 = vmax.f32 %v537, 0.0
        %v704 = vmax.f32 %v626, 0.0
        %v705 = vmax.f32 %v540, 0.0
        %v706 = vmax.f32 %v629, 0.0
        %v707 = vmax.f32 %v542, 0.0
        %v708 = vmax.f32 %v631, 0.0
        %v709 = vmax.f32 %v545, 0.0
        %v710 = vmax.f32 %v634, 0.0
        %v711 = vmax.f32 %v547, 0.0
        %v712 = vmax.f32 %v636, 0.0
        %v713 = vmax.f32 %v550, 0.0
        %v714 = vmax.f32 %v639, 0.0
        %v715 = vmax.f32 %v552, 0.0
        %v716 = vmax.f32 %v641, 0.0
        %v717 = vmax.f32 %v555, 0.0
        %v718 = vmax.f32 %v644, 0.0
        %v719 = vmax.f32 %v557, 0.0
        %v720 = vmax.f32 %v646, 0.0
        %v721 = vmax.f32 %v560, 0.0
        %v722 = vmax.f32 %v649, 0.0
        %v723 = vmax.f32 %v562, 0.0
        %v724 = vmax.f32 %v651, 0.0
        %v725 = vmax.f32 %v565, 0.0
        %v726 = vmax.f32 %v654, 0.0
        %v727 = vmax.f32 %v567, 0.0
        %v728 = vmax.f32 %v656, 0.0
        %v729 = vmax.f32 %v570, 0.0
        %v730 = vmax.f32 %v659, 0.0
        %v731 = vmax.f32 %v572, 0.0
        %v732 = vmax.f32 %v661, 0.0
        %v733 = vmax.f32 %v575, 0.0
        %v734 = vmax.f32 %v664, 0.0
        %v735 = vmax.f32 %v577, 0.0
        %v736 = vmax.f32 %v666, 0.0
        %v737 = vmax.f32 %v580, 0.0
        %v738 = vmax.f32 %v669, 0.0
        %v739 = vmax.f32 %v582, 0.0
        %v740 = vmax.f32 %v671, 0.0
        %v741 = vmax.f32 %v585, 0.0
        %v742 = vmax.f32 %v674, 0.0
        %v743 = vmax.f32 %v587, 0.0
        %v744 = vmax.f32 %v676, 0.0
        %v745 = vmax.f32 %v590, 0.0
        %v746 = vmax.f32 %v679, 0.0
        %v747 = vmax.f32 %v592, 0.0
        %v748 = vmax.f32 %v681, 0.0
        %v749 = vmax.f32 %v595, 0.0
        %v750 = vmax.f32 %v684, 0.0
        %v751 = vmax.f32 %v597, 0.0
        %v752 = vmax.f32 %v686, 0.0
        %v753 = vmax.f32 %v600, 0.0
        %v754 = vmax.f32 %v689, 0.0
        %v755 = vmax.f32 %v602, 0.0
        %v756 = vmax.f32 %v691, 0.0
        %v757 = vld [vmem:[#allocation2] sm:$0xff]
        %v758 = vld [vmem:[#allocation2 + $0x8] sm:$0xff]
        %v759 = vld [vmem:[#allocation2 + $0x10] sm:$0xff]
        %v760 = vld [vmem:[#allocation2 + $0x18] sm:$0xff]
        %v761 = vld [vmem:[#allocation2 + $0x20] sm:$0xff]
        %v762 = vld [vmem:[#allocation2 + $0x28] sm:$0xff]
        %v763 = vld [vmem:[#allocation2 + $0x30] sm:$0xff]
        %v764 = vld [vmem:[#allocation2 + $0x38] sm:$0xff]
        %v765 = vld [vmem:[#allocation2 + $0x40] sm:$0xff]
        %v766 = vld [vmem:[#allocation2 + $0x48] sm:$0xff]
        %v767 = vld [vmem:[#allocation2 + $0x50] sm:$0xff]
        %v768 = vld [vmem:[#allocation2 + $0x58] sm:$0xff]
        %v769 = vld [vmem:[#allocation2 + $0x60] sm:$0xff]
        %v770 = vld [vmem:[#allocation2 + $0x68] sm:$0xff]
        %v771 = vld [vmem:[#allocation2 + $0x70] sm:$0xff]
        %v772 = vld [vmem:[#allocation2 + $0x78] sm:$0xff]
        %v773 = vld [vmem:[#allocation2 + $0x80] sm:$0xff]
        %v774 = vld [vmem:[#allocation2 + $0x88] sm:$0xff]
        %v775 = vld [vmem:[#allocation2 + $0x90] sm:$0xff]
        %v776 = vld [vmem:[#allocation2 + $0x98] sm:$0xff]
        %v777 = vld [vmem:[#allocation2 + $0xa0] sm:$0xff]
        %v778 = vld [vmem:[#allocation2 + $0xa8] sm:$0xff]
        %v779 = vld [vmem:[#allocation2 + $0xb0] sm:$0xff]
        %v780 = vld [vmem:[#allocation2 + $0xb8] sm:$0xff]
        %v781 = vld [vmem:[#allocation2 + $0xc0] sm:$0xff]
        %v782 = vld [vmem:[#allocation2 + $0xc8] sm:$0xff]
        %v783 = vld [vmem:[#allocation2 + $0xd0] sm:$0xff]
        %v784 = vld [vmem:[#allocation2 + $0xd8] sm:$0xff]
        %v785 = vld [vmem:[#allocation2 + $0xe0] sm:$0xff]
        %v786 = vld [vmem:[#allocation2 + $0xe8] sm:$0xff]
        %v787 = vld [vmem:[#allocation2 + $0xf0] sm:$0xff]
        %v788 = vld [vmem:[#allocation2 + $0xf8] sm:$0xff]
        %v789 = vpack.c.bf16 %v695, %v693
        %v790 = vpack.c.bf16 %v696, %v694
        %v791 = vpack.c.bf16 %v699, %v697
        %v792 = vpack.c.bf16 %v700, %v698
        %v793 = vpack.c.bf16 %v703, %v701
        %v794 = vpack.c.bf16 %v704, %v702
        %v795 = vpack.c.bf16 %v707, %v705
        %v796 = vpack.c.bf16 %v708, %v706
        %v797 = vpack.c.bf16 %v711, %v709
        %v798 = vpack.c.bf16 %v712, %v710
        %v799 = vpack.c.bf16 %v715, %v713
        %v800 = vpack.c.bf16 %v716, %v714
        %v801 = vpack.c.bf16 %v719, %v717
        %v802 = vpack.c.bf16 %v720, %v718
        %v803 = vpack.c.bf16 %v723, %v721
        %v804 = vpack.c.bf16 %v724, %v722
        %v805 = vpack.c.bf16 %v727, %v725
        %v806 = vpack.c.bf16 %v728, %v726
        %v807 = vpack.c.bf16 %v731, %v729
        %v808 = vpack.c.bf16 %v732, %v730
        %v809 = vpack.c.bf16 %v735, %v733
        %v810 = vpack.c.bf16 %v736, %v734
        %v811 = vpack.c.bf16 %v739, %v737
        %v812 = vpack.c.bf16 %v740, %v738
        %v813 = vpack.c.bf16 %v743, %v741
        %v814 = vpack.c.bf16 %v744, %v742
        %v815 = vpack.c.bf16 %v747, %v745
        %v816 = vpack.c.bf16 %v748, %v746
        %v817 = vpack.c.bf16 %v751, %v749
        %v818 = vpack.c.bf16 %v752, %v750
        %v819 = vpack.c.bf16 %v755, %v753
        %v820 = vpack.c.bf16 %v756, %v754
        %v821 = vld [vmem:[#allocation8] sm:$0xf]
        %v822 = vld [vmem:[#allocation8 + $0x4] sm:$0xf]
        %v823 = vld [vmem:[#allocation8 + $0x8] sm:$0xf]
        %v824 = vld [vmem:[#allocation8 + $0xc] sm:$0xf]
        %v825 = vld [vmem:[#allocation8 + $0x10] sm:$0xf]
        %v826 = vld [vmem:[#allocation8 + $0x14] sm:$0xf]
        %v827 = vld [vmem:[#allocation8 + $0x18] sm:$0xf]
        %v828 = vld [vmem:[#allocation8 + $0x1c] sm:$0xf]
        %v829 = vld [vmem:[#allocation8 + $0x20] sm:$0xf]
        %v830 = vld [vmem:[#allocation8 + $0x24] sm:$0xf]
        %v831 = vld [vmem:[#allocation8 + $0x28] sm:$0xf]
        %v832 = vld [vmem:[#allocation8 + $0x2c] sm:$0xf]
        %v833 = vld [vmem:[#allocation8 + $0x30] sm:$0xf]
        %v834 = vld [vmem:[#allocation8 + $0x34] sm:$0xf]
        %v835 = vld [vmem:[#allocation8 + $0x38] sm:$0xf]
        %v836 = vld [vmem:[#allocation8 + $0x3c] sm:$0xf]
        %v837 = vld [vmem:[#allocation8 + $0x40] sm:$0xf]
        %v838 = vld [vmem:[#allocation8 + $0x44] sm:$0xf]
        %v839 = vld [vmem:[#allocation8 + $0x48] sm:$0xf]
        %v840 = vld [vmem:[#allocation8 + $0x4c] sm:$0xf]
        %v841 = vld [vmem:[#allocation8 + $0x50] sm:$0xf]
        %v842 = vld [vmem:[#allocation8 + $0x54] sm:$0xf]
        %v843 = vld [vmem:[#allocation8 + $0x58] sm:$0xf]
        %v844 = vld [vmem:[#allocation8 + $0x5c] sm:$0xf]
        %v845 = vld [vmem:[#allocation8 + $0x60] sm:$0xf]
        %v846 = vld [vmem:[#allocation8 + $0x64] sm:$0xf]
        %v847 = vld [vmem:[#allocation8 + $0x68] sm:$0xf]
        %v848 = vld [vmem:[#allocation8 + $0x6c] sm:$0xf]
        %v849 = vld [vmem:[#allocation8 + $0x70] sm:$0xf]
        %v850 = vld [vmem:[#allocation8 + $0x74] sm:$0xf]
        %v851 = vld [vmem:[#allocation8 + $0x78] sm:$0xf]
        %v852 = vld [vmem:[#allocation8 + $0x7c] sm:$0xf]
        %v885 = vunpack.c.l.b16 %v821
        %v886 = vunpack.c.l.b16 %v822
        %v887 = vunpack.c.l.b16 %v823
        %v888 = vunpack.c.l.b16 %v824
        %v889 = vunpack.c.l.b16 %v825
        %v890 = vunpack.c.l.b16 %v826
        %v891 = vunpack.c.l.b16 %v827
        %v892 = vunpack.c.l.b16 %v828
        %v893 = vunpack.c.l.b16 %v829
        %v894 = vunpack.c.l.b16 %v830
        %v895 = vunpack.c.l.b16 %v831
        %v896 = vunpack.c.l.b16 %v832
        %v897 = vunpack.c.l.b16 %v833
        %v898 = vunpack.c.l.b16 %v834
        %v899 = vunpack.c.l.b16 %v835
        %v900 = vunpack.c.l.b16 %v836
        %v901 = vunpack.c.l.b16 %v837
        %v902 = vunpack.c.l.b16 %v838
        %v903 = vunpack.c.l.b16 %v839
        %v904 = vunpack.c.l.b16 %v840
        %v905 = vunpack.c.l.b16 %v841
        %v906 = vunpack.c.l.b16 %v842
        %v907 = vunpack.c.l.b16 %v843
        %v908 = vunpack.c.l.b16 %v844
        %v909 = vunpack.c.l.b16 %v845
        %v910 = vunpack.c.l.b16 %v846
        %v911 = vunpack.c.l.b16 %v847
        %v912 = vunpack.c.l.b16 %v848
        %v913 = vunpack.c.l.b16 %v849
        %v914 = vunpack.c.l.b16 %v850
        %v915 = vunpack.c.l.b16 %v851
        %v916 = vunpack.c.l.b16 %v852
        %v917 = vpack.c.b16 %v886, %v885
        %v918 = vpack.c.b16 %v888, %v887
        %v919 = vpack.c.b16 %v890, %v889
        %v920 = vpack.c.b16 %v892, %v891
        %v921 = vpack.c.b16 %v894, %v893
        %v922 = vpack.c.b16 %v896, %v895
        %v923 = vpack.c.b16 %v898, %v897
        %v924 = vpack.c.b16 %v900, %v899
        %v925 = vpack.c.b16 %v902, %v901
        %v926 = vpack.c.b16 %v904, %v903
        %v927 = vpack.c.b16 %v906, %v905
        %v928 = vpack.c.b16 %v908, %v907
        %v929 = vpack.c.b16 %v910, %v909
        %v930 = vpack.c.b16 %v912, %v911
        %v931 = vpack.c.b16 %v914, %v913
        %v932 = vpack.c.b16 %v916, %v915
        %949 = vmatpush.bf16.msra.mxu0 %v924
        %950 = vmatpush.bf16.msra.mxu0 %v923
        %951 = vmatpush.bf16.msra.mxu0 %v922
        %952 = vmatpush.bf16.msra.mxu0 %v921
        %953 = vmatpush.bf16.msra.mxu0 %v920
        %954 = vmatpush.bf16.msra.mxu0 %v919
        %955 = vmatpush.bf16.msra.mxu0 %v918
        %956 = vmatpush.bf16.msra.mxu0 %v917
        %957 = vmatmul.bf16.gmra.mxu0 %v789
        %v958 = vpop.f32.mrf.mxu0
        %v959 = vadd.f32 0.0, %v958
        %v960 = vpop.f32.mrf.mxu0
        %v961 = vadd.f32 0.0, %v960
        %962 = vmatmul.bf16.gmra.mxu0 %v791
        %v963 = vpop.f32.mrf.mxu0
        %v964 = vadd.f32 0.0, %v963
        %v965 = vpop.f32.mrf.mxu0
        %v966 = vadd.f32 0.0, %v965
        %967 = vmatmul.bf16.gmra.mxu0 %v793
        %v968 = vpop.f32.mrf.mxu0
        %v969 = vadd.f32 0.0, %v968
        %v970 = vpop.f32.mrf.mxu0
        %v971 = vadd.f32 0.0, %v970
        %972 = vmatmul.bf16.gmra.mxu0 %v795
        %v973 = vpop.f32.mrf.mxu0
        %v974 = vadd.f32 0.0, %v973
        %v975 = vpop.f32.mrf.mxu0
        %v976 = vadd.f32 0.0, %v975
        %977 = vmatmul.bf16.gmra.mxu0 %v797
        %v978 = vpop.f32.mrf.mxu0
        %v979 = vadd.f32 0.0, %v978
        %v980 = vpop.f32.mrf.mxu0
        %v981 = vadd.f32 0.0, %v980
        %982 = vmatmul.bf16.gmra.mxu0 %v799
        %v983 = vpop.f32.mrf.mxu0
        %v984 = vadd.f32 0.0, %v983
        %v985 = vpop.f32.mrf.mxu0
        %v986 = vadd.f32 0.0, %v985
        %987 = vmatmul.bf16.gmra.mxu0 %v801
        %v988 = vpop.f32.mrf.mxu0
        %v989 = vadd.f32 0.0, %v988
        %v990 = vpop.f32.mrf.mxu0
        %v991 = vadd.f32 0.0, %v990
        %992 = vmatmul.bf16.gmra.mxu0 %v803
        %v993 = vpop.f32.mrf.mxu0
        %v994 = vadd.f32 0.0, %v993
        %v995 = vpop.f32.mrf.mxu0
        %v996 = vadd.f32 0.0, %v995
        %997 = vmatmul.bf16.gmra.mxu0 %v805
        %v998 = vpop.f32.mrf.mxu0
        %v999 = vadd.f32 0.0, %v998
        %v1000 = vpop.f32.mrf.mxu0
        %v1001 = vadd.f32 0.0, %v1000
        %1002 = vmatmul.bf16.gmra.mxu0 %v807
        %v1003 = vpop.f32.mrf.mxu0
        %v1004 = vadd.f32 0.0, %v1003
        %v1005 = vpop.f32.mrf.mxu0
        %v1006 = vadd.f32 0.0, %v1005
        %1007 = vmatmul.bf16.gmra.mxu0 %v809
        %v1008 = vpop.f32.mrf.mxu0
        %v1009 = vadd.f32 0.0, %v1008
        %v1010 = vpop.f32.mrf.mxu0
        %v1011 = vadd.f32 0.0, %v1010
        %1012 = vmatmul.bf16.gmra.mxu0 %v811
        %v1013 = vpop.f32.mrf.mxu0
        %v1014 = vadd.f32 0.0, %v1013
        %v1015 = vpop.f32.mrf.mxu0
        %v1016 = vadd.f32 0.0, %v1015
        %1017 = vmatmul.bf16.gmra.mxu0 %v813
        %v1018 = vpop.f32.mrf.mxu0
        %v1019 = vadd.f32 0.0, %v1018
        %v1020 = vpop.f32.mrf.mxu0
        %v1021 = vadd.f32 0.0, %v1020
        %1022 = vmatmul.bf16.gmra.mxu0 %v815
        %v1023 = vpop.f32.mrf.mxu0
        %v1024 = vadd.f32 0.0, %v1023
        %v1025 = vpop.f32.mrf.mxu0
        %v1026 = vadd.f32 0.0, %v1025
        %1027 = vmatmul.bf16.gmra.mxu0 %v817
        %v1028 = vpop.f32.mrf.mxu0
        %v1029 = vadd.f32 0.0, %v1028
        %v1030 = vpop.f32.mrf.mxu0
        %v1031 = vadd.f32 0.0, %v1030
        %1032 = vmatmul.bf16.gmra.mxu0 %v819
        %v1033 = vpop.f32.mrf.mxu0
        %v1034 = vadd.f32 0.0, %v1033
        %v1035 = vpop.f32.mrf.mxu0
        %v1036 = vadd.f32 0.0, %v1035
        %1037 = vdwg.mxu0
        %1038 = vmatpush.bf16.msra.mxu0 %v932
        %1039 = vmatpush.bf16.msra.mxu0 %v931
        %1040 = vmatpush.bf16.msra.mxu0 %v930
        %1041 = vmatpush.bf16.msra.mxu0 %v929
        %1042 = vmatpush.bf16.msra.mxu0 %v928
        %1043 = vmatpush.bf16.msra.mxu0 %v927
        %1044 = vmatpush.bf16.msra.mxu0 %v926
        %1045 = vmatpush.bf16.msra.mxu0 %v925
        %1046 = vmatmul.bf16.gmra.mxu0 %v790
        %v1047 = vpop.f32.mrf.mxu0
        %v1048 = vadd.f32 %v959, %v1047
        %v1049 = vpop.f32.mrf.mxu0
        %v1050 = vadd.f32 %v961, %v1049
        %1051 = vmatmul.bf16.gmra.mxu0 %v792
        %v1052 = vpop.f32.mrf.mxu0
        %v1053 = vadd.f32 %v964, %v1052
        %v1054 = vpop.f32.mrf.mxu0
        %v1055 = vadd.f32 %v966, %v1054
        %1056 = vmatmul.bf16.gmra.mxu0 %v794
        %v1057 = vpop.f32.mrf.mxu0
        %v1058 = vadd.f32 %v969, %v1057
        %v1059 = vpop.f32.mrf.mxu0
        %v1060 = vadd.f32 %v971, %v1059
        %1061 = vmatmul.bf16.gmra.mxu0 %v796
        %v1062 = vpop.f32.mrf.mxu0
        %v1063 = vadd.f32 %v974, %v1062
        %v1064 = vpop.f32.mrf.mxu0
        %v1065 = vadd.f32 %v976, %v1064
        %1066 = vmatmul.bf16.gmra.mxu0 %v798
        %v1067 = vpop.f32.mrf.mxu0
        %v1068 = vadd.f32 %v979, %v1067
        %v1069 = vpop.f32.mrf.mxu0
        %v1070 = vadd.f32 %v981, %v1069
        %1071 = vmatmul.bf16.gmra.mxu0 %v800
        %v1072 = vpop.f32.mrf.mxu0
        %v1073 = vadd.f32 %v984, %v1072
        %v1074 = vpop.f32.mrf.mxu0
        %v1075 = vadd.f32 %v986, %v1074
        %1076 = vmatmul.bf16.gmra.mxu0 %v802
        %v1077 = vpop.f32.mrf.mxu0
        %v1078 = vadd.f32 %v989, %v1077
        %v1079 = vpop.f32.mrf.mxu0
        %v1080 = vadd.f32 %v991, %v1079
        %1081 = vmatmul.bf16.gmra.mxu0 %v804
        %v1082 = vpop.f32.mrf.mxu0
        %v1083 = vadd.f32 %v994, %v1082
        %v1084 = vpop.f32.mrf.mxu0
        %v1085 = vadd.f32 %v996, %v1084
        %1086 = vmatmul.bf16.gmra.mxu0 %v806
        %v1087 = vpop.f32.mrf.mxu0
        %v1088 = vadd.f32 %v999, %v1087
        %v1089 = vpop.f32.mrf.mxu0
        %v1090 = vadd.f32 %v1001, %v1089
        %1091 = vmatmul.bf16.gmra.mxu0 %v808
        %v1092 = vpop.f32.mrf.mxu0
        %v1093 = vadd.f32 %v1004, %v1092
        %v1094 = vpop.f32.mrf.mxu0
        %v1095 = vadd.f32 %v1006, %v1094
        %1096 = vmatmul.bf16.gmra.mxu0 %v810
        %v1097 = vpop.f32.mrf.mxu0
        %v1098 = vadd.f32 %v1009, %v1097
        %v1099 = vpop.f32.mrf.mxu0
        %v1100 = vadd.f32 %v1011, %v1099
        %1101 = vmatmul.bf16.gmra.mxu0 %v812
        %v1102 = vpop.f32.mrf.mxu0
        %v1103 = vadd.f32 %v1014, %v1102
        %v1104 = vpop.f32.mrf.mxu0
        %v1105 = vadd.f32 %v1016, %v1104
        %1106 = vmatmul.bf16.gmra.mxu0 %v814
        %v1107 = vpop.f32.mrf.mxu0
        %v1108 = vadd.f32 %v1019, %v1107
        %v1109 = vpop.f32.mrf.mxu0
        %v1110 = vadd.f32 %v1021, %v1109
        %1111 = vmatmul.bf16.gmra.mxu0 %v816
        %v1112 = vpop.f32.mrf.mxu0
        %v1113 = vadd.f32 %v1024, %v1112
        %v1114 = vpop.f32.mrf.mxu0
        %v1115 = vadd.f32 %v1026, %v1114
        %1116 = vmatmul.bf16.gmra.mxu0 %v818
        %v1117 = vpop.f32.mrf.mxu0
        %v1118 = vadd.f32 %v1029, %v1117
        %v1119 = vpop.f32.mrf.mxu0
        %v1120 = vadd.f32 %v1031, %v1119
        %1121 = vmatmul.bf16.gmra.mxu0 %v820
        %v1122 = vpop.f32.mrf.mxu0
        %v1123 = vadd.f32 %v1034, %v1122
        %v1124 = vpop.f32.mrf.mxu0
        %v1125 = vadd.f32 %v1036, %v1124
        %1126 = vdwg.mxu0
        %v1127 = vadd.f32 %v757, %v1048
        %v1128 = vadd.f32 %v758, %v1050
        %v1129 = vadd.f32 %v759, %v1053
        %v1130 = vadd.f32 %v760, %v1055
        %v1131 = vadd.f32 %v761, %v1058
        %v1132 = vadd.f32 %v762, %v1060
        %v1133 = vadd.f32 %v763, %v1063
        %v1134 = vadd.f32 %v764, %v1065
        %v1135 = vadd.f32 %v765, %v1068
        %v1136 = vadd.f32 %v766, %v1070
        %v1137 = vadd.f32 %v767, %v1073
        %v1138 = vadd.f32 %v768, %v1075
        %v1139 = vadd.f32 %v769, %v1078
        %v1140 = vadd.f32 %v770, %v1080
        %v1141 = vadd.f32 %v771, %v1083
        %v1142 = vadd.f32 %v772, %v1085
        %v1143 = vadd.f32 %v773, %v1088
        %v1144 = vadd.f32 %v774, %v1090
        %v1145 = vadd.f32 %v775, %v1093
        %v1146 = vadd.f32 %v776, %v1095
        %v1147 = vadd.f32 %v777, %v1098
        %v1148 = vadd.f32 %v778, %v1100
        %v1149 = vadd.f32 %v779, %v1103
        %v1150 = vadd.f32 %v780, %v1105
        %v1151 = vadd.f32 %v781, %v1108
        %v1152 = vadd.f32 %v782, %v1110
        %v1153 = vadd.f32 %v783, %v1113
        %v1154 = vadd.f32 %v784, %v1115
        %v1155 = vadd.f32 %v785, %v1118
        %v1156 = vadd.f32 %v786, %v1120
        %v1157 = vadd.f32 %v787, %v1123
        %v1158 = vadd.f32 %v788, %v1125
        %1159 = vst [vmem:[#allocation2] sm:$0xff] %v1127
        %1160 = vst [vmem:[#allocation2 + $0x8] sm:$0xff] %v1128
        %1161 = vst [vmem:[#allocation2 + $0x10] sm:$0xff] %v1129
        %1162 = vst [vmem:[#allocation2 + $0x18] sm:$0xff] %v1130
        %1163 = vst [vmem:[#allocation2 + $0x20] sm:$0xff] %v1131
        %1164 = vst [vmem:[#allocation2 + $0x28] sm:$0xff] %v1132
        %1165 = vst [vmem:[#allocation2 + $0x30] sm:$0xff] %v1133
        %1166 = vst [vmem:[#allocation2 + $0x38] sm:$0xff] %v1134
        %1167 = vst [vmem:[#allocation2 + $0x40] sm:$0xff] %v1135
        %1168 = vst [vmem:[#allocation2 + $0x48] sm:$0xff] %v1136
        %1169 = vst [vmem:[#allocation2 + $0x50] sm:$0xff] %v1137
        %1170 = vst [vmem:[#allocation2 + $0x58] sm:$0xff] %v1138
        %1171 = vst [vmem:[#allocation2 + $0x60] sm:$0xff] %v1139
        %1172 = vst [vmem:[#allocation2 + $0x68] sm:$0xff] %v1140
        %1173 = vst [vmem:[#allocation2 + $0x70] sm:$0xff] %v1141
        %1174 = vst [vmem:[#allocation2 + $0x78] sm:$0xff] %v1142
        %1175 = vst [vmem:[#allocation2 + $0x80] sm:$0xff] %v1143
        %1176 = vst [vmem:[#allocation2 + $0x88] sm:$0xff] %v1144
        %1177 = vst [vmem:[#allocation2 + $0x90] sm:$0xff] %v1145
        %1178 = vst [vmem:[#allocation2 + $0x98] sm:$0xff] %v1146
        %1179 = vst [vmem:[#allocation2 + $0xa0] sm:$0xff] %v1147
        %1180 = vst [vmem:[#allocation2 + $0xa8] sm:$0xff] %v1148
        %1181 = vst [vmem:[#allocation2 + $0xb0] sm:$0xff] %v1149
        %1182 = vst [vmem:[#allocation2 + $0xb8] sm:$0xff] %v1150
        %1183 = vst [vmem:[#allocation2 + $0xc0] sm:$0xff] %v1151
        %1184 = vst [vmem:[#allocation2 + $0xc8] sm:$0xff] %v1152
        %1185 = vst [vmem:[#allocation2 + $0xd0] sm:$0xff] %v1153
        %1186 = vst [vmem:[#allocation2 + $0xd8] sm:$0xff] %v1154
        %1187 = vst [vmem:[#allocation2 + $0xe0] sm:$0xff] %v1155
        %1188 = vst [vmem:[#allocation2 + $0xe8] sm:$0xff] %v1156
        %1189 = vst [vmem:[#allocation2 + $0xf0] sm:$0xff] %v1157
        %1190 = vst [vmem:[#allocation2 + $0xf8] sm:$0xff] %v1158
        // Predicated region
        $region57: #{_mlp_forward_impl.1} parent=39 // pred_check
          %p1191 = pneg %p329
        $region58: #{_mlp_forward_impl.1} parent=39 // pred_check_branch
          %1193 = sbr.rel (%p1191) target = $region60
        $region59: #{_mlp_forward_impl.1} parent=39 // pred_region
          %v1194 = vld [vmem:[#allocation2] sm:$0xff]
          %v1195 = vld [vmem:[#allocation2 + $0x8] sm:$0xff]
          %v1196 = vld [vmem:[#allocation2 + $0x10] sm:$0xff]
          %v1197 = vld [vmem:[#allocation2 + $0x18] sm:$0xff]
          %v1198 = vld [vmem:[#allocation2 + $0x20] sm:$0xff]
          %v1199 = vld [vmem:[#allocation2 + $0x28] sm:$0xff]
          %v1200 = vld [vmem:[#allocation2 + $0x30] sm:$0xff]
          %v1201 = vld [vmem:[#allocation2 + $0x38] sm:$0xff]
          %v1202 = vld [vmem:[#allocation2 + $0x40] sm:$0xff]
          %v1203 = vld [vmem:[#allocation2 + $0x48] sm:$0xff]
          %v1204 = vld [vmem:[#allocation2 + $0x50] sm:$0xff]
          %v1205 = vld [vmem:[#allocation2 + $0x58] sm:$0xff]
          %v1206 = vld [vmem:[#allocation2 + $0x60] sm:$0xff]
          %v1207 = vld [vmem:[#allocation2 + $0x68] sm:$0xff]
          %v1208 = vld [vmem:[#allocation2 + $0x70] sm:$0xff]
          %v1209 = vld [vmem:[#allocation2 + $0x78] sm:$0xff]
          %v1210 = vld [vmem:[#allocation2 + $0x80] sm:$0xff]
          %v1211 = vld [vmem:[#allocation2 + $0x88] sm:$0xff]
          %v1212 = vld [vmem:[#allocation2 + $0x90] sm:$0xff]
          %v1213 = vld [vmem:[#allocation2 + $0x98] sm:$0xff]
          %v1214 = vld [vmem:[#allocation2 + $0xa0] sm:$0xff]
          %v1215 = vld [vmem:[#allocation2 + $0xa8] sm:$0xff]
          %v1216 = vld [vmem:[#allocation2 + $0xb0] sm:$0xff]
          %v1217 = vld [vmem:[#allocation2 + $0xb8] sm:$0xff]
          %v1218 = vld [vmem:[#allocation2 + $0xc0] sm:$0xff]
          %v1219 = vld [vmem:[#allocation2 + $0xc8] sm:$0xff]
          %v1220 = vld [vmem:[#allocation2 + $0xd0] sm:$0xff]
          %v1221 = vld [vmem:[#allocation2 + $0xd8] sm:$0xff]
          %v1222 = vld [vmem:[#allocation2 + $0xe0] sm:$0xff]
          %v1223 = vld [vmem:[#allocation2 + $0xe8] sm:$0xff]
          %v1224 = vld [vmem:[#allocation2 + $0xf0] sm:$0xff]
          %v1225 = vld [vmem:[#allocation2 + $0xf8] sm:$0xff]
          %v1226 = vld [vmem:[%s4] sm:$0x1]
          %v1228 = vperm.slane %v1226, 0
          %v1230 = vadd.f32 %v1194, %v1228
          %v1231 = vadd.f32 %v1195, %v1228
          %v1232 = vadd.f32 %v1196, %v1228
          %v1233 = vadd.f32 %v1197, %v1228
          %v1234 = vadd.f32 %v1198, %v1228
          %v1235 = vadd.f32 %v1199, %v1228
          %v1236 = vadd.f32 %v1200, %v1228
          %v1237 = vadd.f32 %v1201, %v1228
          %v1238 = vadd.f32 %v1202, %v1228
          %v1239 = vadd.f32 %v1203, %v1228
          %v1240 = vadd.f32 %v1204, %v1228
          %v1241 = vadd.f32 %v1205, %v1228
          %v1242 = vadd.f32 %v1206, %v1228
          %v1243 = vadd.f32 %v1207, %v1228
          %v1244 = vadd.f32 %v1208, %v1228
          %v1245 = vadd.f32 %v1209, %v1228
          %v1246 = vadd.f32 %v1210, %v1228
          %v1247 = vadd.f32 %v1211, %v1228
          %v1248 = vadd.f32 %v1212, %v1228
          %v1249 = vadd.f32 %v1213, %v1228
          %v1250 = vadd.f32 %v1214, %v1228
          %v1251 = vadd.f32 %v1215, %v1228
          %v1252 = vadd.f32 %v1216, %v1228
          %v1253 = vadd.f32 %v1217, %v1228
          %v1254 = vadd.f32 %v1218, %v1228
          %v1255 = vadd.f32 %v1219, %v1228
          %v1256 = vadd.f32 %v1220, %v1228
          %v1257 = vadd.f32 %v1221, %v1228
          %v1258 = vadd.f32 %v1222, %v1228
          %v1259 = vadd.f32 %v1223, %v1228
          %v1260 = vadd.f32 %v1224, %v1228
          %v1261 = vadd.f32 %v1225, %v1228
          %1262 = vmax.xlane.f32.xlu0 %v1230
          %v1263 = vpop.xlane.xlu0 %1262
          %1264 = vmax.xlane.f32.xlu0 %v1231
          %v1265 = vpop.xlane.xlu0 %1264
          %1266 = vmax.xlane.f32.xlu0 %v1232
          %v1267 = vpop.xlane.xlu0 %1266
          %1268 = vmax.xlane.f32.xlu0 %v1233
          %v1269 = vpop.xlane.xlu0 %1268
          %1270 = vmax.xlane.f32.xlu0 %v1234
          %v1271 = vpop.xlane.xlu0 %1270
          %1272 = vmax.xlane.f32.xlu0 %v1235
          %v1273 = vpop.xlane.xlu0 %1272
          %1274 = vmax.xlane.f32.xlu0 %v1236
          %v1275 = vpop.xlane.xlu0 %1274
          %1276 = vmax.xlane.f32.xlu0 %v1237
          %v1277 = vpop.xlane.xlu0 %1276
          %1278 = vmax.xlane.f32.xlu0 %v1238
          %v1279 = vpop.xlane.xlu0 %1278
          %1280 = vmax.xlane.f32.xlu0 %v1239
          %v1281 = vpop.xlane.xlu0 %1280
          %1282 = vmax.xlane.f32.xlu0 %v1240
          %v1283 = vpop.xlane.xlu0 %1282
          %1284 = vmax.xlane.f32.xlu0 %v1241
          %v1285 = vpop.xlane.xlu0 %1284
          %1286 = vmax.xlane.f32.xlu0 %v1242
          %v1287 = vpop.xlane.xlu0 %1286
          %1288 = vmax.xlane.f32.xlu0 %v1243
          %v1289 = vpop.xlane.xlu0 %1288
          %1290 = vmax.xlane.f32.xlu0 %v1244
          %v1291 = vpop.xlane.xlu0 %1290
          %1292 = vmax.xlane.f32.xlu0 %v1245
          %v1293 = vpop.xlane.xlu0 %1292
          %1294 = vmax.xlane.f32.xlu0 %v1246
          %v1295 = vpop.xlane.xlu0 %1294
          %1296 = vmax.xlane.f32.xlu0 %v1247
          %v1297 = vpop.xlane.xlu0 %1296
          %1298 = vmax.xlane.f32.xlu0 %v1248
          %v1299 = vpop.xlane.xlu0 %1298
          %1300 = vmax.xlane.f32.xlu0 %v1249
          %v1301 = vpop.xlane.xlu0 %1300
          %1302 = vmax.xlane.f32.xlu0 %v1250
          %v1303 = vpop.xlane.xlu0 %1302
          %1304 = vmax.xlane.f32.xlu0 %v1251
          %v1305 = vpop.xlane.xlu0 %1304
          %1306 = vmax.xlane.f32.xlu0 %v1252
          %v1307 = vpop.xlane.xlu0 %1306
          %1308 = vmax.xlane.f32.xlu0 %v1253
          %v1309 = vpop.xlane.xlu0 %1308
          %1310 = vmax.xlane.f32.xlu0 %v1254
          %v1311 = vpop.xlane.xlu0 %1310
          %1312 = vmax.xlane.f32.xlu0 %v1255
          %v1313 = vpop.xlane.xlu0 %1312
          %1314 = vmax.xlane.f32.xlu0 %v1256
          %v1315 = vpop.xlane.xlu0 %1314
          %1316 = vmax.xlane.f32.xlu0 %v1257
          %v1317 = vpop.xlane.xlu0 %1316
          %1318 = vmax.xlane.f32.xlu0 %v1258
          %v1319 = vpop.xlane.xlu0 %1318
          %1320 = vmax.xlane.f32.xlu0 %v1259
          %v1321 = vpop.xlane.xlu0 %1320
          %1322 = vmax.xlane.f32.xlu0 %v1260
          %v1323 = vpop.xlane.xlu0 %1322
          %1324 = vmax.xlane.f32.xlu0 %v1261
          %v1325 = vpop.xlane.xlu0 %1324
          %v1326 = vsub.f32 %v1230, %v1263
          %v1327 = vsub.f32 %v1231, %v1265
          %v1328 = vsub.f32 %v1232, %v1267
          %v1329 = vsub.f32 %v1233, %v1269
          %v1330 = vsub.f32 %v1234, %v1271
          %v1331 = vsub.f32 %v1235, %v1273
          %v1332 = vsub.f32 %v1236, %v1275
          %v1333 = vsub.f32 %v1237, %v1277
          %v1334 = vsub.f32 %v1238, %v1279
          %v1335 = vsub.f32 %v1239, %v1281
          %v1336 = vsub.f32 %v1240, %v1283
          %v1337 = vsub.f32 %v1241, %v1285
          %v1338 = vsub.f32 %v1242, %v1287
          %v1339 = vsub.f32 %v1243, %v1289
          %v1340 = vsub.f32 %v1244, %v1291
          %v1341 = vsub.f32 %v1245, %v1293
          %v1342 = vsub.f32 %v1246, %v1295
          %v1343 = vsub.f32 %v1247, %v1297
          %v1344 = vsub.f32 %v1248, %v1299
          %v1345 = vsub.f32 %v1249, %v1301
          %v1346 = vsub.f32 %v1250, %v1303
          %v1347 = vsub.f32 %v1251, %v1305
          %v1348 = vsub.f32 %v1252, %v1307
          %v1349 = vsub.f32 %v1253, %v1309
          %v1350 = vsub.f32 %v1254, %v1311
          %v1351 = vsub.f32 %v1255, %v1313
          %v1352 = vsub.f32 %v1256, %v1315
          %v1353 = vsub.f32 %v1257, %v1317
          %v1354 = vsub.f32 %v1258, %v1319
          %v1355 = vsub.f32 %v1259, %v1321
          %v1356 = vsub.f32 %v1260, %v1323
          %v1357 = vsub.f32 %v1261, %v1325
          %v1358 = vmul.f32 %v1326, 1.442695
          %v1359 = vpow.pop %v1358
          %v1360 = vmul.f32 %v1327, 1.442695
          %v1361 = vpow.pop %v1360
          %v1362 = vmul.f32 %v1328, 1.442695
          %v1363 = vpow.pop %v1362
          %v1364 = vmul.f32 %v1329, 1.442695
          %v1365 = vpow.pop %v1364
          %v1366 = vmul.f32 %v1330, 1.442695
          %v1367 = vpow.pop %v1366
          %v1368 = vmul.f32 %v1331, 1.442695
          %v1369 = vpow.pop %v1368
          %v1370 = vmul.f32 %v1332, 1.442695
          %v1371 = vpow.pop %v1370
          %v1372 = vmul.f32 %v1333, 1.442695
          %v1373 = vpow.pop %v1372
          %v1374 = vmul.f32 %v1334, 1.442695
          %v1375 = vpow.pop %v1374
          %v1376 = vmul.f32 %v1335, 1.442695
          %v1377 = vpow.pop %v1376
          %v1378 = vmul.f32 %v1336, 1.442695
          %v1379 = vpow.pop %v1378
          %v1380 = vmul.f32 %v1337, 1.442695
          %v1381 = vpow.pop %v1380
          %v1382 = vmul.f32 %v1338, 1.442695
          %v1383 = vpow.pop %v1382
          %v1384 = vmul.f32 %v1339, 1.442695
          %v1385 = vpow.pop %v1384
          %v1386 = vmul.f32 %v1340, 1.442695
          %v1387 = vpow.pop %v1386
          %v1388 = vmul.f32 %v1341, 1.442695
          %v1389 = vpow.pop %v1388
          %v1390 = vmul.f32 %v1342, 1.442695
          %v1391 = vpow.pop %v1390
          %v1392 = vmul.f32 %v1343, 1.442695
          %v1393 = vpow.pop %v1392
          %v1394 = vmul.f32 %v1344, 1.442695
          %v1395 = vpow.pop %v1394
          %v1396 = vmul.f32 %v1345, 1.442695
          %v1397 = vpow.pop %v1396
          %v1398 = vmul.f32 %v1346, 1.442695
          %v1399 = vpow.pop %v1398
          %v1400 = vmul.f32 %v1347, 1.442695
          %v1401 = vpow.pop %v1400
          %v1402 = vmul.f32 %v1348, 1.442695
          %v1403 = vpow.pop %v1402
          %v1404 = vmul.f32 %v1349, 1.442695
          %v1405 = vpow.pop %v1404
          %v1406 = vmul.f32 %v1350, 1.442695
          %v1407 = vpow.pop %v1406
          %v1408 = vmul.f32 %v1351, 1.442695
          %v1409 = vpow.pop %v1408
          %v1410 = vmul.f32 %v1352, 1.442695
          %v1411 = vpow.pop %v1410
          %v1412 = vmul.f32 %v1353, 1.442695
          %v1413 = vpow.pop %v1412
          %v1414 = vmul.f32 %v1354, 1.442695
          %v1415 = vpow.pop %v1414
          %v1416 = vmul.f32 %v1355, 1.442695
          %v1417 = vpow.pop %v1416
          %v1418 = vmul.f32 %v1356, 1.442695
          %v1419 = vpow.pop %v1418
          %v1420 = vmul.f32 %v1357, 1.442695
          %v1421 = vpow.pop %v1420
          %1422 = vadd.xlane.f32.xlu0 %v1359
          %v1423 = vpop.xlane.xlu0 %1422
          %1424 = vadd.xlane.f32.xlu0 %v1361
          %v1425 = vpop.xlane.xlu0 %1424
          %1426 = vadd.xlane.f32.xlu0 %v1363
          %v1427 = vpop.xlane.xlu0 %1426
          %1428 = vadd.xlane.f32.xlu0 %v1365
          %v1429 = vpop.xlane.xlu0 %1428
          %1430 = vadd.xlane.f32.xlu0 %v1367
          %v1431 = vpop.xlane.xlu0 %1430
          %1432 = vadd.xlane.f32.xlu0 %v1369
          %v1433 = vpop.xlane.xlu0 %1432
          %1434 = vadd.xlane.f32.xlu0 %v1371
          %v1435 = vpop.xlane.xlu0 %1434
          %1436 = vadd.xlane.f32.xlu0 %v1373
          %v1437 = vpop.xlane.xlu0 %1436
          %1438 = vadd.xlane.f32.xlu0 %v1375
          %v1439 = vpop.xlane.xlu0 %1438
          %1440 = vadd.xlane.f32.xlu0 %v1377
          %v1441 = vpop.xlane.xlu0 %1440
          %1442 = vadd.xlane.f32.xlu0 %v1379
          %v1443 = vpop.xlane.xlu0 %1442
          %1444 = vadd.xlane.f32.xlu0 %v1381
          %v1445 = vpop.xlane.xlu0 %1444
          %1446 = vadd.xlane.f32.xlu0 %v1383
          %v1447 = vpop.xlane.xlu0 %1446
          %1448 = vadd.xlane.f32.xlu0 %v1385
          %v1449 = vpop.xlane.xlu0 %1448
          %1450 = vadd.xlane.f32.xlu0 %v1387
          %v1451 = vpop.xlane.xlu0 %1450
          %1452 = vadd.xlane.f32.xlu0 %v1389
          %v1453 = vpop.xlane.xlu0 %1452
          %1454 = vadd.xlane.f32.xlu0 %v1391
          %v1455 = vpop.xlane.xlu0 %1454
          %1456 = vadd.xlane.f32.xlu0 %v1393
          %v1457 = vpop.xlane.xlu0 %1456
          %1458 = vadd.xlane.f32.xlu0 %v1395
          %v1459 = vpop.xlane.xlu0 %1458
          %1460 = vadd.xlane.f32.xlu0 %v1397
          %v1461 = vpop.xlane.xlu0 %1460
          %1462 = vadd.xlane.f32.xlu0 %v1399
          %v1463 = vpop.xlane.xlu0 %1462
          %1464 = vadd.xlane.f32.xlu0 %v1401
          %v1465 = vpop.xlane.xlu0 %1464
          %1466 = vadd.xlane.f32.xlu0 %v1403
          %v1467 = vpop.xlane.xlu0 %1466
          %1468 = vadd.xlane.f32.xlu0 %v1405
          %v1469 = vpop.xlane.xlu0 %1468
          %1470 = vadd.xlane.f32.xlu0 %v1407
          %v1471 = vpop.xlane.xlu0 %1470
          %1472 = vadd.xlane.f32.xlu0 %v1409
          %v1473 = vpop.xlane.xlu0 %1472
          %1474 = vadd.xlane.f32.xlu0 %v1411
          %v1475 = vpop.xlane.xlu0 %1474
          %1476 = vadd.xlane.f32.xlu0 %v1413
          %v1477 = vpop.xlane.xlu0 %1476
          %1478 = vadd.xlane.f32.xlu0 %v1415
          %v1479 = vpop.xlane.xlu0 %1478
          %1480 = vadd.xlane.f32.xlu0 %v1417
          %v1481 = vpop.xlane.xlu0 %1480
          %1482 = vadd.xlane.f32.xlu0 %v1419
          %v1483 = vpop.xlane.xlu0 %1482
          %1484 = vadd.xlane.f32.xlu0 %v1421
          %v1485 = vpop.xlane.xlu0 %1484
          %v1486 = vrcp.pop %v1423
          %v1487 = vrcp.pop %v1425
          %v1488 = vrcp.pop %v1427
          %v1489 = vrcp.pop %v1429
          %v1490 = vrcp.pop %v1431
          %v1491 = vrcp.pop %v1433
          %v1492 = vrcp.pop %v1435
          %v1493 = vrcp.pop %v1437
          %v1494 = vrcp.pop %v1439
          %v1495 = vrcp.pop %v1441
          %v1496 = vrcp.pop %v1443
          %v1497 = vrcp.pop %v1445
          %v1498 = vrcp.pop %v1447
          %v1499 = vrcp.pop %v1449
          %v1500 = vrcp.pop %v1451
          %v1501 = vrcp.pop %v1453
          %v1502 = vrcp.pop %v1455
          %v1503 = vrcp.pop %v1457
          %v1504 = vrcp.pop %v1459
          %v1505 = vrcp.pop %v1461
          %v1506 = vrcp.pop %v1463
          %v1507 = vrcp.pop %v1465
          %v1508 = vrcp.pop %v1467
          %v1509 = vrcp.pop %v1469
          %v1510 = vrcp.pop %v1471
          %v1511 = vrcp.pop %v1473
          %v1512 = vrcp.pop %v1475
          %v1513 = vrcp.pop %v1477
          %v1514 = vrcp.pop %v1479
          %v1515 = vrcp.pop %v1481
          %v1516 = vrcp.pop %v1483
          %v1517 = vrcp.pop %v1485
          %v1518 = vmul.f32 %v1359, %v1486
          %v1519 = vmul.f32 %v1361, %v1487
          %v1520 = vmul.f32 %v1363, %v1488
          %v1521 = vmul.f32 %v1365, %v1489
          %v1522 = vmul.f32 %v1367, %v1490
          %v1523 = vmul.f32 %v1369, %v1491
          %v1524 = vmul.f32 %v1371, %v1492
          %v1525 = vmul.f32 %v1373, %v1493
          %v1526 = vmul.f32 %v1375, %v1494
          %v1527 = vmul.f32 %v1377, %v1495
          %v1528 = vmul.f32 %v1379, %v1496
          %v1529 = vmul.f32 %v1381, %v1497
          %v1530 = vmul.f32 %v1383, %v1498
          %v1531 = vmul.f32 %v1385, %v1499
          %v1532 = vmul.f32 %v1387, %v1500
          %v1533 = vmul.f32 %v1389, %v1501
          %v1534 = vmul.f32 %v1391, %v1502
          %v1535 = vmul.f32 %v1393, %v1503
          %v1536 = vmul.f32 %v1395, %v1504
          %v1537 = vmul.f32 %v1397, %v1505
          %v1538 = vmul.f32 %v1399, %v1506
          %v1539 = vmul.f32 %v1401, %v1507
          %v1540 = vmul.f32 %v1403, %v1508
          %v1541 = vmul.f32 %v1405, %v1509
          %v1542 = vmul.f32 %v1407, %v1510
          %v1543 = vmul.f32 %v1409, %v1511
          %v1544 = vmul.f32 %v1411, %v1512
          %v1545 = vmul.f32 %v1413, %v1513
          %v1546 = vmul.f32 %v1415, %v1514
          %v1547 = vmul.f32 %v1417, %v1515
          %v1548 = vmul.f32 %v1419, %v1516
          %v1549 = vmul.f32 %v1421, %v1517
          %1550 = vst [vmem:[%s319] sm:$0xff] %v1518
          %1551 = vst [vmem:[%s319 + $0x8] sm:$0xff] %v1519
          %1552 = vst [vmem:[%s319 + $0x10] sm:$0xff] %v1520
          %1553 = vst [vmem:[%s319 + $0x18] sm:$0xff] %v1521
          %1554 = vst [vmem:[%s319 + $0x20] sm:$0xff] %v1522
          %1555 = vst [vmem:[%s319 + $0x28] sm:$0xff] %v1523
          %1556 = vst [vmem:[%s319 + $0x30] sm:$0xff] %v1524
          %1557 = vst [vmem:[%s319 + $0x38] sm:$0xff] %v1525
          %1558 = vst [vmem:[%s319 + $0x40] sm:$0xff] %v1526
          %1559 = vst [vmem:[%s319 + $0x48] sm:$0xff] %v1527
          %1560 = vst [vmem:[%s319 + $0x50] sm:$0xff] %v1528
          %1561 = vst [vmem:[%s319 + $0x58] sm:$0xff] %v1529
          %1562 = vst [vmem:[%s319 + $0x60] sm:$0xff] %v1530
          %1563 = vst [vmem:[%s319 + $0x68] sm:$0xff] %v1531
          %1564 = vst [vmem:[%s319 + $0x70] sm:$0xff] %v1532
          %1565 = vst [vmem:[%s319 + $0x78] sm:$0xff] %v1533
          %1566 = vst [vmem:[%s319 + $0x80] sm:$0xff] %v1534
          %1567 = vst [vmem:[%s319 + $0x88] sm:$0xff] %v1535
          %1568 = vst [vmem:[%s319 + $0x90] sm:$0xff] %v1536
          %1569 = vst [vmem:[%s319 + $0x98] sm:$0xff] %v1537
          %1570 = vst [vmem:[%s319 + $0xa0] sm:$0xff] %v1538
          %1571 = vst [vmem:[%s319 + $0xa8] sm:$0xff] %v1539
          %1572 = vst [vmem:[%s319 + $0xb0] sm:$0xff] %v1540
          %1573 = vst [vmem:[%s319 + $0xb8] sm:$0xff] %v1541
          %1574 = vst [vmem:[%s319 + $0xc0] sm:$0xff] %v1542
          %1575 = vst [vmem:[%s319 + $0xc8] sm:$0xff] %v1543
          %1576 = vst [vmem:[%s319 + $0xd0] sm:$0xff] %v1544
          %1577 = vst [vmem:[%s319 + $0xd8] sm:$0xff] %v1545
          %1578 = vst [vmem:[%s319 + $0xe0] sm:$0xff] %v1546
          %1579 = vst [vmem:[%s319 + $0xe8] sm:$0xff] %v1547
          %1580 = vst [vmem:[%s319 + $0xf0] sm:$0xff] %v1548
          %1581 = vst [vmem:[%s319 + $0xf8] sm:$0xff] %v1549
        $region60: #{_mlp_forward_impl.1} parent=39 // pred_fallthru
          _
        %s1582 = sand.u32 %s168, 1
        %s1583 = scalar_lea.sflag [#allocation5], %s1582
        %s1584 = sand.u32 %s168, 1
        %s1585 = smul.addr %s1584, 256
        %s1586 = scalar_lea.vmem [#allocation9], %s1585
        // Predicated region
        $region61: #{_mlp_forward_impl.1} parent=39 // pred_check
          %p1587 = pneg %p178
        $region62: #{_mlp_forward_impl.1} parent=39 // pred_check_branch
          %1589 = sbr.rel (%p1587) target = $region64
        $region63: #{_mlp_forward_impl.1} parent=39 // pred_region
          %s1590 = smul.u32 32, %s27
          %1592 = vsyncadd %s1583, 0
          %s1593 = smul.addr %s1590, 8
          %s1594 = scalar_lea.hbm %s5, %s1593
          %s1595 = sshll.u32 %s1586, 4
          %s1596 = int_to_ptr.vmem [resolvable:$true] %s1595
          %s1597 = sshll.u32 %s1594, 4
          %s1598 = int_to_ptr.hbm [resolvable:$true] %s1597
          %1603 = dma.vmem_to_hbm [thread:$0]  %s1596, 4096, %s1598, %s1583, 128, 128, 8
        $region64: #{_mlp_forward_impl.1} parent=39 // pred_fallthru
          _
      $region40: #{_mlp_forward_impl.1} parent=5 // pred_fallthru
        _
      %p1604 = scmp.le.s32.totalorder 2, %s18
      // Predicated region
      $region65: #{_mlp_forward_impl.1} parent=5 // pred_check
        %p1605 = pneg %p1604
      $region66: #{_mlp_forward_impl.1} parent=5 // pred_check_branch
        %1607 = sbr.rel (%p1605) target = $region68
      $region67: #{_mlp_forward_impl.1} parent=5 // pred_region
        %s1608 = ssub.s32 %s18, 2
        // Predicated region
        $region69: #{_mlp_forward_impl.1} parent=67 // pred_check
          %p1609 = pneg %p184
        $region70: #{_mlp_forward_impl.1} parent=67 // pred_check_branch
          %1611 = sbr.rel (%p1609) target = $region72
        $region71: #{_mlp_forward_impl.1} parent=67 // pred_region
          %s1612 = sand.u32 %s169, 1
          %s1613 = scalar_lea.sflag [#allocation5], %s1612
          %s1614 = sand.u32 %s169, 1
          %s1615 = smul.addr %s1614, 256
          %s1616 = scalar_lea.vmem [#allocation9], %s1615
          %1618 = dma.done %s1613, 4096
        $region72: #{_mlp_forward_impl.1} parent=67 // pred_fallthru
          _
      $region68: #{_mlp_forward_impl.1} parent=5 // pred_fallthru
        _
    $region6: #{_mlp_forward_impl.1} parent=1 // loop_footer
      %s22 = sadd.s32 1, %s18
    $region7: #{_mlp_forward_impl.1} parent=1 // loop_footer_branch
      %17 = sbr.rel target = $region3
    $region8: #{_mlp_forward_impl.1} parent=1 // loop_exit
      _
    %1619 = vsyncpa [#allocation4], 1
    %s1620 = scalar_lea.sflag [#allocation4], 1
    %1621 = vsyncpa %s1620, 1
    %1622 = vsyncpa [#allocation7], 1
    %1623 = vsyncpa [#allocation5], 1
    %s1624 = scalar_lea.sflag [#allocation5], 1
    %1625 = vsyncpa %s1624, 1

// kernel: _mlp_forward_impl.1
$region0: #{_mlp_forward_impl.1}
  #allocation0 [shape = 'u32[]', space=smem, size = 0x4, offset = 0x4, fixed_abs, tag = 'smem constant byte address 0x4 - core index']
  #allocation1 [shape = 'u32[72,128]{1,0:T(1,128)}', space=vmem, size = 0x9000, scoped, tag = 'internal scratch']
  #allocation2 [shape = 'f32[256,128]{1,0:T(8,128)}', space=vmem, size = 0x20000, scoped, tag = 'scratch operand']
  %s0 = inlined_call_operand.hbm [shape: f32[512,128], index: 0, kind: input, shape index: {}]
  %s1 = inlined_call_operand.hbm [shape: bf16[128,256], index: 1, kind: input, shape index: {}]
  %s2 = inlined_call_operand.vmem [shape: f32[1,256], index: 2, kind: input, shape index: {}]
  %s3 = inlined_call_operand.hbm [shape: bf16[256,128], index: 3, kind: input, shape index: {}]
  %s4 = inlined_call_operand.vmem [shape: f32[1,128], index: 4, kind: input, shape index: {}]
  %s5 = inlined_call_operand.hbm [shape: f32[512,128], index: 5, kind: output, shape index: {}]
  %s6 = sld [smem:[#allocation0]]
  $region73: #{_mlp_forward_impl.1} parent=0
    _
  %s8 = ssub.s32 1, %s6
  %s9 = scalar_select 0, %s8, %s6
  $region1: #{_mlp_forward_impl.1} parent=0
    #allocation3 [shape = 'u8[262144]{0}', space=vmem, size = 0x40000, scoped, tag = 'input window, operand 0']
    #allocation4 [shape = 's32[2]{0}', space=sflag, size = 0x8, scoped, tag = 'scoped memory for _mlp_forward_impl.1']
    #allocation5 [shape = 's32[2]{0}', space=sflag, size = 0x8, scoped, tag = 'scoped memory for _mlp_forward_impl.1']
    #allocation6 [shape = 'u8[65536]{0}', space=vmem, size = 0x10000, scoped, tag = 'input window, operand 1, single buffered']
    #allocation7 [shape = 's32[1]{0}', space=sflag, size = 0x4, scoped, tag = 'scoped memory for _mlp_forward_impl.1']
    #allocation8 [shape = 'u8[65536]{0}', space=vmem, size = 0x10000, scoped, tag = 'input window, operand 3, single buffered']
    #allocation9 [shape = 'u8[262144]{0}', space=vmem, size = 0x40000, scoped, tag = 'output window, operand 0']
    %10 = vsyncpa [#allocation4], 0
    %s11 = scalar_lea.sflag [#allocation4], 1
    %12 = vsyncpa %s11, 0
    %13 = vsyncpa [#allocation7], 0
    %14 = vsyncpa [#allocation5], 0
    %s15 = scalar_lea.sflag [#allocation5], 1
    %16 = vsyncpa %s15, 0
    loop: start=0, step=1, limit=4
    $region2: #{_mlp_forward_impl.1} parent=1 // loop_pre_header
      _
    $region3: #{_mlp_forward_impl.1} parent=1 // loop_header
      %s18 = sphi 0, %s22
      %p19 = scmp.ge.s32.totalorder %s18, 4
      %s25 = sphi 0, %s37
      %s26 = sphi 0, %s33
      %s27 = sphi 0, %s25
      %s28 = sphi 0, %s26
      %s29 = sphi 0, %s27
      %s30 = sphi 0, %s28
      %s40 = sphi 0, %s42
      %s43 = sphi 0, %s40
      %s44 = sphi 0, %s43
      %s60 = sphi 0, %s44
      %s66 = sphi 0, %s68
      %s69 = sphi 0, %s66
      %s70 = sphi 0, %s69
      %s86 = sphi 0, %s70
      %s92 = sphi 0, %s94
      %s95 = sphi 0, %s92
      %s96 = sphi 0, %s95
      %s112 = sphi 0, %s96
      %s118 = sphi 0, %s120
      %s121 = sphi 0, %s118
      %s122 = sphi 0, %s121
      %s138 = sphi 0, %s122
      %s142 = sphi 0, %s142
      %s144 = sphi 0, %s142
      %s145 = sphi 0, %s144
      %s159 = sphi 0, %s145
      %s165 = sphi 0, %s167
      %s168 = sphi 0, %s165
      %s169 = sphi 0, %s168
      %s185 = sphi 0, %s169
    $region4: #{_mlp_forward_impl.1} parent=1 // loop_header_branch
      %21 = sbr.rel (%p19) target = $region8
    $region5: #{_mlp_forward_impl.1} parent=1 // loop_body
      %s23 = ssub.s32 %s18, 1
      %s24 = ssub.s32 %s18, 2
      %s31 = sadd.s32 1, %s26
      %p32 = scmp.ge.s32.totalorder %s31, 1
      %s33 = scalar_select %p32, 0, %s31
      %s34 = sadd.s32 1, %s25
      %s35 = scalar_select %p32, %s34, %s25
      %p36 = scmp.ge.s32.totalorder %s35, 2
      %s37 = scalar_select %p36, 0, %s35
      %s38 = ssub.s32 %s25, %s37
      %p39 = scmp.eq.s32.totalorder %s38, 0
      %s41 = sadd.s32 %s40, 1
      %s42 = scalar_select %p39, %s40, %s41
      %p45 = pneg %p39
      %p46 = scmp.eq.s32.totalorder %s18, 1
      %p47 = por %p45, %p46
      %p48 = scmp.ne.s32.totalorder %s40, %s43
      %p49 = scmp.eq.s32.totalorder %s18, 0
      %p50 = por %p48, %p49
      %p51 = scmp.ne.s32.totalorder %s40, %s43
      %p52 = scmp.eq.s32.totalorder %s23, 1
      %p53 = por %p51, %p52
      %p54 = scmp.ne.s32.totalorder %s43, %s44
      %p55 = scmp.eq.s32.totalorder %s23, 0
      %p56 = por %p54, %p55
      %p57 = scmp.ne.s32.totalorder %s43, %s44
      %p58 = scmp.eq.s32.totalorder %s24, 1
      %p59 = por %p57, %p58
      %p61 = scmp.ne.s32.totalorder %s44, %s60
      %p62 = scmp.eq.s32.totalorder %s24, 0
      %p63 = por %p61, %p62
      %s64 = ssub.s32 %s26, %s33
      %p65 = scmp.eq.s32.totalorder %s64, 0
      %s67 = sadd.s32 %s66, 1
      %s68 = scalar_select %p65, %s66, %s67
      %p71 = pneg %p65
      %p72 = scmp.eq.s32.totalorder %s18, 1
      %p73 = por %p71, %p72
      %p74 = scmp.ne.s32.totalorder %s66, %s69
      %p75 = scmp.eq.s32.totalorder %s18, 0
      %p76 = por %p74, %p75
      %p77 = scmp.ne.s32.totalorder %s66, %s69
      %p78 = scmp.eq.s32.totalorder %s23, 1
      %p79 = por %p77, %p78
      %p80 = scmp.ne.s32.totalorder %s69, %s70
      %p81 = scmp.eq.s32.totalorder %s23, 0
      %p82 = por %p80, %p81
      %p83 = scmp.ne.s32.totalorder %s69, %s70
      %p84 = scmp.eq.s32.totalorder %s24, 1
      %p85 = por %p83, %p84
      %p87 = scmp.ne.s32.totalorder %s70, %s86
      %p88 = scmp.eq.s32.totalorder %s24, 0
      %p89 = por %p87, %p88
      %s90 = ssub.s32 %s26, %s33
      %p91 = scmp.eq.s32.totalorder %s90, 0
      %s93 = sadd.s32 %s92, 1
      %s94 = scalar_select %p91, %s92, %s93
      %p97 = pneg %p91
      %p98 = scmp.eq.s32.totalorder %s18, 1
      %p99 = por %p97, %p98
      %p100 = scmp.ne.s32.totalorder %s92, %s95
      %p101 = scmp.eq.s32.totalorder %s18, 0
      %p102 = por %p100, %p101
      %p103 = scmp.ne.s32.totalorder %s92, %s95
      %p104 = scmp.eq.s32.totalorder %s23, 1
      %p105 = por %p103, %p104
      %p106 = scmp.ne.s32.totalorder %s95, %s96
      %p107 = scmp.eq.s32.totalorder %s23, 0
      %p108 = por %p106, %p107
      %p109 = scmp.ne.s32.totalorder %s95, %s96
      %p110 = scmp.eq.s32.totalorder %s24, 1
      %p111 = por %p109, %p110
      %p113 = scmp.ne.s32.totalorder %s96, %s112
      %p114 = scmp.eq.s32.totalorder %s24, 0
      %p115 = por %p113, %p114
      %s116 = ssub.s32 %s26, %s33
      %p117 = scmp.eq.s32.totalorder %s116, 0
      %s119 = sadd.s32 %s118, 1
      %s120 = scalar_select %p117, %s118, %s119
      %p123 = pneg %p117
      %p124 = scmp.eq.s32.totalorder %s18, 1
      %p125 = por %p123, %p124
      %p126 = scmp.ne.s32.totalorder %s118, %s121
      %p127 = scmp.eq.s32.totalorder %s18, 0
      %p128 = por %p126, %p127
      %p129 = scmp.ne.s32.totalorder %s118, %s121
      %p130 = scmp.eq.s32.totalorder %s23, 1
      %p131 = por %p129, %p130
      %p132 = scmp.ne.s32.totalorder %s121, %s122
      %p133 = scmp.eq.s32.totalorder %s23, 0
      %p134 = por %p132, %p133
      %p135 = scmp.ne.s32.totalorder %s121, %s122
      %p136 = scmp.eq.s32.totalorder %s24, 1
      %p137 = por %p135, %p136
      %p139 = scmp.ne.s32.totalorder %s122, %s138
      %p140 = scmp.eq.s32.totalorder %s24, 0
      %p141 = por %p139, %p140
      %s143 = sadd.s32 %s142, 1
      %p146 = scmp.eq.s32.totalorder %s18, 1
      %p147 = scmp.ne.s32.totalorder %s142, %s144
      %p148 = scmp.eq.s32.totalorder %s18, 0
      %p149 = por %p147, %p148
      %p150 = scmp.ne.s32.totalorder %s142, %s144
      %p151 = scmp.eq.s32.totalorder %s23, 1
      %p152 = por %p150, %p151
      %p153 = scmp.ne.s32.totalorder %s144, %s145
      %p154 = scmp.eq.s32.totalorder %s23, 0
      %p155 = por %p153, %p154
      %p156 = scmp.ne.s32.totalorder %s144, %s145
      %p157 = scmp.eq.s32.totalorder %s24, 1
      %p158 = por %p156, %p157
      %p160 = scmp.ne.s32.totalorder %s145, %s159
      %p161 = scmp.eq.s32.totalorder %s24, 0
      %p162 = por %p160, %p161
      %s163 = ssub.s32 %s25, %s37
      %p164 = scmp.eq.s32.totalorder %s163, 0
      %s166 = sadd.s32 %s165, 1
      %s167 = scalar_select %p164, %s165, %s166
      %p170 = pneg %p164
      %p171 = scmp.eq.s32.totalorder %s18, 1
      %p172 = por %p170, %p171
      %p173 = scmp.ne.s32.totalorder %s165, %s168
      %p174 = scmp.eq.s32.totalorder %s18, 0
      %p175 = por %p173, %p174
      %p176 = scmp.ne.s32.totalorder %s165, %s168
      %p177 = scmp.eq.s32.totalorder %s23, 1
      %p178 = por %p176, %p177
      %p179 = scmp.ne.s32.totalorder %s168, %s169
      %p180 = scmp.eq.s32.totalorder %s23, 0
      %p181 = por %p179, %p180
      %p182 = scmp.ne.s32.totalorder %s168, %s169
      %p183 = scmp.eq.s32.totalorder %s24, 1
      %p184 = por %p182, %p183
      %p186 = scmp.ne.s32.totalorder %s169, %s185
      %p187 = scmp.eq.s32.totalorder %s24, 0
      %p188 = por %p186, %p187
      %p189 = scmp.le.s32.totalorder 1, %s18
      %p190 = scmp.lt.s32.totalorder %s18, 3
      %p191 = pnand %p189, %p190
      %p192 = pneg %p191
      // Predicated region
      $region9: #{_mlp_forward_impl.1} parent=5 // pred_check
        _
      $region10: #{_mlp_forward_impl.1} parent=5 // pred_check_branch
        %194 = sbr.rel (%p191) target = $region12
      $region11: #{_mlp_forward_impl.1} parent=5 // pred_region
        %s195 = ssub.s32 %s18, 1
        // Predicated region
        $region13: #{_mlp_forward_impl.1} parent=11 // pred_check
          %p196 = pneg %p82
        $region14: #{_mlp_forward_impl.1} parent=11 // pred_check_branch
          %198 = sbr.rel (%p196) target = $region16
        $region15: #{_mlp_forward_impl.1} parent=11 // pred_region
          %s199 = smul.u32 2, %s28
          %201 = vsyncadd [#allocation7], 0
          %s202 = smul.addr %s199, 4
          %s203 = scalar_lea.hbm %s1, %s202
          %s204 = sshll.u32 %s203, 4
          %s205 = int_to_ptr.hbm [resolvable:$true] %s204
          %s206 = sshll.u32 [#allocation6], 4
          %s207 = int_to_ptr.vmem [resolvable:$true] %s206
          %212 = dma.hbm_to_vmem [thread:$0]  %s205, 2048, %s207, [#allocation7], 128, 128, 8
        $region16: #{_mlp_forward_impl.1} parent=11 // pred_fallthru
          _
        // Predicated region
        $region17: #{_mlp_forward_impl.1} parent=11 // pred_check
          %p213 = pneg %p108
        $region18: #{_mlp_forward_impl.1} parent=11 // pred_check_branch
          %215 = sbr.rel (%p213) target = $region20
        $region19: #{_mlp_forward_impl.1} parent=11 // pred_region
          %s216 = smul.u32 2, %s28
          %p217 = scmp.lt.s32.totalorder %s216, 1
          %s218 = scalar_select %p217, %s216, 1
          %s219 = scalar_lea.vmem %s2, %s218
          %s220 = smul.u32 2, %s28
        $region20: #{_mlp_forward_impl.1} parent=11 // pred_fallthru
          _
        // Predicated region
        $region21: #{_mlp_forward_impl.1} parent=11 // pred_check
          %p221 = pneg %p134
        $region22: #{_mlp_forward_impl.1} parent=11 // pred_check_branch
          %223 = sbr.rel (%p221) target = $region24
        $region23: #{_mlp_forward_impl.1} parent=11 // pred_region
          %s224 = smul.u32 32, %s28
          %226 = vsyncadd [#allocation7], 0
          %s227 = smul.addr %s224, 4
          %s228 = scalar_lea.hbm %s3, %s227
          %s229 = sshll.u32 %s228, 4
          %s230 = int_to_ptr.hbm [resolvable:$true] %s229
          %s231 = sshll.u32 [#allocation8], 4
          %s232 = int_to_ptr.vmem [resolvable:$true] %s231
          %237 = dma.hbm_to_vmem [thread:$0]  %s230, 2048, %s232, [#allocation7], 64, 64, 4
        $region24: #{_mlp_forward_impl.1} parent=11 // pred_fallthru
          _
        // Predicated region
        $region25: #{_mlp_forward_impl.1} parent=11 // pred_check
          %p238 = pneg %p155
        $region26: #{_mlp_forward_impl.1} parent=11 // pred_check_branch
          %240 = sbr.rel (%p238) target = $region28
        $region27: #{_mlp_forward_impl.1} parent=11 // pred_region
          _
        $region28: #{_mlp_forward_impl.1} parent=11 // pred_fallthru
          _
      $region12: #{_mlp_forward_impl.1} parent=5 // pred_fallthru
        _
      %p241 = scmp.lt.s32.totalorder %s18, 2
      // Predicated region
      $region29: #{_mlp_forward_impl.1} parent=5 // pred_check
        %p242 = pneg %p241
      $region30: #{_mlp_forward_impl.1} parent=5 // pred_check_branch
        %244 = sbr.rel (%p242) target = $region32
      $region31: #{_mlp_forward_impl.1} parent=5 // pred_region
        // Predicated region
        $region33: #{_mlp_forward_impl.1} parent=31 // pred_check
          %p245 = pneg %p50
        $region34: #{_mlp_forward_impl.1} parent=31 // pred_check_branch
          %247 = sbr.rel (%p245) target = $region36
        $region35: #{_mlp_forward_impl.1} parent=31 // pred_region
          %s248 = sand.u32 %s40, 1
          %s249 = scalar_lea.sflag [#allocation4], %s248
          %s250 = sand.u32 %s40, 1
          %s251 = smul.addr %s250, 256
          %s252 = scalar_lea.vmem [#allocation3], %s251
          %s253 = smul.u32 32, %s25
          %255 = vsyncadd %s249, 0
          %s256 = smul.addr %s253, 8
          %s257 = scalar_lea.hbm %s0, %s256
          %s258 = sshll.u32 %s257, 4
          %s259 = int_to_ptr.hbm [resolvable:$true] %s258
          %s260 = sshll.u32 %s252, 4
          %s261 = int_to_ptr.vmem [resolvable:$true] %s260
          %266 = dma.hbm_to_vmem [thread:$0]  %s259, 4096, %s261, %s249, 128, 128, 8
        $region36: #{_mlp_forward_impl.1} parent=31 // pred_fallthru
          _
      $region32: #{_mlp_forward_impl.1} parent=5 // pred_fallthru
        _
      %p267 = scmp.le.s32.totalorder 1, %s18
      %p268 = scmp.lt.s32.totalorder %s18, 3
      %p269 = pnand %p267, %p268
      %p270 = pneg %p269
      // Predicated region
      $region37: #{_mlp_forward_impl.1} parent=5 // pred_check
        _
      $region38: #{_mlp_forward_impl.1} parent=5 // pred_check_branch
        %272 = sbr.rel (%p269) target = $region40
      $region39: #{_mlp_forward_impl.1} parent=5 // pred_region
        %s273 = ssub.s32 %s18, 1
        %s274 = sand.u32 %s43, 1
        %s275 = scalar_lea.sflag [#allocation4], %s274
        %s276 = sand.u32 %s43, 1
        %s277 = smul.addr %s276, 256
        %s278 = scalar_lea.vmem [#allocation3], %s277
        // Predicated region
        $region41: #{_mlp_forward_impl.1} parent=39 // pred_check
          %p279 = pneg %p56
        $region42: #{_mlp_forward_impl.1} parent=39 // pred_check_branch
          %281 = sbr.rel (%p279) target = $region44
        $region43: #{_mlp_forward_impl.1} parent=39 // pred_region
          %283 = dma.done %s275, 4096
        $region44: #{_mlp_forward_impl.1} parent=39 // pred_fallthru
          _
        // Predicated region
        $region45: #{_mlp_forward_impl.1} parent=39 // pred_check
          %p284 = pneg %p82
        $region46: #{_mlp_forward_impl.1} parent=39 // pred_check_branch
          %286 = sbr.rel (%p284) target = $region48
        $region47: #{_mlp_forward_impl.1} parent=39 // pred_region
          %288 = dma.done [#allocation7], 2048
        $region48: #{_mlp_forward_impl.1} parent=39 // pred_fallthru
          _
        // Predicated region
        $region49: #{_mlp_forward_impl.1} parent=39 // pred_check
          %p289 = pneg %p134
        $region50: #{_mlp_forward_impl.1} parent=39 // pred_check_branch
          %291 = sbr.rel (%p289) target = $region52
        $region51: #{_mlp_forward_impl.1} parent=39 // pred_region
          %293 = dma.done [#allocation7], 2048
        $region52: #{_mlp_forward_impl.1} parent=39 // pred_fallthru
          _
        %s294 = sand.u32 %s43, 1
        %s295 = scalar_lea.sflag [#allocation4], %s294
        %s296 = sand.u32 %s43, 1
        %s297 = smul.addr %s296, 256
        %s298 = scalar_lea.vmem [#allocation3], %s297
        %p299 = pneg %p56
        %p300 = pneg %p53
        %p301 = pneg %p82
        %p302 = pneg %p79
        %s303 = smul.u32 2, %s28
        %p304 = scmp.lt.s32.totalorder %s303, 1
        %s305 = scalar_select %p304, %s303, 1
        %s306 = scalar_lea.vmem %s2, %s305
        %p307 = pneg %p108
        %p308 = pneg %p105
        %p309 = pneg %p134
        %p310 = pneg %p131
        %p311 = pneg %p155
        %p312 = pneg %p152
        %p313 = pneg %p181
        %p314 = pneg %p178
        %s315 = sand.u32 %s168, 1
        %s316 = scalar_lea.sflag [#allocation5], %s315
        %s317 = sand.u32 %s168, 1
        %s318 = smul.addr %s317, 256
        %s319 = scalar_lea.vmem [#allocation9], %s318
        %s320 = smul.u32 32, %s27
        %s321 = smul.u32 2, %s28
        %s322 = smul.u32 2, %s28
        %p323 = scmp.lt.s32.totalorder %s322, 1
        %s324 = scalar_select %p323, %s322, 1
        %s325 = scalar_lea.vmem %s2, %s324
        %s326 = smul.u32 2, %s28
        %s327 = smul.u32 32, %s28
        %s328 = smul.u32 32, %s27
        %p329 = scmp.eq.s32.totalorder %s28, 0
        // Predicated region
        $region53: #{_mlp_forward_impl.1} parent=39 // pred_check
          %p330 = pneg %p329
        $region54: #{_mlp_forward_impl.1} parent=39 // pred_check_branch
          %332 = sbr.rel (%p330) target = $region56
        $region55: #{_mlp_forward_impl.1} parent=39 // pred_region
          %333 = vst [vmem:[#allocation2] sm:$0xff] 0.0
          %334 = vst [vmem:[#allocation2 + $0x8] sm:$0xff] 0.0
          %335 = vst [vmem:[#allocation2 + $0x10] sm:$0xff] 0.0
          %336 = vst [vmem:[#allocation2 + $0x18] sm:$0xff] 0.0
          %337 = vst [vmem:[#allocation2 + $0x20] sm:$0xff] 0.0
          %338 = vst [vmem:[#allocation2 + $0x28] sm:$0xff] 0.0
          %339 = vst [vmem:[#allocation2 + $0x30] sm:$0xff] 0.0
          %340 = vst [vmem:[#allocation2 + $0x38] sm:$0xff] 0.0
          %341 = vst [vmem:[#allocation2 + $0x40] sm:$0xff] 0.0
          %342 = vst [vmem:[#allocation2 + $0x48] sm:$0xff] 0.0
          %343 = vst [vmem:[#allocation2 + $0x50] sm:$0xff] 0.0
          %344 = vst [vmem:[#allocation2 + $0x58] sm:$0xff] 0.0
          %345 = vst [vmem:[#allocation2 + $0x60] sm:$0xff] 0.0
          %346 = vst [vmem:[#allocation2 + $0x68] sm:$0xff] 0.0
          %347 = vst [vmem:[#allocation2 + $0x70] sm:$0xff] 0.0
          %348 = vst [vmem:[#allocation2 + $0x78] sm:$0xff] 0.0
          %349 = vst [vmem:[#allocation2 + $0x80] sm:$0xff] 0.0
          %350 = vst [vmem:[#allocation2 + $0x88] sm:$0xff] 0.0
          %351 = vst [vmem:[#allocation2 + $0x90] sm:$0xff] 0.0
          %352 = vst [vmem:[#allocation2 + $0x98] sm:$0xff] 0.0
          %353 = vst [vmem:[#allocation2 + $0xa0] sm:$0xff] 0.0
          %354 = vst [vmem:[#allocation2 + $0xa8] sm:$0xff] 0.0
          %355 = vst [vmem:[#allocation2 + $0xb0] sm:$0xff] 0.0
          %356 = vst [vmem:[#allocation2 + $0xb8] sm:$0xff] 0.0
          %357 = vst [vmem:[#allocation2 + $0xc0] sm:$0xff] 0.0
          %358 = vst [vmem:[#allocation2 + $0xc8] sm:$0xff] 0.0
          %359 = vst [vmem:[#allocation2 + $0xd0] sm:$0xff] 0.0
          %360 = vst [vmem:[#allocation2 + $0xd8] sm:$0xff] 0.0
          %361 = vst [vmem:[#allocation2 + $0xe0] sm:$0xff] 0.0
          %362 = vst [vmem:[#allocation2 + $0xe8] sm:$0xff] 0.0
          %363 = vst [vmem:[#allocation2 + $0xf0] sm:$0xff] 0.0
          %364 = vst [vmem:[#allocation2 + $0xf8] sm:$0xff] 0.0
        $region56: #{_mlp_forward_impl.1} parent=39 // pred_fallthru
          _
        %v365 = vld [vmem:[%s278] sm:$0xff]
        %v366 = vld [vmem:[%s278 + $0x8] sm:$0xff]
        %v367 = vld [vmem:[%s278 + $0x10] sm:$0xff]
        %v368 = vld [vmem:[%s278 + $0x18] sm:$0xff]
        %v369 = vld [vmem:[%s278 + $0x20] sm:$0xff]
        %v370 = vld [vmem:[%s278 + $0x28] sm:$0xff]
        %v371 = vld [vmem:[%s278 + $0x30] sm:$0xff]
        %v372 = vld [vmem:[%s278 + $0x38] sm:$0xff]
        %v373 = vld [vmem:[%s278 + $0x40] sm:$0xff]
        %v374 = vld [vmem:[%s278 + $0x48] sm:$0xff]
        %v375 = vld [vmem:[%s278 + $0x50] sm:$0xff]
        %v376 = vld [vmem:[%s278 + $0x58] sm:$0xff]
        %v377 = vld [vmem:[%s278 + $0x60] sm:$0xff]
        %v378 = vld [vmem:[%s278 + $0x68] sm:$0xff]
        %v379 = vld [vmem:[%s278 + $0x70] sm:$0xff]
        %v380 = vld [vmem:[%s278 + $0x78] sm:$0xff]
        %v381 = vld [vmem:[%s278 + $0x80] sm:$0xff]
        %v382 = vld [vmem:[%s278 + $0x88] sm:$0xff]
        %v383 = vld [vmem:[%s278 + $0x90] sm:$0xff]
        %v384 = vld [vmem:[%s278 + $0x98] sm:$0xff]
        %v385 = vld [vmem:[%s278 + $0xa0] sm:$0xff]
        %v386 = vld [vmem:[%s278 + $0xa8] sm:$0xff]
        %v387 = vld [vmem:[%s278 + $0xb0] sm:$0xff]
        %v388 = vld [vmem:[%s278 + $0xb8] sm:$0xff]
        %v389 = vld [vmem:[%s278 + $0xc0] sm:$0xff]
        %v390 = vld [vmem:[%s278 + $0xc8] sm:$0xff]
        %v391 = vld [vmem:[%s278 + $0xd0] sm:$0xff]
        %v392 = vld [vmem:[%s278 + $0xd8] sm:$0xff]
        %v393 = vld [vmem:[%s278 + $0xe0] sm:$0xff]
        %v394 = vld [vmem:[%s278 + $0xe8] sm:$0xff]
        %v395 = vld [vmem:[%s278 + $0xf0] sm:$0xff]
        %v396 = vld [vmem:[%s278 + $0xf8] sm:$0xff]
        %v397 = vpack.c.bf16 %v366, %v365
        %v398 = vpack.c.bf16 %v368, %v367
        %v399 = vpack.c.bf16 %v370, %v369
        %v400 = vpack.c.bf16 %v372, %v371
        %v401 = vpack.c.bf16 %v374, %v373
        %v402 = vpack.c.bf16 %v376, %v375
        %v403 = vpack.c.bf16 %v378, %v377
        %v404 = vpack.c.bf16 %v380, %v379
        %v405 = vpack.c.bf16 %v382, %v381
        %v406 = vpack.c.bf16 %v384, %v383
        %v407 = vpack.c.bf16 %v386, %v385
        %v408 = vpack.c.bf16 %v388, %v387
        %v409 = vpack.c.bf16 %v390, %v389
        %v410 = vpack.c.bf16 %v392, %v391
        %v411 = vpack.c.bf16 %v394, %v393
        %v412 = vpack.c.bf16 %v396, %v395
        %v413 = vld [vmem:[#allocation6] sm:$0xff]
        %v414 = vld [vmem:[#allocation6 + $0x8] sm:$0xff]
        %v415 = vld [vmem:[#allocation6 + $0x10] sm:$0xff]
        %v416 = vld [vmem:[#allocation6 + $0x18] sm:$0xff]
        %v417 = vld [vmem:[#allocation6 + $0x20] sm:$0xff]
        %v418 = vld [vmem:[#allocation6 + $0x28] sm:$0xff]
        %v419 = vld [vmem:[#allocation6 + $0x30] sm:$0xff]
        %v420 = vld [vmem:[#allocation6 + $0x38] sm:$0xff]
        %v421 = vld [vmem:[#allocation6 + $0x40] sm:$0xff]
        %v422 = vld [vmem:[#allocation6 + $0x48] sm:$0xff]
        %v423 = vld [vmem:[#allocation6 + $0x50] sm:$0xff]
        %v424 = vld [vmem:[#allocation6 + $0x58] sm:$0xff]
        %v425 = vld [vmem:[#allocation6 + $0x60] sm:$0xff]
        %v426 = vld [vmem:[#allocation6 + $0x68] sm:$0xff]
        %v427 = vld [vmem:[#allocation6 + $0x70] sm:$0xff]
        %v428 = vld [vmem:[#allocation6 + $0x78] sm:$0xff]
        %v429 = vld [vmem:[%s325] sm:$0x3]
        %v431 = vperm.slane %v429, 0
        %v432 = vperm.slane %v429, 1
        %v451 = vunpack.c.l.b16 %v413
        %v452 = vunpack.c.h.b16 %v413
        %v453 = vunpack.c.l.b16 %v414
        %v454 = vunpack.c.h.b16 %v414
        %v455 = vunpack.c.l.b16 %v415
        %v456 = vunpack.c.h.b16 %v415
        %v457 = vunpack.c.l.b16 %v416
        %v458 = vunpack.c.h.b16 %v416
        %v459 = vunpack.c.l.b16 %v417
        %v460 = vunpack.c.h.b16 %v417
        %v461 = vunpack.c.l.b16 %v418
        %v462 = vunpack.c.h.b16 %v418
        %v463 = vunpack.c.l.b16 %v419
        %v464 = vunpack.c.h.b16 %v419
        %v465 = vunpack.c.l.b16 %v420
        %v466 = vunpack.c.h.b16 %v420
        %v467 = vunpack.c.l.b16 %v421
        %v468 = vunpack.c.h.b16 %v421
        %v469 = vunpack.c.l.b16 %v422
        %v470 = vunpack.c.h.b16 %v422
        %v471 = vunpack.c.l.b16 %v423
        %v472 = vunpack.c.h.b16 %v423
        %v473 = vunpack.c.l.b16 %v424
        %v474 = vunpack.c.h.b16 %v424
        %v475 = vunpack.c.l.b16 %v425
        %v476 = vunpack.c.h.b16 %v425
        %v477 = vunpack.c.l.b16 %v426
        %v478 = vunpack.c.h.b16 %v426
        %v479 = vunpack.c.l.b16 %v427
        %v480 = vunpack.c.h.b16 %v427
        %v481 = vunpack.c.l.b16 %v428
        %v482 = vunpack.c.h.b16 %v428
        %v483 = vpack.c.b16 %v453, %v451
        %v484 = vpack.c.b16 %v454, %v452
        %v485 = vpack.c.b16 %v457, %v455
        %v486 = vpack.c.b16 %v458, %v456
        %v487 = vpack.c.b16 %v461, %v459
        %v488 = vpack.c.b16 %v462, %v460
        %v489 = vpack.c.b16 %v465, %v463
        %v490 = vpack.c.b16 %v466, %v464
        %v491 = vpack.c.b16 %v469, %v467
        %v492 = vpack.c.b16 %v470, %v468
        %v493 = vpack.c.b16 %v473, %v471
        %v494 = vpack.c.b16 %v474, %v472
        %v495 = vpack.c.b16 %v477, %v475
        %v496 = vpack.c.b16 %v478, %v476
        %v497 = vpack.c.b16 %v481, %v479
        %v498 = vpack.c.b16 %v482, %v480
        %515 = vmatpush.bf16.msra.mxu0 %v497
        %516 = vmatpush.bf16.msra.mxu0 %v495
        %517 = vmatpush.bf16.msra.mxu0 %v493
        %518 = vmatpush.bf16.msra.mxu0 %v491
        %519 = vmatpush.bf16.msra.mxu0 %v489
        %520 = vmatpush.bf16.msra.mxu0 %v487
        %521 = vmatpush.bf16.msra.mxu0 %v485
        %522 = vmatpush.bf16.msra.mxu0 %v483
        %523 = vmatmul.bf16.gmra.mxu0 %v397
        %v524 = vpop.f32.mrf.mxu0
        %v525 = vadd.f32 %v431, %v524
        %v526 = vpop.f32.mrf.mxu0
        %v527 = vadd.f32 %v431, %v526
        %528 = vmatmul.bf16.gmra.mxu0 %v398
        %v529 = vpop.f32.mrf.mxu0
        %v530 = vadd.f32 %v431, %v529
        %v531 = vpop.f32.mrf.mxu0
        %v532 = vadd.f32 %v431, %v531
        %533 = vmatmul.bf16.gmra.mxu0 %v399
        %v534 = vpop.f32.mrf.mxu0
        %v535 = vadd.f32 %v431, %v534
        %v536 = vpop.f32.mrf.mxu0
        %v537 = vadd.f32 %v431, %v536
        %538 = vmatmul.bf16.gmra.mxu0 %v400
        %v539 = vpop.f32.mrf.mxu0
        %v540 = vadd.f32 %v431, %v539
        %v541 = vpop.f32.mrf.mxu0
        %v542 = vadd.f32 %v431, %v541
        %543 = vmatmul.bf16.gmra.mxu0 %v401
        %v544 = vpop.f32.mrf.mxu0
        %v545 = vadd.f32 %v431, %v544
        %v546 = vpop.f32.mrf.mxu0
        %v547 = vadd.f32 %v431, %v546
        %548 = vmatmul.bf16.gmra.mxu0 %v402
        %v549 = vpop.f32.mrf.mxu0
        %v550 = vadd.f32 %v431, %v549
        %v551 = vpop.f32.mrf.mxu0
        %v552 = vadd.f32 %v431, %v551
        %553 = vmatmul.bf16.gmra.mxu0 %v403
        %v554 = vpop.f32.mrf.mxu0
        %v555 = vadd.f32 %v431, %v554
        %v556 = vpop.f32.mrf.mxu0
        %v557 = vadd.f32 %v431, %v556
        %558 = vmatmul.bf16.gmra.mxu0 %v404
        %v559 = vpop.f32.mrf.mxu0
        %v560 = vadd.f32 %v431, %v559
        %v561 = vpop.f32.mrf.mxu0
        %v562 = vadd.f32 %v431, %v561
        %563 = vmatmul.bf16.gmra.mxu0 %v405
        %v564 = vpop.f32.mrf.mxu0
        %v565 = vadd.f32 %v431, %v564
        %v566 = vpop.f32.mrf.mxu0
        %v567 = vadd.f32 %v431, %v566
        %568 = vmatmul.bf16.gmra.mxu0 %v406
        %v569 = vpop.f32.mrf.mxu0
        %v570 = vadd.f32 %v431, %v569
        %v571 = vpop.f32.mrf.mxu0
        %v572 = vadd.f32 %v431, %v571
        %573 = vmatmul.bf16.gmra.mxu0 %v407
        %v574 = vpop.f32.mrf.mxu0
        %v575 = vadd.f32 %v431, %v574
        %v576 = vpop.f32.mrf.mxu0
        %v577 = vadd.f32 %v431, %v576
        %578 = vmatmul.bf16.gmra.mxu0 %v408
        %v579 = vpop.f32.mrf.mxu0
        %v580 = vadd.f32 %v431, %v579
        %v581 = vpop.f32.mrf.mxu0
        %v582 = vadd.f32 %v431, %v581
        %583 = vmatmul.bf16.gmra.mxu0 %v409
        %v584 = vpop.f32.mrf.mxu0
        %v585 = vadd.f32 %v431, %v584
        %v586 = vpop.f32.mrf.mxu0
        %v587 = vadd.f32 %v431, %v586
        %588 = vmatmul.bf16.gmra.mxu0 %v410
        %v589 = vpop.f32.mrf.mxu0
        %v590 = vadd.f32 %v431, %v589
        %v591 = vpop.f32.mrf.mxu0
        %v592 = vadd.f32 %v431, %v591
        %593 = vmatmul.bf16.gmra.mxu0 %v411
        %v594 = vpop.f32.mrf.mxu0
        %v595 = vadd.f32 %v431, %v594
        %v596 = vpop.f32.mrf.mxu0
        %v597 = vadd.f32 %v431, %v596
        %598 = vmatmul.bf16.gmra.mxu0 %v412
        %v599 = vpop.f32.mrf.mxu0
        %v600 = vadd.f32 %v431, %v599
        %v601 = vpop.f32.mrf.mxu0
        %v602 = vadd.f32 %v431, %v601
        %603 = vdwg.mxu0
        %604 = vmatpush.bf16.msra.mxu0 %v498
        %605 = vmatpush.bf16.msra.mxu0 %v496
        %606 = vmatpush.bf16.msra.mxu0 %v494
        %607 = vmatpush.bf16.msra.mxu0 %v492
        %608 = vmatpush.bf16.msra.mxu0 %v490
        %609 = vmatpush.bf16.msra.mxu0 %v488
        %610 = vmatpush.bf16.msra.mxu0 %v486
        %611 = vmatpush.bf16.msra.mxu0 %v484
        %612 = vmatmul.bf16.gmra.mxu0 %v397
        %v613 = vpop.f32.mrf.mxu0
        %v614 = vadd.f32 %v432, %v613
        %v615 = vpop.f32.mrf.mxu0
        %v616 = vadd.f32 %v432, %v615
        %617 = vmatmul.bf16.gmra.mxu0 %v398
        %v618 = vpop.f32.mrf.mxu0
        %v619 = vadd.f32 %v432, %v618
        %v620 = vpop.f32.mrf.mxu0
        %v621 = vadd.f32 %v432, %v620
        %622 = vmatmul.bf16.gmra.mxu0 %v399
        %v623 = vpop.f32.mrf.mxu0
        %v624 = vadd.f32 %v432, %v623
        %v625 = vpop.f32.mrf.mxu0
        %v626 = vadd.f32 %v432, %v625
        %627 = vmatmul.bf16.gmra.mxu0 %v400
        %v628 = vpop.f32.mrf.mxu0
        %v629 = vadd.f32 %v432, %v628
        %v630 = vpop.f32.mrf.mxu0
        %v631 = vadd.f32 %v432, %v630
        %632 = vmatmul.bf16.gmra.mxu0 %v401
        %v633 = vpop.f32.mrf.mxu0
        %v634 = vadd.f32 %v432, %v633
        %v635 = vpop.f32.mrf.mxu0
        %v636 = vadd.f32 %v432, %v635
        %637 = vmatmul.bf16.gmra.mxu0 %v402
        %v638 = vpop.f32.mrf.mxu0
        %v639 = vadd.f32 %v432, %v638
        %v640 = vpop.f32.mrf.mxu0
        %v641 = vadd.f32 %v432, %v640
        %642 = vmatmul.bf16.gmra.mxu0 %v403
        %v643 = vpop.f32.mrf.mxu0
        %v644 = vadd.f32 %v432, %v643
        %v645 = vpop.f32.mrf.mxu0
        %v646 = vadd.f32 %v432, %v645
        %647 = vmatmul.bf16.gmra.mxu0 %v404
        %v648 = vpop.f32.mrf.mxu0
        %v649 = vadd.f32 %v432, %v648
        %v650 = vpop.f32.mrf.mxu0
        %v651 = vadd.f32 %v432, %v650
        %652 = vmatmul.bf16.gmra.mxu0 %v405
        %v653 = vpop.f32.mrf.mxu0
        %v654 = vadd.f32 %v432, %v653
        %v655 = vpop.f32.mrf.mxu0
        %v656 = vadd.f32 %v432, %v655
        %657 = vmatmul.bf16.gmra.mxu0 %v406
        %v658 = vpop.f32.mrf.mxu0
        %v659 = vadd.f32 %v432, %v658
        %v660 = vpop.f32.mrf.mxu0
        %v661 = vadd.f32 %v432, %v660
        %662 = vmatmul.bf16.gmra.mxu0 %v407
        %v663 = vpop.f32.mrf.mxu0
        %v664 = vadd.f32 %v432, %v663
        %v665 = vpop.f32.mrf.mxu0
        %v666 = vadd.f32 %v432, %v665
        %667 = vmatmul.bf16.gmra.mxu0 %v408
        %v668 = vpop.f32.mrf.mxu0
        %v669 = vadd.f32 %v432, %v668
        %v670 = vpop.f32.mrf.mxu0
        %v671 = vadd.f32 %v432, %v670
        %672 = vmatmul.bf16.gmra.mxu0 %v409
        %v673 = vpop.f32.mrf.mxu0
        %v674 = vadd.f32 %v432, %v673
        %v675 = vpop.f32.mrf.mxu0
        %v676 = vadd.f32 %v432, %v675
        %677 = vmatmul.bf16.gmra.mxu0 %v410
        %v678 = vpop.f32.mrf.mxu0
        %v679 = vadd.f32 %v432, %v678
        %v680 = vpop.f32.mrf.mxu0
        %v681 = vadd.f32 %v432, %v680
        %682 = vmatmul.bf16.gmra.mxu0 %v411
        %v683 = vpop.f32.mrf.mxu0
        %v684 = vadd.f32 %v432, %v683
        %v685 = vpop.f32.mrf.mxu0
        %v686 = vadd.f32 %v432, %v685
        %687 = vmatmul.bf16.gmra.mxu0 %v412
        %v688 = vpop.f32.mrf.mxu0
        %v689 = vadd.f32 %v432, %v688
        %v690 = vpop.f32.mrf.mxu0
        %v691 = vadd.f32 %v432, %v690
        %692 = vdwg.mxu0
        %v693 = vmax.f32 %v525, 0.0
        %v694 = vmax.f32 %v614, 0.0
        %v695 = vmax.f32 %v527, 0.0
        %v696 = vmax.f32 %v616, 0.0
        %v697 = vmax.f32 %v530, 0.0
        %v698 = vmax.f32 %v619, 0.0
        %v699 = vmax.f32 %v532, 0.0
        %v700 = vmax.f32 %v621, 0.0
        %v701 = vmax.f32 %v535, 0.0
        %v702 = vmax.f32 %v624, 0.0
        %v703 = vmax.f32 %v537, 0.0
        %v704 = vmax.f32 %v626, 0.0
        %v705 = vmax.f32 %v540, 0.0
        %v706 = vmax.f32 %v629, 0.0
        %v707 = vmax.f32 %v542, 0.0
        %v708 = vmax.f32 %v631, 0.0
        %v709 = vmax.f32 %v545, 0.0
        %v710 = vmax.f32 %v634, 0.0
        %v711 = vmax.f32 %v547, 0.0
        %v712 = vmax.f32 %v636, 0.0
        %v713 = vmax.f32 %v550, 0.0
        %v714 = vmax.f32 %v639, 0.0
        %v715 = vmax.f32 %v552, 0.0
        %v716 = vmax.f32 %v641, 0.0
        %v717 = vmax.f32 %v555, 0.0
        %v718 = vmax.f32 %v644, 0.0
        %v719 = vmax.f32 %v557, 0.0
        %v720 = vmax.f32 %v646, 0.0
        %v721 = vmax.f32 %v560, 0.0
        %v722 = vmax.f32 %v649, 0.0
        %v723 = vmax.f32 %v562, 0.0
        %v724 = vmax.f32 %v651, 0.0
        %v725 = vmax.f32 %v565, 0.0
        %v726 = vmax.f32 %v654, 0.0
        %v727 = vmax.f32 %v567, 0.0
        %v728 = vmax.f32 %v656, 0.0
        %v729 = vmax.f32 %v570, 0.0
        %v730 = vmax.f32 %v659, 0.0
        %v731 = vmax.f32 %v572, 0.0
        %v732 = vmax.f32 %v661, 0.0
        %v733 = vmax.f32 %v575, 0.0
        %v734 = vmax.f32 %v664, 0.0
        %v735 = vmax.f32 %v577, 0.0
        %v736 = vmax.f32 %v666, 0.0
        %v737 = vmax.f32 %v580, 0.0
        %v738 = vmax.f32 %v669, 0.0
        %v739 = vmax.f32 %v582, 0.0
        %v740 = vmax.f32 %v671, 0.0
        %v741 = vmax.f32 %v585, 0.0
        %v742 = vmax.f32 %v674, 0.0
        %v743 = vmax.f32 %v587, 0.0
        %v744 = vmax.f32 %v676, 0.0
        %v745 = vmax.f32 %v590, 0.0
        %v746 = vmax.f32 %v679, 0.0
        %v747 = vmax.f32 %v592, 0.0
        %v748 = vmax.f32 %v681, 0.0
        %v749 = vmax.f32 %v595, 0.0
        %v750 = vmax.f32 %v684, 0.0
        %v751 = vmax.f32 %v597, 0.0
        %v752 = vmax.f32 %v686, 0.0
        %v753 = vmax.f32 %v600, 0.0
        %v754 = vmax.f32 %v689, 0.0
        %v755 = vmax.f32 %v602, 0.0
        %v756 = vmax.f32 %v691, 0.0
        %v757 = vld [vmem:[#allocation2] sm:$0xff]
        %v758 = vld [vmem:[#allocation2 + $0x8] sm:$0xff]
        %v759 = vld [vmem:[#allocation2 + $0x10] sm:$0xff]
        %v760 = vld [vmem:[#allocation2 + $0x18] sm:$0xff]
        %v761 = vld [vmem:[#allocation2 + $0x20] sm:$0xff]
        %v762 = vld [vmem:[#allocation2 + $0x28] sm:$0xff]
        %v763 = vld [vmem:[#allocation2 + $0x30] sm:$0xff]
        %v764 = vld [vmem:[#allocation2 + $0x38] sm:$0xff]
        %v765 = vld [vmem:[#allocation2 + $0x40] sm:$0xff]
        %v766 = vld [vmem:[#allocation2 + $0x48] sm:$0xff]
        %v767 = vld [vmem:[#allocation2 + $0x50] sm:$0xff]
        %v768 = vld [vmem:[#allocation2 + $0x58] sm:$0xff]
        %v769 = vld [vmem:[#allocation2 + $0x60] sm:$0xff]
        %v770 = vld [vmem:[#allocation2 + $0x68] sm:$0xff]
        %v771 = vld [vmem:[#allocation2 + $0x70] sm:$0xff]
        %v772 = vld [vmem:[#allocation2 + $0x78] sm:$0xff]
        %v773 = vld [vmem:[#allocation2 + $0x80] sm:$0xff]
        %v774 = vld [vmem:[#allocation2 + $0x88] sm:$0xff]
        %v775 = vld [vmem:[#allocation2 + $0x90] sm:$0xff]
        %v776 = vld [vmem:[#allocation2 + $0x98] sm:$0xff]
        %v777 = vld [vmem:[#allocation2 + $0xa0] sm:$0xff]
        %v778 = vld [vmem:[#allocation2 + $0xa8] sm:$0xff]
        %v779 = vld [vmem:[#allocation2 + $0xb0] sm:$0xff]
        %v780 = vld [vmem:[#allocation2 + $0xb8] sm:$0xff]
        %v781 = vld [vmem:[#allocation2 + $0xc0] sm:$0xff]
        %v782 = vld [vmem:[#allocation2 + $0xc8] sm:$0xff]
        %v783 = vld [vmem:[#allocation2 + $0xd0] sm:$0xff]
        %v784 = vld [vmem:[#allocation2 + $0xd8] sm:$0xff]
        %v785 = vld [vmem:[#allocation2 + $0xe0] sm:$0xff]
        %v786 = vld [vmem:[#allocation2 + $0xe8] sm:$0xff]
        %v787 = vld [vmem:[#allocation2 + $0xf0] sm:$0xff]
        %v788 = vld [vmem:[#allocation2 + $0xf8] sm:$0xff]
        %v789 = vpack.c.bf16 %v695, %v693
        %v790 = vpack.c.bf16 %v696, %v694
        %v791 = vpack.c.bf16 %v699, %v697
        %v792 = vpack.c.bf16 %v700, %v698
        %v793 = vpack.c.bf16 %v703, %v701
        %v794 = vpack.c.bf16 %v704, %v702
        %v795 = vpack.c.bf16 %v707, %v705
        %v796 = vpack.c.bf16 %v708, %v706
        %v797 = vpack.c.bf16 %v711, %v709
        %v798 = vpack.c.bf16 %v712, %v710
        %v799 = vpack.c.bf16 %v715, %v713
        %v800 = vpack.c.bf16 %v716, %v714
        %v801 = vpack.c.bf16 %v719, %v717
        %v802 = vpack.c.bf16 %v720, %v718
        %v803 = vpack.c.bf16 %v723, %v721
        %v804 = vpack.c.bf16 %v724, %v722
        %v805 = vpack.c.bf16 %v727, %v725
        %v806 = vpack.c.bf16 %v728, %v726
        %v807 = vpack.c.bf16 %v731, %v729
        %v808 = vpack.c.bf16 %v732, %v730
        %v809 = vpack.c.bf16 %v735, %v733
        %v810 = vpack.c.bf16 %v736, %v734
        %v811 = vpack.c.bf16 %v739, %v737
        %v812 = vpack.c.bf16 %v740, %v738
        %v813 = vpack.c.bf16 %v743, %v741
        %v814 = vpack.c.bf16 %v744, %v742
        %v815 = vpack.c.bf16 %v747, %v745
        %v816 = vpack.c.bf16 %v748, %v746
        %v817 = vpack.c.bf16 %v751, %v749
        %v818 = vpack.c.bf16 %v752, %v750
        %v819 = vpack.c.bf16 %v755, %v753
        %v820 = vpack.c.bf16 %v756, %v754
        %v821 = vld [vmem:[#allocation8] sm:$0xf]
        %v822 = vld [vmem:[#allocation8 + $0x4] sm:$0xf]
        %v823 = vld [vmem:[#allocation8 + $0x8] sm:$0xf]
        %v824 = vld [vmem:[#allocation8 + $0xc] sm:$0xf]
        %v825 = vld [vmem:[#allocation8 + $0x10] sm:$0xf]
        %v826 = vld [vmem:[#allocation8 + $0x14] sm:$0xf]
        %v827 = vld [vmem:[#allocation8 + $0x18] sm:$0xf]
        %v828 = vld [vmem:[#allocation8 + $0x1c] sm:$0xf]
        %v829 = vld [vmem:[#allocation8 + $0x20] sm:$0xf]
        %v830 = vld [vmem:[#allocation8 + $0x24] sm:$0xf]
        %v831 = vld [vmem:[#allocation8 + $0x28] sm:$0xf]
        %v832 = vld [vmem:[#allocation8 + $0x2c] sm:$0xf]
        %v833 = vld [vmem:[#allocation8 + $0x30] sm:$0xf]
        %v834 = vld [vmem:[#allocation8 + $0x34] sm:$0xf]
        %v835 = vld [vmem:[#allocation8 + $0x38] sm:$0xf]
        %v836 = vld [vmem:[#allocation8 + $0x3c] sm:$0xf]
        %v837 = vld [vmem:[#allocation8 + $0x40] sm:$0xf]
        %v838 = vld [vmem:[#allocation8 + $0x44] sm:$0xf]
        %v839 = vld [vmem:[#allocation8 + $0x48] sm:$0xf]
        %v840 = vld [vmem:[#allocation8 + $0x4c] sm:$0xf]
        %v841 = vld [vmem:[#allocation8 + $0x50] sm:$0xf]
        %v842 = vld [vmem:[#allocation8 + $0x54] sm:$0xf]
        %v843 = vld [vmem:[#allocation8 + $0x58] sm:$0xf]
        %v844 = vld [vmem:[#allocation8 + $0x5c] sm:$0xf]
        %v845 = vld [vmem:[#allocation8 + $0x60] sm:$0xf]
        %v846 = vld [vmem:[#allocation8 + $0x64] sm:$0xf]
        %v847 = vld [vmem:[#allocation8 + $0x68] sm:$0xf]
        %v848 = vld [vmem:[#allocation8 + $0x6c] sm:$0xf]
        %v849 = vld [vmem:[#allocation8 + $0x70] sm:$0xf]
        %v850 = vld [vmem:[#allocation8 + $0x74] sm:$0xf]
        %v851 = vld [vmem:[#allocation8 + $0x78] sm:$0xf]
        %v852 = vld [vmem:[#allocation8 + $0x7c] sm:$0xf]
        %v885 = vunpack.c.l.b16 %v821
        %v886 = vunpack.c.l.b16 %v822
        %v887 = vunpack.c.l.b16 %v823
        %v888 = vunpack.c.l.b16 %v824
        %v889 = vunpack.c.l.b16 %v825
        %v890 = vunpack.c.l.b16 %v826
        %v891 = vunpack.c.l.b16 %v827
        %v892 = vunpack.c.l.b16 %v828
        %v893 = vunpack.c.l.b16 %v829
        %v894 = vunpack.c.l.b16 %v830
        %v895 = vunpack.c.l.b16 %v831
        %v896 = vunpack.c.l.b16 %v832
        %v897 = vunpack.c.l.b16 %v833
        %v898 = vunpack.c.l.b16 %v834
        %v899 = vunpack.c.l.b16 %v835
        %v900 = vunpack.c.l.b16 %v836
        %v901 = vunpack.c.l.b16 %v837
        %v902 = vunpack.c.l.b16 %v838
        %v903 = vunpack.c.l.b16 %v839
        %v904 = vunpack.c.l.b16 %v840
        %v905 = vunpack.c.l.b16 %v841
        %v906 = vunpack.c.l.b16 %v842
        %v907 = vunpack.c.l.b16 %v843
        %v908 = vunpack.c.l.b16 %v844
        %v909 = vunpack.c.l.b16 %v845
        %v910 = vunpack.c.l.b16 %v846
        %v911 = vunpack.c.l.b16 %v847
        %v912 = vunpack.c.l.b16 %v848
        %v913 = vunpack.c.l.b16 %v849
        %v914 = vunpack.c.l.b16 %v850
        %v915 = vunpack.c.l.b16 %v851
        %v916 = vunpack.c.l.b16 %v852
        %v917 = vpack.c.b16 %v886, %v885
        %v918 = vpack.c.b16 %v888, %v887
        %v919 = vpack.c.b16 %v890, %v889
        %v920 = vpack.c.b16 %v892, %v891
        %v921 = vpack.c.b16 %v894, %v893
        %v922 = vpack.c.b16 %v896, %v895
        %v923 = vpack.c.b16 %v898, %v897
        %v924 = vpack.c.b16 %v900, %v899
        %v925 = vpack.c.b16 %v902, %v901
        %v926 = vpack.c.b16 %v904, %v903
        %v927 = vpack.c.b16 %v906, %v905
        %v928 = vpack.c.b16 %v908, %v907
        %v929 = vpack.c.b16 %v910, %v909
        %v930 = vpack.c.b16 %v912, %v911
        %v931 = vpack.c.b16 %v914, %v913
        %v932 = vpack.c.b16 %v916, %v915
        %949 = vmatpush.bf16.msra.mxu0 %v924
        %950 = vmatpush.bf16.msra.mxu0 %v923
        %951 = vmatpush.bf16.msra.mxu0 %v922
        %952 = vmatpush.bf16.msra.mxu0 %v921
        %953 = vmatpush.bf16.msra.mxu0 %v920
        %954 = vmatpush.bf16.msra.mxu0 %v919
        %955 = vmatpush.bf16.msra.mxu0 %v918
        %956 = vmatpush.bf16.msra.mxu0 %v917
        %957 = vmatmul.bf16.gmra.mxu0 %v789
        %v958 = vpop.f32.mrf.mxu0
        %v959 = vadd.f32 0.0, %v958
        %v960 = vpop.f32.mrf.mxu0
        %v961 = vadd.f32 0.0, %v960
        %962 = vmatmul.bf16.gmra.mxu0 %v791
        %v963 = vpop.f32.mrf.mxu0
        %v964 = vadd.f32 0.0, %v963
        %v965 = vpop.f32.mrf.mxu0
        %v966 = vadd.f32 0.0, %v965
        %967 = vmatmul.bf16.gmra.mxu0 %v793
        %v968 = vpop.f32.mrf.mxu0
        %v969 = vadd.f32 0.0, %v968
        %v970 = vpop.f32.mrf.mxu0
        %v971 = vadd.f32 0.0, %v970
        %972 = vmatmul.bf16.gmra.mxu0 %v795
        %v973 = vpop.f32.mrf.mxu0
        %v974 = vadd.f32 0.0, %v973
        %v975 = vpop.f32.mrf.mxu0
        %v976 = vadd.f32 0.0, %v975
        %977 = vmatmul.bf16.gmra.mxu0 %v797
        %v978 = vpop.f32.mrf.mxu0
        %v979 = vadd.f32 0.0, %v978
        %v980 = vpop.f32.mrf.mxu0
        %v981 = vadd.f32 0.0, %v980
        %982 = vmatmul.bf16.gmra.mxu0 %v799
        %v983 = vpop.f32.mrf.mxu0
        %v984 = vadd.f32 0.0, %v983
        %v985 = vpop.f32.mrf.mxu0
        %v986 = vadd.f32 0.0, %v985
        %987 = vmatmul.bf16.gmra.mxu0 %v801
        %v988 = vpop.f32.mrf.mxu0
        %v989 = vadd.f32 0.0, %v988
        %v990 = vpop.f32.mrf.mxu0
        %v991 = vadd.f32 0.0, %v990
        %992 = vmatmul.bf16.gmra.mxu0 %v803
        %v993 = vpop.f32.mrf.mxu0
        %v994 = vadd.f32 0.0, %v993
        %v995 = vpop.f32.mrf.mxu0
        %v996 = vadd.f32 0.0, %v995
        %997 = vmatmul.bf16.gmra.mxu0 %v805
        %v998 = vpop.f32.mrf.mxu0
        %v999 = vadd.f32 0.0, %v998
        %v1000 = vpop.f32.mrf.mxu0
        %v1001 = vadd.f32 0.0, %v1000
        %1002 = vmatmul.bf16.gmra.mxu0 %v807
        %v1003 = vpop.f32.mrf.mxu0
        %v1004 = vadd.f32 0.0, %v1003
        %v1005 = vpop.f32.mrf.mxu0
        %v1006 = vadd.f32 0.0, %v1005
        %1007 = vmatmul.bf16.gmra.mxu0 %v809
        %v1008 = vpop.f32.mrf.mxu0
        %v1009 = vadd.f32 0.0, %v1008
        %v1010 = vpop.f32.mrf.mxu0
        %v1011 = vadd.f32 0.0, %v1010
        %1012 = vmatmul.bf16.gmra.mxu0 %v811
        %v1013 = vpop.f32.mrf.mxu0
        %v1014 = vadd.f32 0.0, %v1013
        %v1015 = vpop.f32.mrf.mxu0
        %v1016 = vadd.f32 0.0, %v1015
        %1017 = vmatmul.bf16.gmra.mxu0 %v813
        %v1018 = vpop.f32.mrf.mxu0
        %v1019 = vadd.f32 0.0, %v1018
        %v1020 = vpop.f32.mrf.mxu0
        %v1021 = vadd.f32 0.0, %v1020
        %1022 = vmatmul.bf16.gmra.mxu0 %v815
        %v1023 = vpop.f32.mrf.mxu0
        %v1024 = vadd.f32 0.0, %v1023
        %v1025 = vpop.f32.mrf.mxu0
        %v1026 = vadd.f32 0.0, %v1025
        %1027 = vmatmul.bf16.gmra.mxu0 %v817
        %v1028 = vpop.f32.mrf.mxu0
        %v1029 = vadd.f32 0.0, %v1028
        %v1030 = vpop.f32.mrf.mxu0
        %v1031 = vadd.f32 0.0, %v1030
        %1032 = vmatmul.bf16.gmra.mxu0 %v819
        %v1033 = vpop.f32.mrf.mxu0
        %v1034 = vadd.f32 0.0, %v1033
        %v1035 = vpop.f32.mrf.mxu0
        %v1036 = vadd.f32 0.0, %v1035
        %1037 = vdwg.mxu0
        %1038 = vmatpush.bf16.msra.mxu0 %v932
        %1039 = vmatpush.bf16.msra.mxu0 %v931
        %1040 = vmatpush.bf16.msra.mxu0 %v930
        %1041 = vmatpush.bf16.msra.mxu0 %v929
        %1042 = vmatpush.bf16.msra.mxu0 %v928
        %1043 = vmatpush.bf16.msra.mxu0 %v927
        %1044 = vmatpush.bf16.msra.mxu0 %v926
        %1045 = vmatpush.bf16.msra.mxu0 %v925
        %1046 = vmatmul.bf16.gmra.mxu0 %v790
        %v1047 = vpop.f32.mrf.mxu0
        %v1048 = vadd.f32 %v959, %v1047
        %v1049 = vpop.f32.mrf.mxu0
        %v1050 = vadd.f32 %v961, %v1049
        %1051 = vmatmul.bf16.gmra.mxu0 %v792
        %v1052 = vpop.f32.mrf.mxu0
        %v1053 = vadd.f32 %v964, %v1052
        %v1054 = vpop.f32.mrf.mxu0
        %v1055 = vadd.f32 %v966, %v1054
        %1056 = vmatmul.bf16.gmra.mxu0 %v794
        %v1057 = vpop.f32.mrf.mxu0
        %v1058 = vadd.f32 %v969, %v1057
        %v1059 = vpop.f32.mrf.mxu0
        %v1060 = vadd.f32 %v971, %v1059
        %1061 = vmatmul.bf16.gmra.mxu0 %v796
        %v1062 = vpop.f32.mrf.mxu0
        %v1063 = vadd.f32 %v974, %v1062
        %v1064 = vpop.f32.mrf.mxu0
        %v1065 = vadd.f32 %v976, %v1064
        %1066 = vmatmul.bf16.gmra.mxu0 %v798
        %v1067 = vpop.f32.mrf.mxu0
        %v1068 = vadd.f32 %v979, %v1067
        %v1069 = vpop.f32.mrf.mxu0
        %v1070 = vadd.f32 %v981, %v1069
        %1071 = vmatmul.bf16.gmra.mxu0 %v800
        %v1072 = vpop.f32.mrf.mxu0
        %v1073 = vadd.f32 %v984, %v1072
        %v1074 = vpop.f32.mrf.mxu0
        %v1075 = vadd.f32 %v986, %v1074
        %1076 = vmatmul.bf16.gmra.mxu0 %v802
        %v1077 = vpop.f32.mrf.mxu0
        %v1078 = vadd.f32 %v989, %v1077
        %v1079 = vpop.f32.mrf.mxu0
        %v1080 = vadd.f32 %v991, %v1079
        %1081 = vmatmul.bf16.gmra.mxu0 %v804
        %v1082 = vpop.f32.mrf.mxu0
        %v1083 = vadd.f32 %v994, %v1082
        %v1084 = vpop.f32.mrf.mxu0
        %v1085 = vadd.f32 %v996, %v1084
        %1086 = vmatmul.bf16.gmra.mxu0 %v806
        %v1087 = vpop.f32.mrf.mxu0
        %v1088 = vadd.f32 %v999, %v1087
        %v1089 = vpop.f32.mrf.mxu0
        %v1090 = vadd.f32 %v1001, %v1089
        %1091 = vmatmul.bf16.gmra.mxu0 %v808
        %v1092 = vpop.f32.mrf.mxu0
        %v1093 = vadd.f32 %v1004, %v1092
        %v1094 = vpop.f32.mrf.mxu0
        %v1095 = vadd.f32 %v1006, %v1094
        %1096 = vmatmul.bf16.gmra.mxu0 %v810
        %v1097 = vpop.f32.mrf.mxu0
        %v1098 = vadd.f32 %v1009, %v1097
        %v1099 = vpop.f32.mrf.mxu0
        %v1100 = vadd.f32 %v1011, %v1099
        %1101 = vmatmul.bf16.gmra.mxu0 %v812
        %v1102 = vpop.f32.mrf.mxu0
        %v1103 = vadd.f32 %v1014, %v1102
        %v1104 = vpop.f32.mrf.mxu0
        %v1105 = vadd.f32 %v1016, %v1104
        %1106 = vmatmul.bf16.gmra.mxu0 %v814
        %v1107 = vpop.f32.mrf.mxu0
        %v1108 = vadd.f32 %v1019, %v1107
        %v1109 = vpop.f32.mrf.mxu0
        %v1110 = vadd.f32 %v1021, %v1109
        %1111 = vmatmul.bf16.gmra.mxu0 %v816
        %v1112 = vpop.f32.mrf.mxu0
        %v1113 = vadd.f32 %v1024, %v1112
        %v1114 = vpop.f32.mrf.mxu0
        %v1115 = vadd.f32 %v1026, %v1114
        %1116 = vmatmul.bf16.gmra.mxu0 %v818
        %v1117 = vpop.f32.mrf.mxu0
        %v1118 = vadd.f32 %v1029, %v1117
        %v1119 = vpop.f32.mrf.mxu0
        %v1120 = vadd.f32 %v1031, %v1119
        %1121 = vmatmul.bf16.gmra.mxu0 %v820
        %v1122 = vpop.f32.mrf.mxu0
        %v1123 = vadd.f32 %v1034, %v1122
        %v1124 = vpop.f32.mrf.mxu0
        %v1125 = vadd.f32 %v1036, %v1124
        %1126 = vdwg.mxu0
        %v1127 = vadd.f32 %v757, %v1048
        %v1128 = vadd.f32 %v758, %v1050
        %v1129 = vadd.f32 %v759, %v1053
        %v1130 = vadd.f32 %v760, %v1055
        %v1131 = vadd.f32 %v761, %v1058
        %v1132 = vadd.f32 %v762, %v1060
        %v1133 = vadd.f32 %v763, %v1063
        %v1134 = vadd.f32 %v764, %v1065
        %v1135 = vadd.f32 %v765, %v1068
        %v1136 = vadd.f32 %v766, %v1070
        %v1137 = vadd.f32 %v767, %v1073
        %v1138 = vadd.f32 %v768, %v1075
        %v1139 = vadd.f32 %v769, %v1078
        %v1140 = vadd.f32 %v770, %v1080
        %v1141 = vadd.f32 %v771, %v1083
        %v1142 = vadd.f32 %v772, %v1085
        %v1143 = vadd.f32 %v773, %v1088
        %v1144 = vadd.f32 %v774, %v1090
        %v1145 = vadd.f32 %v775, %v1093
        %v1146 = vadd.f32 %v776, %v1095
        %v1147 = vadd.f32 %v777, %v1098
        %v1148 = vadd.f32 %v778, %v1100
        %v1149 = vadd.f32 %v779, %v1103
        %v1150 = vadd.f32 %v780, %v1105
        %v1151 = vadd.f32 %v781, %v1108
        %v1152 = vadd.f32 %v782, %v1110
        %v1153 = vadd.f32 %v783, %v1113
        %v1154 = vadd.f32 %v784, %v1115
        %v1155 = vadd.f32 %v785, %v1118
        %v1156 = vadd.f32 %v786, %v1120
        %v1157 = vadd.f32 %v787, %v1123
        %v1158 = vadd.f32 %v788, %v1125
        %1159 = vst [vmem:[#allocation2] sm:$0xff] %v1127
        %1160 = vst [vmem:[#allocation2 + $0x8] sm:$0xff] %v1128
        %1161 = vst [vmem:[#allocation2 + $0x10] sm:$0xff] %v1129
        %1162 = vst [vmem:[#allocation2 + $0x18] sm:$0xff] %v1130
        %1163 = vst [vmem:[#allocation2 + $0x20] sm:$0xff] %v1131
        %1164 = vst [vmem:[#allocation2 + $0x28] sm:$0xff] %v1132
        %1165 = vst [vmem:[#allocation2 + $0x30] sm:$0xff] %v1133
        %1166 = vst [vmem:[#allocation2 + $0x38] sm:$0xff] %v1134
        %1167 = vst [vmem:[#allocation2 + $0x40] sm:$0xff] %v1135
        %1168 = vst [vmem:[#allocation2 + $0x48] sm:$0xff] %v1136
        %1169 = vst [vmem:[#allocation2 + $0x50] sm:$0xff] %v1137
        %1170 = vst [vmem:[#allocation2 + $0x58] sm:$0xff] %v1138
        %1171 = vst [vmem:[#allocation2 + $0x60] sm:$0xff] %v1139
        %1172 = vst [vmem:[#allocation2 + $0x68] sm:$0xff] %v1140
        %1173 = vst [vmem:[#allocation2 + $0x70] sm:$0xff] %v1141
        %1174 = vst [vmem:[#allocation2 + $0x78] sm:$0xff] %v1142
        %1175 = vst [vmem:[#allocation2 + $0x80] sm:$0xff] %v1143
        %1176 = vst [vmem:[#allocation2 + $0x88] sm:$0xff] %v1144
        %1177 = vst [vmem:[#allocation2 + $0x90] sm:$0xff] %v1145
        %1178 = vst [vmem:[#allocation2 + $0x98] sm:$0xff] %v1146
        %1179 = vst [vmem:[#allocation2 + $0xa0] sm:$0xff] %v1147
        %1180 = vst [vmem:[#allocation2 + $0xa8] sm:$0xff] %v1148
        %1181 = vst [vmem:[#allocation2 + $0xb0] sm:$0xff] %v1149
        %1182 = vst [vmem:[#allocation2 + $0xb8] sm:$0xff] %v1150
        %1183 = vst [vmem:[#allocation2 + $0xc0] sm:$0xff] %v1151
        %1184 = vst [vmem:[#allocation2 + $0xc8] sm:$0xff] %v1152
        %1185 = vst [vmem:[#allocation2 + $0xd0] sm:$0xff] %v1153
        %1186 = vst [vmem:[#allocation2 + $0xd8] sm:$0xff] %v1154
        %1187 = vst [vmem:[#allocation2 + $0xe0] sm:$0xff] %v1155
        %1188 = vst [vmem:[#allocation2 + $0xe8] sm:$0xff] %v1156
        %1189 = vst [vmem:[#allocation2 + $0xf0] sm:$0xff] %v1157
        %1190 = vst [vmem:[#allocation2 + $0xf8] sm:$0xff] %v1158
        // Predicated region
        $region57: #{_mlp_forward_impl.1} parent=39 // pred_check
          %p1191 = pneg %p329
        $region58: #{_mlp_forward_impl.1} parent=39 // pred_check_branch
          %1193 = sbr.rel (%p1191) target = $region60
        $region59: #{_mlp_forward_impl.1} parent=39 // pred_region
          %v1194 = vld [vmem:[#allocation2] sm:$0xff]
          %v1195 = vld [vmem:[#allocation2 + $0x8] sm:$0xff]
          %v1196 = vld [vmem:[#allocation2 + $0x10] sm:$0xff]
          %v1197 = vld [vmem:[#allocation2 + $0x18] sm:$0xff]
          %v1198 = vld [vmem:[#allocation2 + $0x20] sm:$0xff]
          %v1199 = vld [vmem:[#allocation2 + $0x28] sm:$0xff]
          %v1200 = vld [vmem:[#allocation2 + $0x30] sm:$0xff]
          %v1201 = vld [vmem:[#allocation2 + $0x38] sm:$0xff]
          %v1202 = vld [vmem:[#allocation2 + $0x40] sm:$0xff]
          %v1203 = vld [vmem:[#allocation2 + $0x48] sm:$0xff]
          %v1204 = vld [vmem:[#allocation2 + $0x50] sm:$0xff]
          %v1205 = vld [vmem:[#allocation2 + $0x58] sm:$0xff]
          %v1206 = vld [vmem:[#allocation2 + $0x60] sm:$0xff]
          %v1207 = vld [vmem:[#allocation2 + $0x68] sm:$0xff]
          %v1208 = vld [vmem:[#allocation2 + $0x70] sm:$0xff]
          %v1209 = vld [vmem:[#allocation2 + $0x78] sm:$0xff]
          %v1210 = vld [vmem:[#allocation2 + $0x80] sm:$0xff]
          %v1211 = vld [vmem:[#allocation2 + $0x88] sm:$0xff]
          %v1212 = vld [vmem:[#allocation2 + $0x90] sm:$0xff]
          %v1213 = vld [vmem:[#allocation2 + $0x98] sm:$0xff]
          %v1214 = vld [vmem:[#allocation2 + $0xa0] sm:$0xff]
          %v1215 = vld [vmem:[#allocation2 + $0xa8] sm:$0xff]
          %v1216 = vld [vmem:[#allocation2 + $0xb0] sm:$0xff]
          %v1217 = vld [vmem:[#allocation2 + $0xb8] sm:$0xff]
          %v1218 = vld [vmem:[#allocation2 + $0xc0] sm:$0xff]
          %v1219 = vld [vmem:[#allocation2 + $0xc8] sm:$0xff]
          %v1220 = vld [vmem:[#allocation2 + $0xd0] sm:$0xff]
          %v1221 = vld [vmem:[#allocation2 + $0xd8] sm:$0xff]
          %v1222 = vld [vmem:[#allocation2 + $0xe0] sm:$0xff]
          %v1223 = vld [vmem:[#allocation2 + $0xe8] sm:$0xff]
          %v1224 = vld [vmem:[#allocation2 + $0xf0] sm:$0xff]
          %v1225 = vld [vmem:[#allocation2 + $0xf8] sm:$0xff]
          %v1226 = vld [vmem:[%s4] sm:$0x1]
          %v1228 = vperm.slane %v1226, 0
          %v1230 = vadd.f32 %v1194, %v1228
          %v1231 = vadd.f32 %v1195, %v1228
          %v1232 = vadd.f32 %v1196, %v1228
          %v1233 = vadd.f32 %v1197, %v1228
          %v1234 = vadd.f32 %v1198, %v1228
          %v1235 = vadd.f32 %v1199, %v1228
          %v1236 = vadd.f32 %v1200, %v1228
          %v1237 = vadd.f32 %v1201, %v1228
          %v1238 = vadd.f32 %v1202, %v1228
          %v1239 = vadd.f32 %v1203, %v1228
          %v1240 = vadd.f32 %v1204, %v1228
          %v1241 = vadd.f32 %v1205, %v1228
          %v1242 = vadd.f32 %v1206, %v1228
          %v1243 = vadd.f32 %v1207, %v1228
          %v1244 = vadd.f32 %v1208, %v1228
          %v1245 = vadd.f32 %v1209, %v1228
          %v1246 = vadd.f32 %v1210, %v1228
          %v1247 = vadd.f32 %v1211, %v1228
          %v1248 = vadd.f32 %v1212, %v1228
          %v1249 = vadd.f32 %v1213, %v1228
          %v1250 = vadd.f32 %v1214, %v1228
          %v1251 = vadd.f32 %v1215, %v1228
          %v1252 = vadd.f32 %v1216, %v1228
          %v1253 = vadd.f32 %v1217, %v1228
          %v1254 = vadd.f32 %v1218, %v1228
          %v1255 = vadd.f32 %v1219, %v1228
          %v1256 = vadd.f32 %v1220, %v1228
          %v1257 = vadd.f32 %v1221, %v1228
          %v1258 = vadd.f32 %v1222, %v1228
          %v1259 = vadd.f32 %v1223, %v1228
          %v1260 = vadd.f32 %v1224, %v1228
          %v1261 = vadd.f32 %v1225, %v1228
          %1262 = vmax.xlane.f32.xlu0 %v1230
          %v1263 = vpop.xlane.xlu0 %1262
          %1264 = vmax.xlane.f32.xlu0 %v1231
          %v1265 = vpop.xlane.xlu0 %1264
          %1266 = vmax.xlane.f32.xlu0 %v1232
          %v1267 = vpop.xlane.xlu0 %1266
          %1268 = vmax.xlane.f32.xlu0 %v1233
          %v1269 = vpop.xlane.xlu0 %1268
          %1270 = vmax.xlane.f32.xlu0 %v1234
          %v1271 = vpop.xlane.xlu0 %1270
          %1272 = vmax.xlane.f32.xlu0 %v1235
          %v1273 = vpop.xlane.xlu0 %1272
          %1274 = vmax.xlane.f32.xlu0 %v1236
          %v1275 = vpop.xlane.xlu0 %1274
          %1276 = vmax.xlane.f32.xlu0 %v1237
          %v1277 = vpop.xlane.xlu0 %1276
          %1278 = vmax.xlane.f32.xlu0 %v1238
          %v1279 = vpop.xlane.xlu0 %1278
          %1280 = vmax.xlane.f32.xlu0 %v1239
          %v1281 = vpop.xlane.xlu0 %1280
          %1282 = vmax.xlane.f32.xlu0 %v1240
          %v1283 = vpop.xlane.xlu0 %1282
          %1284 = vmax.xlane.f32.xlu0 %v1241
          %v1285 = vpop.xlane.xlu0 %1284
          %1286 = vmax.xlane.f32.xlu0 %v1242
          %v1287 = vpop.xlane.xlu0 %1286
          %1288 = vmax.xlane.f32.xlu0 %v1243
          %v1289 = vpop.xlane.xlu0 %1288
          %1290 = vmax.xlane.f32.xlu0 %v1244
          %v1291 = vpop.xlane.xlu0 %1290
          %1292 = vmax.xlane.f32.xlu0 %v1245
          %v1293 = vpop.xlane.xlu0 %1292
          %1294 = vmax.xlane.f32.xlu0 %v1246
          %v1295 = vpop.xlane.xlu0 %1294
          %1296 = vmax.xlane.f32.xlu0 %v1247
          %v1297 = vpop.xlane.xlu0 %1296
          %1298 = vmax.xlane.f32.xlu0 %v1248
          %v1299 = vpop.xlane.xlu0 %1298
          %1300 = vmax.xlane.f32.xlu0 %v1249
          %v1301 = vpop.xlane.xlu0 %1300
          %1302 = vmax.xlane.f32.xlu0 %v1250
          %v1303 = vpop.xlane.xlu0 %1302
          %1304 = vmax.xlane.f32.xlu0 %v1251
          %v1305 = vpop.xlane.xlu0 %1304
          %1306 = vmax.xlane.f32.xlu0 %v1252
          %v1307 = vpop.xlane.xlu0 %1306
          %1308 = vmax.xlane.f32.xlu0 %v1253
          %v1309 = vpop.xlane.xlu0 %1308
          %1310 = vmax.xlane.f32.xlu0 %v1254
          %v1311 = vpop.xlane.xlu0 %1310
          %1312 = vmax.xlane.f32.xlu0 %v1255
          %v1313 = vpop.xlane.xlu0 %1312
          %1314 = vmax.xlane.f32.xlu0 %v1256
          %v1315 = vpop.xlane.xlu0 %1314
          %1316 = vmax.xlane.f32.xlu0 %v1257
          %v1317 = vpop.xlane.xlu0 %1316
          %1318 = vmax.xlane.f32.xlu0 %v1258
          %v1319 = vpop.xlane.xlu0 %1318
          %1320 = vmax.xlane.f32.xlu0 %v1259
          %v1321 = vpop.xlane.xlu0 %1320
          %1322 = vmax.xlane.f32.xlu0 %v1260
          %v1323 = vpop.xlane.xlu0 %1322
          %1324 = vmax.xlane.f32.xlu0 %v1261
          %v1325 = vpop.xlane.xlu0 %1324
          %v1326 = vsub.f32 %v1230, %v1263
          %v1327 = vsub.f32 %v1231, %v1265
          %v1328 = vsub.f32 %v1232, %v1267
          %v1329 = vsub.f32 %v1233, %v1269
          %v1330 = vsub.f32 %v1234, %v1271
          %v1331 = vsub.f32 %v1235, %v1273
          %v1332 = vsub.f32 %v1236, %v1275
          %v1333 = vsub.f32 %v1237, %v1277
          %v1334 = vsub.f32 %v1238, %v1279
          %v1335 = vsub.f32 %v1239, %v1281
          %v1336 = vsub.f32 %v1240, %v1283
          %v1337 = vsub.f32 %v1241, %v1285
          %v1338 = vsub.f32 %v1242, %v1287
          %v1339 = vsub.f32 %v1243, %v1289
          %v1340 = vsub.f32 %v1244, %v1291
          %v1341 = vsub.f32 %v1245, %v1293
          %v1342 = vsub.f32 %v1246, %v1295
          %v1343 = vsub.f32 %v1247, %v1297
          %v1344 = vsub.f32 %v1248, %v1299
          %v1345 = vsub.f32 %v1249, %v1301
          %v1346 = vsub.f32 %v1250, %v1303
          %v1347 = vsub.f32 %v1251, %v1305
          %v1348 = vsub.f32 %v1252, %v1307
          %v1349 = vsub.f32 %v1253, %v1309
          %v1350 = vsub.f32 %v1254, %v1311
          %v1351 = vsub.f32 %v1255, %v1313
          %v1352 = vsub.f32 %v1256, %v1315
          %v1353 = vsub.f32 %v1257, %v1317
          %v1354 = vsub.f32 %v1258, %v1319
          %v1355 = vsub.f32 %v1259, %v1321
          %v1356 = vsub.f32 %v1260, %v1323
          %v1357 = vsub.f32 %v1261, %v1325
          %v1358 = vmul.f32 %v1326, 1.442695
          %v1359 = vpow.pop %v1358
          %v1360 = vmul.f32 %v1327, 1.442695
          %v1361 = vpow.pop %v1360
          %v1362 = vmul.f32 %v1328, 1.442695
          %v1363 = vpow.pop %v1362
          %v1364 = vmul.f32 %v1329, 1.442695
          %v1365 = vpow.pop %v1364
          %v1366 = vmul.f32 %v1330, 1.442695
          %v1367 = vpow.pop %v1366
          %v1368 = vmul.f32 %v1331, 1.442695
          %v1369 = vpow.pop %v1368
          %v1370 = vmul.f32 %v1332, 1.442695
          %v1371 = vpow.pop %v1370
          %v1372 = vmul.f32 %v1333, 1.442695
          %v1373 = vpow.pop %v1372
          %v1374 = vmul.f32 %v1334, 1.442695
          %v1375 = vpow.pop %v1374
          %v1376 = vmul.f32 %v1335, 1.442695
          %v1377 = vpow.pop %v1376
          %v1378 = vmul.f32 %v1336, 1.442695
          %v1379 = vpow.pop %v1378
          %v1380 = vmul.f32 %v1337, 1.442695
          %v1381 = vpow.pop %v1380
          %v1382 = vmul.f32 %v1338, 1.442695
          %v1383 = vpow.pop %v1382
          %v1384 = vmul.f32 %v1339, 1.442695
          %v1385 = vpow.pop %v1384
          %v1386 = vmul.f32 %v1340, 1.442695
          %v1387 = vpow.pop %v1386
          %v1388 = vmul.f32 %v1341, 1.442695
          %v1389 = vpow.pop %v1388
          %v1390 = vmul.f32 %v1342, 1.442695
          %v1391 = vpow.pop %v1390
          %v1392 = vmul.f32 %v1343, 1.442695
          %v1393 = vpow.pop %v1392
          %v1394 = vmul.f32 %v1344, 1.442695
          %v1395 = vpow.pop %v1394
          %v1396 = vmul.f32 %v1345, 1.442695
          %v1397 = vpow.pop %v1396
          %v1398 = vmul.f32 %v1346, 1.442695
          %v1399 = vpow.pop %v1398
          %v1400 = vmul.f32 %v1347, 1.442695
          %v1401 = vpow.pop %v1400
          %v1402 = vmul.f32 %v1348, 1.442695
          %v1403 = vpow.pop %v1402
          %v1404 = vmul.f32 %v1349, 1.442695
          %v1405 = vpow.pop %v1404
          %v1406 = vmul.f32 %v1350, 1.442695
          %v1407 = vpow.pop %v1406
          %v1408 = vmul.f32 %v1351, 1.442695
          %v1409 = vpow.pop %v1408
          %v1410 = vmul.f32 %v1352, 1.442695
          %v1411 = vpow.pop %v1410
          %v1412 = vmul.f32 %v1353, 1.442695
          %v1413 = vpow.pop %v1412
          %v1414 = vmul.f32 %v1354, 1.442695
          %v1415 = vpow.pop %v1414
          %v1416 = vmul.f32 %v1355, 1.442695
          %v1417 = vpow.pop %v1416
          %v1418 = vmul.f32 %v1356, 1.442695
          %v1419 = vpow.pop %v1418
          %v1420 = vmul.f32 %v1357, 1.442695
          %v1421 = vpow.pop %v1420
          %1422 = vadd.xlane.f32.xlu0 %v1359
          %v1423 = vpop.xlane.xlu0 %1422
          %1424 = vadd.xlane.f32.xlu0 %v1361
          %v1425 = vpop.xlane.xlu0 %1424
          %1426 = vadd.xlane.f32.xlu0 %v1363
          %v1427 = vpop.xlane.xlu0 %1426
          %1428 = vadd.xlane.f32.xlu0 %v1365
          %v1429 = vpop.xlane.xlu0 %1428
          %1430 = vadd.xlane.f32.xlu0 %v1367
          %v1431 = vpop.xlane.xlu0 %1430
          %1432 = vadd.xlane.f32.xlu0 %v1369
          %v1433 = vpop.xlane.xlu0 %1432
          %1434 = vadd.xlane.f32.xlu0 %v1371
          %v1435 = vpop.xlane.xlu0 %1434
          %1436 = vadd.xlane.f32.xlu0 %v1373
          %v1437 = vpop.xlane.xlu0 %1436
          %1438 = vadd.xlane.f32.xlu0 %v1375
          %v1439 = vpop.xlane.xlu0 %1438
          %1440 = vadd.xlane.f32.xlu0 %v1377
          %v1441 = vpop.xlane.xlu0 %1440
          %1442 = vadd.xlane.f32.xlu0 %v1379
          %v1443 = vpop.xlane.xlu0 %1442
          %1444 = vadd.xlane.f32.xlu0 %v1381
          %v1445 = vpop.xlane.xlu0 %1444
          %1446 = vadd.xlane.f32.xlu0 %v1383
          %v1447 = vpop.xlane.xlu0 %1446
          %1448 = vadd.xlane.f32.xlu0 %v1385
          %v1449 = vpop.xlane.xlu0 %1448
          %1450 = vadd.xlane.f32.xlu0 %v1387
          %v1451 = vpop.xlane.xlu0 %1450
          %1452 = vadd.xlane.f32.xlu0 %v1389
          %v1453 = vpop.xlane.xlu0 %1452
          %1454 = vadd.xlane.f32.xlu0 %v1391
          %v1455 = vpop.xlane.xlu0 %1454
          %1456 = vadd.xlane.f32.xlu0 %v1393
          %v1457 = vpop.xlane.xlu0 %1456
          %1458 = vadd.xlane.f32.xlu0 %v1395
          %v1459 = vpop.xlane.xlu0 %1458
          %1460 = vadd.xlane.f32.xlu0 %v1397
          %v1461 = vpop.xlane.xlu0 %1460
          %1462 = vadd.xlane.f32.xlu0 %v1399
          %v1463 = vpop.xlane.xlu0 %1462
          %1464 = vadd.xlane.f32.xlu0 %v1401
          %v1465 = vpop.xlane.xlu0 %1464
          %1466 = vadd.xlane.f32.xlu0 %v1403
          %v1467 = vpop.xlane.xlu0 %1466
          %1468 = vadd.xlane.f32.xlu0 %v1405
          %v1469 = vpop.xlane.xlu0 %1468
          %1470 = vadd.xlane.f32.xlu0 %v1407
          %v1471 = vpop.xlane.xlu0 %1470
          %1472 = vadd.xlane.f32.xlu0 %v1409
          %v1473 = vpop.xlane.xlu0 %1472
          %1474 = vadd.xlane.f32.xlu0 %v1411
          %v1475 = vpop.xlane.xlu0 %1474
          %1476 = vadd.xlane.f32.xlu0 %v1413
          %v1477 = vpop.xlane.xlu0 %1476
          %1478 = vadd.xlane.f32.xlu0 %v1415
          %v1479 = vpop.xlane.xlu0 %1478
          %1480 = vadd.xlane.f32.xlu0 %v1417
          %v1481 = vpop.xlane.xlu0 %1480
          %1482 = vadd.xlane.f32.xlu0 %v1419
          %v1483 = vpop.xlane.xlu0 %1482
          %1484 = vadd.xlane.f32.xlu0 %v1421
          %v1485 = vpop.xlane.xlu0 %1484
          %v1486 = vrcp.pop %v1423
          %v1487 = vrcp.pop %v1425
          %v1488 = vrcp.pop %v1427
          %v1489 = vrcp.pop %v1429
          %v1490 = vrcp.pop %v1431
          %v1491 = vrcp.pop %v1433
          %v1492 = vrcp.pop %v1435
          %v1493 = vrcp.pop %v1437
          %v1494 = vrcp.pop %v1439
          %v1495 = vrcp.pop %v1441
          %v1496 = vrcp.pop %v1443
          %v1497 = vrcp.pop %v1445
          %v1498 = vrcp.pop %v1447
          %v1499 = vrcp.pop %v1449
          %v1500 = vrcp.pop %v1451
          %v1501 = vrcp.pop %v1453
          %v1502 = vrcp.pop %v1455
          %v1503 = vrcp.pop %v1457
          %v1504 = vrcp.pop %v1459
          %v1505 = vrcp.pop %v1461
          %v1506 = vrcp.pop %v1463
          %v1507 = vrcp.pop %v1465
          %v1508 = vrcp.pop %v1467
          %v1509 = vrcp.pop %v1469
          %v1510 = vrcp.pop %v1471
          %v1511 = vrcp.pop %v1473
          %v1512 = vrcp.pop %v1475
          %v1513 = vrcp.pop %v1477
          %v1514 = vrcp.pop %v1479
          %v1515 = vrcp.pop %v1481
          %v1516 = vrcp.pop %v1483
          %v1517 = vrcp.pop %v1485
          %v1518 = vmul.f32 %v1359, %v1486
          %v1519 = vmul.f32 %v1361, %v1487
          %v1520 = vmul.f32 %v1363, %v1488
          %v1521 = vmul.f32 %v1365, %v1489
          %v1522 = vmul.f32 %v1367, %v1490
          %v1523 = vmul.f32 %v1369, %v1491
          %v1524 = vmul.f32 %v1371, %v1492
          %v1525 = vmul.f32 %v1373, %v1493
          %v1526 = vmul.f32 %v1375, %v1494
          %v1527 = vmul.f32 %v1377, %v1495
          %v1528 = vmul.f32 %v1379, %v1496
          %v1529 = vmul.f32 %v1381, %v1497
          %v1530 = vmul.f32 %v1383, %v1498
          %v1531 = vmul.f32 %v1385, %v1499
          %v1532 = vmul.f32 %v1387, %v1500
          %v1533 = vmul.f32 %v1389, %v1501
          %v1534 = vmul.f32 %v1391, %v1502
          %v1535 = vmul.f32 %v1393, %v1503
          %v1536 = vmul.f32 %v1395, %v1504
          %v1537 = vmul.f32 %v1397, %v1505
          %v1538 = vmul.f32 %v1399, %v1506
          %v1539 = vmul.f32 %v1401, %v1507
          %v1540 = vmul.f32 %v1403, %v1508
          %v1541 = vmul.f32 %v1405, %v1509
          %v1542 = vmul.f32 %v1407, %v1510
          %v1543 = vmul.f32 %v1409, %v1511
          %v1544 = vmul.f32 %v1411, %v1512
          %v1545 = vmul.f32 %v1413, %v1513
          %v1546 = vmul.f32 %v1415, %v1514
          %v1547 = vmul.f32 %v1417, %v1515
          %v1548 = vmul.f32 %v1419, %v1516
          %v1549 = vmul.f32 %v1421, %v1517
          %1550 = vst [vmem:[%s319] sm:$0xff] %v1518
          %1551 = vst [vmem:[%s319 + $0x8] sm:$0xff] %v1519
          %1552 = vst [vmem:[%s319 + $0x10] sm:$0xff] %v1520
          %1553 = vst [vmem:[%s319 + $0x18] sm:$0xff] %v1521
          %1554 = vst [vmem:[%s319 + $0x20] sm:$0xff] %v1522
          %1555 = vst [vmem:[%s319 + $0x28] sm:$0xff] %v1523
          %1556 = vst [vmem:[%s319 + $0x30] sm:$0xff] %v1524
          %1557 = vst [vmem:[%s319 + $0x38] sm:$0xff] %v1525
          %1558 = vst [vmem:[%s319 + $0x40] sm:$0xff] %v1526
          %1559 = vst [vmem:[%s319 + $0x48] sm:$0xff] %v1527
          %1560 = vst [vmem:[%s319 + $0x50] sm:$0xff] %v1528
          %1561 = vst [vmem:[%s319 + $0x58] sm:$0xff] %v1529
          %1562 = vst [vmem:[%s319 + $0x60] sm:$0xff] %v1530
          %1563 = vst [vmem:[%s319 + $0x68] sm:$0xff] %v1531
          %1564 = vst [vmem:[%s319 + $0x70] sm:$0xff] %v1532
          %1565 = vst [vmem:[%s319 + $0x78] sm:$0xff] %v1533
          %1566 = vst [vmem:[%s319 + $0x80] sm:$0xff] %v1534
          %1567 = vst [vmem:[%s319 + $0x88] sm:$0xff] %v1535
          %1568 = vst [vmem:[%s319 + $0x90] sm:$0xff] %v1536
          %1569 = vst [vmem:[%s319 + $0x98] sm:$0xff] %v1537
          %1570 = vst [vmem:[%s319 + $0xa0] sm:$0xff] %v1538
          %1571 = vst [vmem:[%s319 + $0xa8] sm:$0xff] %v1539
          %1572 = vst [vmem:[%s319 + $0xb0] sm:$0xff] %v1540
          %1573 = vst [vmem:[%s319 + $0xb8] sm:$0xff] %v1541
          %1574 = vst [vmem:[%s319 + $0xc0] sm:$0xff] %v1542
          %1575 = vst [vmem:[%s319 + $0xc8] sm:$0xff] %v1543
          %1576 = vst [vmem:[%s319 + $0xd0] sm:$0xff] %v1544
          %1577 = vst [vmem:[%s319 + $0xd8] sm:$0xff] %v1545
          %1578 = vst [vmem:[%s319 + $0xe0] sm:$0xff] %v1546
          %1579 = vst [vmem:[%s319 + $0xe8] sm:$0xff] %v1547
          %1580 = vst [vmem:[%s319 + $0xf0] sm:$0xff] %v1548
          %1581 = vst [vmem:[%s319 + $0xf8] sm:$0xff] %v1549
        $region60: #{_mlp_forward_impl.1} parent=39 // pred_fallthru
          _
        %s1582 = sand.u32 %s168, 1
        %s1583 = scalar_lea.sflag [#allocation5], %s1582
        %s1584 = sand.u32 %s168, 1
        %s1585 = smul.addr %s1584, 256
        %s1586 = scalar_lea.vmem [#allocation9], %s1585
        // Predicated region
        $region61: #{_mlp_forward_impl.1} parent=39 // pred_check
          %p1587 = pneg %p178
        $region62: #{_mlp_forward_impl.1} parent=39 // pred_check_branch
          %1589 = sbr.rel (%p1587) target = $region64
        $region63: #{_mlp_forward_impl.1} parent=39 // pred_region
          %s1590 = smul.u32 32, %s27
          %1592 = vsyncadd %s1583, 0
          %s1593 = smul.addr %s1590, 8
          %s1594 = scalar_lea.hbm %s5, %s1593
          %s1595 = sshll.u32 %s1586, 4
          %s1596 = int_to_ptr.vmem [resolvable:$true] %s1595
          %s1597 = sshll.u32 %s1594, 4
          %s1598 = int_to_ptr.hbm [resolvable:$true] %s1597
          %1603 = dma.vmem_to_hbm [thread:$0]  %s1596, 4096, %s1598, %s1583, 128, 128, 8
        $region64: #{_mlp_forward_impl.1} parent=39 // pred_fallthru
          _
      $region40: #{_mlp_forward_impl.1} parent=5 // pred_fallthru
        _
      %p1604 = scmp.le.s32.totalorder 2, %s18
      // Predicated region
      $region65: #{_mlp_forward_impl.1} parent=5 // pred_check
        %p1605 = pneg %p1604
      $region66: #{_mlp_forward_impl.1} parent=5 // pred_check_branch
        %1607 = sbr.rel (%p1605) target = $region68
      $region67: #{_mlp_forward_impl.1} parent=5 // pred_region
        %s1608 = ssub.s32 %s18, 2
        // Predicated region
        $region69: #{_mlp_forward_impl.1} parent=67 // pred_check
          %p1609 = pneg %p184
        $region70: #{_mlp_forward_impl.1} parent=67 // pred_check_branch
          %1611 = sbr.rel (%p1609) target = $region72
        $region71: #{_mlp_forward_impl.1} parent=67 // pred_region
          %s1612 = sand.u32 %s169, 1
          %s1613 = scalar_lea.sflag [#allocation5], %s1612
          %s1614 = sand.u32 %s169, 1
          %s1615 = smul.addr %s1614, 256
          %s1616 = scalar_lea.vmem [#allocation9], %s1615
          %1618 = dma.done %s1613, 4096
        $region72: #{_mlp_forward_impl.1} parent=67 // pred_fallthru
          _
      $region68: #{_mlp_forward_impl.1} parent=5 // pred_fallthru
        _
    $region6: #{_mlp_forward_impl.1} parent=1 // loop_footer
      %s22 = sadd.s32 1, %s18
    $region7: #{_mlp_forward_impl.1} parent=1 // loop_footer_branch
      %17 = sbr.rel target = $region3
    $region8: #{_mlp_forward_impl.1} parent=1 // loop_exit
      _
    %1619 = vsyncpa [#allocation4], 1
    %s1620 = scalar_lea.sflag [#allocation4], 1
    %1621 = vsyncpa %s1620, 1
    %1622 = vsyncpa [#allocation7], 1
    %1623 = vsyncpa [#allocation5], 1
    %s1624 = scalar_lea.sflag [#allocation5], 1
    %1625 = vsyncpa %s1624, 1

</llo_original>
